<compile_context>
chip_gen: v7x
topology: tpu7x:2x2x1
jax: 0.10.0
libtpu: 0.0.40
codegen_flags: <defaults>
</compile_context>

<pallas_src>
import functools

import jax
import jax.numpy as jnp
from jax.experimental import pallas as pl
from jax.experimental.pallas import tpu as pltpu


def _round_up(x, m):
    return ((x + m - 1) // m) * m


# ----------------------------------------------------------------------------
# Fused tiled linear:  y = [LayerNorm](x) @ W (+ bias) (QuickGELU) (+ residual)
# ----------------------------------------------------------------------------

def _make_linear_kernel(*, n_k, has_ln, has_bias, has_residual, quick_gelu):
    def kernel(*refs):
        idx = 0
        x_ref = refs[idx]; idx += 1
        if has_ln:
            g_ref = refs[idx]; beta_ref = refs[idx + 1]; idx += 2
        w_ref = refs[idx]; idx += 1
        if has_bias:
            bias_ref = refs[idx]; idx += 1
        if has_residual:
            r_ref = refs[idx]; idx += 1
        o_ref = refs[idx]; idx += 1
        acc_ref = refs[idx] if n_k > 1 else None

        def partial_product():
            x = x_ref[...]
            if has_ln:                      # LN in f32, then bf16 for the MXU
                xf = x.astype(jnp.float32)
                mean = jnp.mean(xf, axis=-1, keepdims=True)
                var = jnp.mean((xf - mean) ** 2, axis=-1, keepdims=True)
                xf = (xf - mean) * jax.lax.rsqrt(var + 1e-5)
                x = (xf * g_ref[...] + beta_ref[...]).astype(jnp.bfloat16)
            return jnp.dot(x, w_ref[...], preferred_element_type=jnp.float32)

        def epilogue(y):
            if has_bias:
                y = y + bias_ref[...]
            if quick_gelu:                  # QuickGELU: x * sigmoid(1.702 x)
                y = y * jax.nn.sigmoid(1.702 * y)
            if has_residual:
                y = y + r_ref[...].astype(jnp.float32)
            o_ref[...] = y.astype(o_ref.dtype)

        if n_k == 1:
            epilogue(partial_product())
        else:
            k = pl.program_id(2)

            @pl.when(k == 0)
            def _():
                acc_ref[...] = jnp.zeros_like(acc_ref)

            acc_ref[...] += partial_product()

            @pl.when(k == n_k - 1)
            def _():
                epilogue(acc_ref[...])

    return kernel


def linear(x, w, b=None, *, ln=None, residual=None, quick_gelu=False,
           out_dtype=jnp.float32, tm=256, tn=256, tk=512):
    """x:(M,K), w:(K,N) -> (M,N). bf16 MXU matmul, f32 accumulator/epilogue.

    Tile caps (tm=tn=256, tk=512) keep the double-buffered per-step footprint
    ~2 MiB, well inside v7x's 64 MiB VMEM (and trivially inside v5e/v6e).
    """
    M, K = x.shape
    Kw, N = w.shape
    assert Kw == K
    has_ln = ln is not None
    has_bias = b is not None
    has_residual = residual is not None
    if has_residual:
        assert residual.shape == (M, N)

    tm = min(tm, _round_up(M, 16))          # 16: bf16 sublane packing friendly
    tn = min(tn, _round_up(N, 128))         # lane-dense output blocks
    Mp = _round_up(M, tm)
    Np = _round_up(N, tn)

    if has_ln:
        # LayerNorm needs the full (unpadded) feature row -> single K tile.
        tk_ = K
        Kp = K
        x_in = x.astype(jnp.float32)
    else:
        tk_ = min(tk, _round_up(K, 128))
        Kp = _round_up(K, tk_)
        x_in = x.astype(jnp.bfloat16)
    n_k = Kp // tk_

    if (Mp, Kp) != (M, K):
        x_in = jnp.pad(x_in, ((0, Mp - M), (0, Kp - K)))
    w_in = w.astype(jnp.bfloat16)
    if (Kp, Np) != (K, N):
        w_in = jnp.pad(w_in, ((0, Kp - K), (0, Np - N)))

    inputs = [x_in]
    in_specs = [pl.BlockSpec((tm, tk_), lambda i, j, k: (i, k))]
    if has_ln:
        g, beta = ln
        inputs += [g.astype(jnp.float32).reshape(1, K),
                   beta.astype(jnp.float32).reshape(1, K)]
        in_specs += [pl.BlockSpec((1, K), lambda i, j, k: (0, 0)),
                     pl.BlockSpec((1, K), lambda i, j, k: (0, 0))]
    inputs.append(w_in)
    in_specs.append(pl.BlockSpec((tk_, tn), lambda i, j, k: (k, j)))
    if has_bias:
        b_in = b.astype(jnp.float32).reshape(1, N)
        if Np != N:
            b_in = jnp.pad(b_in, ((0, 0), (0, Np - N)))
        inputs.append(b_in)
        in_specs.append(pl.BlockSpec((1, tn), lambda i, j, k: (0, j)))
    if has_residual:
        r_in = residual.astype(jnp.float32)
        if (Mp, Np) != (M, N):
            r_in = jnp.pad(r_in, ((0, Mp - M), (0, Np - N)))
        inputs.append(r_in)
        in_specs.append(pl.BlockSpec((tm, tn), lambda i, j, k: (i, j)))

    kernel = _make_linear_kernel(n_k=n_k, has_ln=has_ln, has_bias=has_bias,
                                 has_residual=has_residual,
                                 quick_gelu=quick_gelu)
    scratch = [pltpu.VMEM((tm, tn), jnp.float32)] if n_k > 1 else []

    out = pl.pallas_call(
        kernel,
        out_shape=jax.ShapeDtypeStruct((Mp, Np), out_dtype),
        grid=(Mp // tm, Np // tn, n_k),
        in_specs=in_specs,
        out_specs=pl.BlockSpec((tm, tn), lambda i, j, k: (i, j)),
        scratch_shapes=scratch,
        compiler_params=pltpu.CompilerParams(
            dimension_semantics=("parallel", "parallel", "arbitrary")),
    )(*inputs)

    if (Mp, Np) != (M, N):
        out = out[:M, :N]
    return out


# ----------------------------------------------------------------------------
# Standalone row-tiled LayerNorm (only used for ln_pre; others are fused)
# ----------------------------------------------------------------------------

def _layernorm_kernel(x_ref, g_ref, b_ref, o_ref):
    x = x_ref[...].astype(jnp.float32)
    mean = jnp.mean(x, axis=-1, keepdims=True)
    var = jnp.mean((x - mean) ** 2, axis=-1, keepdims=True)
    y = (x - mean) * jax.lax.rsqrt(var + 1e-5)
    o_ref[...] = (y * g_ref[...] + b_ref[...]).astype(o_ref.dtype)


def layernorm(x, g, b, *, tm=512):
    shape = x.shape
    D = shape[-1]
    x2 = x.reshape(-1, D)
    M = x2.shape[0]
    tm = min(tm, _round_up(M, 8))
    Mp = _round_up(M, tm)
    if Mp != M:
        x2 = jnp.pad(x2, ((0, Mp - M), (0, 0)))
    out = pl.pallas_call(
        _layernorm_kernel,
        out_shape=jax.ShapeDtypeStruct((Mp, D), jnp.float32),
        grid=(Mp // tm,),
        in_specs=[pl.BlockSpec((tm, D), lambda i: (i, 0)),
                  pl.BlockSpec((1, D), lambda i: (0, 0)),
                  pl.BlockSpec((1, D), lambda i: (0, 0))],
        out_specs=pl.BlockSpec((tm, D), lambda i: (i, 0)),
        compiler_params=pltpu.CompilerParams(dimension_semantics=("parallel",)),
    )(x2, g.astype(jnp.float32).reshape(1, D), b.astype(jnp.float32).reshape(1, D))
    return out[:M].reshape(shape)


# ----------------------------------------------------------------------------
# Multi-head self-attention: grid over batch, all heads per grid step,
# lane-dense (S, 3D) in / (S, D) out blocks, bf16 matmuls, f32 softmax.
# ----------------------------------------------------------------------------

def _attention_kernel(qkv_ref, o_ref, *, num_heads, scale):
    qkv = qkv_ref[0]                              # (S, 3D) bf16
    D = qkv.shape[1] // 3
    hd = D // num_heads
    for h in range(num_heads):                    # static unroll over heads
        q = qkv[:, h * hd:(h + 1) * hd]
        k = qkv[:, D + h * hd:D + (h + 1) * hd]
        v = qkv[:, 2 * D + h * hd:2 * D + (h + 1) * hd]
        # q @ k^T via dot_general contracting on hd (no explicit transpose).
        s = jax.lax.dot_general(q, k, (((1,), (1,)), ((), ())),
                                preferred_element_type=jnp.float32) * scale
        s = s - jnp.max(s, axis=-1, keepdims=True)
        p = jnp.exp(s)
        p = p * pl.reciprocal(jnp.sum(p, axis=-1, keepdims=True), approx=True)
        o = jnp.dot(p.astype(jnp.bfloat16), v, preferred_element_type=jnp.float32)
        o_ref[0, :, h * hd:(h + 1) * hd] = o.astype(o_ref.dtype)


def attention(qkv, *, num_heads):
    """qkv: (B, S, 3D) bf16 in [q|k|v] column order -> (B, S, D) bf16."""
    B, S, threeD = qkv.shape
    D = threeD // 3
    hd = D // num_heads
    kern = functools.partial(_attention_kernel, num_heads=num_heads,
                             scale=1.0 / float(hd) ** 0.5)
    return pl.pallas_call(
        kern,
        out_shape=jax.ShapeDtypeStruct((B, S, D), jnp.bfloat16),
        grid=(B,),
        in_specs=[pl.BlockSpec((1, S, threeD), lambda b: (b, 0, 0))],
        out_specs=pl.BlockSpec((1, S, D), lambda b: (b, 0, 0)),
        compiler_params=pltpu.CompilerParams(dimension_semantics=("parallel",)),
    )(qkv)


# ----------------------------------------------------------------------------
# Model glue (reshapes / parameter plumbing in plain JAX)
# ----------------------------------------------------------------------------

def patch_embed(images, conv_w):
    """conv1 (stride == kernel == patch, no bias) as a matmul.
    images: (B, C, H, W), conv_w: (D, C, p, p) -> (B, N, D)."""
    B, C, H, W = images.shape
    D, _, p, _ = conv_w.shape
    gh, gw = H // p, W // p
    x = images.reshape(B, C, gh, p, gw, p)
    x = jnp.transpose(x, (0, 2, 4, 1, 3, 5)).reshape(B * gh * gw, C * p * p)
    wm = conv_w.reshape(D, C * p * p).T           # (C*p*p, D)
    y = linear(x, wm)                             # no bias, K zero-padded to 128
    return y.reshape(B, gh * gw, D)


def residual_attention_block(x, blk, *, num_heads):
    B, S, D = x.shape
    x2 = x.reshape(B * S, D)                      # f32 residual stream
    # --- attention branch: ln_1 fused into the QKV projection (bf16 out) ---
    qkv = linear(x2, blk["w_qkv"], blk["b_qkv"],
                 ln=(blk["ln1_g"], blk["ln1_b"]),
                 out_dtype=jnp.bfloat16)
    a = attention(qkv.reshape(B, S, 3 * D), num_heads=num_heads)   # (B,S,D) bf16
    # out-projection with bias + residual add fused in the epilogue
    x2 = linear(a.reshape(B * S, D), blk["w_out"], blk["b_out"], residual=x2)
    # --- MLP branch: ln_2 + c_fc + QuickGELU fused; c_proj + residual fused ---
    h = linear(x2, blk["w_fc"], blk["b_fc"],
               ln=(blk["ln2_g"], blk["ln2_b"]),
               quick_gelu=True, out_dtype=jnp.bfloat16)
    x2 = linear(h, blk["w_proj"], blk["b_proj"], residual=x2)
    return x2.reshape(B, S, D)


def encode_image(images, params, *, num_heads):
    x = patch_embed(images, params["conv1_w"])                # (B, N, D)
    B, N, D = x.shape
    cls = jnp.broadcast_to(params["class_embedding"].reshape(1, 1, D), (B, 1, D))
    x = jnp.concatenate([cls, x], axis=1)                     # (B, N+1, D)
    x = x + params["pos_embed"][None, :, :]
    x = layernorm(x, params["ln_pre_g"], params["ln_pre_b"])
    for blk in params["blocks"]:
        x = residual_attention_block(x, blk, num_heads=num_heads)
    cls_tok = x[:, 0, :]                                      # CLS pooling
    # ln_post fused into the final output projection (no bias in CLIP proj)
    return linear(cls_tok, params["proj"],
                  ln=(params["ln_post_g"], params["ln_post_b"]))


# ----------------------------------------------------------------------------
# Deterministic synthetic parameters (no checkpoint loading)
# ----------------------------------------------------------------------------

def init_params(key, *, in_ch, patch, width, num_heads, layers, mlp, embed_dim, seq):
    def nrm(k, shape, scale=0.02):
        return scale * jax.random.normal(k, shape, jnp.float32)

    keys = jax.random.split(key, 5 + layers)
    params = {
        "conv1_w": nrm(keys[0], (width, in_ch, patch, patch)),
        "class_embedding": nrm(keys[1], (width,)),
        "pos_embed": nrm(keys[2], (seq, width)),
        "ln_pre_g": jnp.ones((width,), jnp.float32),
        "ln_pre_b": jnp.zeros((width,), jnp.float32),
        "ln_post_g": jnp.ones((width,), jnp.float32),
        "ln_post_b": jnp.zeros((width,), jnp.float32),
        "proj": nrm(keys[3], (width, embed_dim)),
        "blocks": [],
    }
    for l in range(layers):
        bk = jax.random.split(keys[5 + l], 4)
        params["blocks"].append({
            "ln1_g": jnp.ones((width,), jnp.float32),
            "ln1_b": jnp.zeros((width,), jnp.float32),
            "w_qkv": nrm(bk[0], (width, 3 * width)),
            "b_qkv": jnp.zeros((3 * width,), jnp.float32),
            "w_out": nrm(bk[1], (width, width)),
            "b_out": jnp.zeros((width,), jnp.float32),
            "ln2_g": jnp.ones((width,), jnp.float32),
            "ln2_b": jnp.zeros((width,), jnp.float32),
            "w_fc": nrm(bk[2], (width, mlp)),
            "b_fc": jnp.zeros((mlp,), jnp.float32),
            "w_proj": nrm(bk[3], (mlp, width)),
            "b_proj": jnp.zeros((width,), jnp.float32),
        })
    return params


# TODO(synk): open_clip's pretrained-checkpoint loading and torchvision
# train/val image preprocessing are host-side I/O with no Pallas equivalent;
# this kernel consumes preprocessed tensors and synthetic weights.

if __name__ == "__main__":
    B, C, H, W = 2, 3, 32, 32
    patch = 8
    width = 64
    num_heads = 4
    layers = 2
    mlp = 4 * width
    embed_dim = 32
    seq = (H // patch) * (W // patch) + 1     # patches + CLS = 17

    root = jax.random.PRNGKey(0)
    k_params, k_img = jax.random.split(root)
    params = init_params(
        k_params,
        in_ch=C, patch=patch, width=width, num_heads=num_heads,
        layers=layers, mlp=mlp, embed_dim=embed_dim, seq=seq,
    )
    images = jax.random.normal(k_img, (B, C, H, W), jnp.float32)

    fwd = jax.jit(functools.partial(encode_image, num_heads=num_heads))
    out = fwd(images, params)
    jax.block_until_ready(out)
    assert out.shape == (B, embed_dim)
    assert bool(jnp.all(jnp.isfinite(out)))
    print("KERNEL_OK")
</pallas_src>

<mosaic_0001>
module attributes {stable_mosaic.version = 11 : i64} {
  func.func @_layernorm_kernel(%arg0: i32, %arg1: memref<40x64xf32, #tpu.memory_space<vmem>>, %arg2: memref<1x64xf32, #tpu.memory_space<vmem>>, %arg3: memref<1x64xf32, #tpu.memory_space<vmem>>, %arg4: memref<40x64xf32, #tpu.memory_space<vmem>>) attributes {dimension_semantics = [#tpu.dimension_semantics<parallel>], iteration_bounds = array<i64: 1>, scalar_prefetch = 0 : i64, scratch_operands = 0 : i64, tpu.core_type = #tpu.core_type<tc>, window_params = [{transform_indices = @transform_0, window_bounds = array<i64: 40, 64>}, {pipeline_mode = #tpu.pipeline_mode<synchronous>, transform_indices = @transform_1, window_bounds = array<i64: 1, 64>}, {pipeline_mode = #tpu.pipeline_mode<synchronous>, transform_indices = @transform_2, window_bounds = array<i64: 1, 64>}, {transform_indices = @transform_3, window_bounds = array<i64: 40, 64>}]} {
    %c0 = arith.constant 0 : index
    %c0_0 = arith.constant 0 : index
    %0 = vector.load %arg1[%c0, %c0_0] : memref<40x64xf32, #tpu.memory_space<vmem>>, vector<40x64xf32>
    %cst = arith.constant dense<0.000000e+00> : vector<40xf32>
    %1 = vector.multi_reduction <add>, %0, %cst [1] : vector<40x64xf32> to vector<40xf32>
    %2 = vector.shape_cast %1 : vector<40xf32> to vector<40x1xf32>
    %cst_1 = arith.constant 6.400000e+01 : f32
    %3 = vector.broadcast %cst_1 : f32 to vector<40x1xf32>
    %4 = arith.divf %2, %3 : vector<40x1xf32>
    %5 = vector.broadcast %4 : vector<40x1xf32> to vector<40x64xf32>
    %6 = arith.subf %0, %5 : vector<40x64xf32>
    %7 = arith.mulf %6, %6 : vector<40x64xf32>
    %cst_2 = arith.constant dense<0.000000e+00> : vector<40xf32>
    %8 = vector.multi_reduction <add>, %7, %cst_2 [1] : vector<40x64xf32> to vector<40xf32>
    %9 = vector.shape_cast %8 : vector<40xf32> to vector<40x1xf32>
    %cst_3 = arith.constant 6.400000e+01 : f32
    %10 = vector.broadcast %cst_3 : f32 to vector<40x1xf32>
    %11 = arith.divf %9, %10 : vector<40x1xf32>
    %12 = vector.broadcast %4 : vector<40x1xf32> to vector<40x64xf32>
    %13 = arith.subf %0, %12 : vector<40x64xf32>
    %cst_4 = arith.constant 9.99999974E-6 : f32
    %14 = vector.broadcast %cst_4 : f32 to vector<40x1xf32>
    %15 = arith.addf %11, %14 : vector<40x1xf32>
    %16 = math.rsqrt %15 : vector<40x1xf32>
    %17 = vector.broadcast %16 : vector<40x1xf32> to vector<40x64xf32>
    %18 = arith.mulf %13, %17 : vector<40x64xf32>
    %c0_5 = arith.constant 0 : index
    %c0_6 = arith.constant 0 : index
    %19 = vector.load %arg2[%c0_5, %c0_6] : memref<1x64xf32, #tpu.memory_space<vmem>>, vector<1x64xf32>
    %20 = vector.broadcast %19 : vector<1x64xf32> to vector<40x64xf32>
    %21 = arith.mulf %18, %20 : vector<40x64xf32>
    %c0_7 = arith.constant 0 : index
    %c0_8 = arith.constant 0 : index
    %22 = vector.load %arg3[%c0_7, %c0_8] : memref<1x64xf32, #tpu.memory_space<vmem>>, vector<1x64xf32>
    %23 = vector.broadcast %22 : vector<1x64xf32> to vector<40x64xf32>
    %24 = arith.addf %21, %23 : vector<40x64xf32>
    %c0_9 = arith.constant 0 : index
    %c0_10 = arith.constant 0 : index
    %25 = vector.load %arg4[%c0_9, %c0_10] : memref<40x64xf32, #tpu.memory_space<vmem>>, vector<40x64xf32>
    tpu.vector_store %arg4[%c0_9, %c0_10], %24 {strides = array<i32>} : memref<40x64xf32, #tpu.memory_space<vmem>>, vector<40x64xf32>,
    return
  }
  func.func @transform_0(%arg0: i32) -> (i32, i32) {
    %c0_i32 = arith.constant 0 : i32
    %c0_i32_0 = arith.constant 0 : i32
    return %arg0, %c0_i32 : i32, i32
  }
  func.func @transform_1(%arg0: i32) -> (i32, i32) {
    %c0_i32 = arith.constant 0 : i32
    %c0_i32_0 = arith.constant 0 : i32
    %c0_i32_1 = arith.constant 0 : i32
    return %c0_i32, %c0_i32_0 : i32, i32
  }
  func.func @transform_2(%arg0: i32) -> (i32, i32) {
    %c0_i32 = arith.constant 0 : i32
    %c0_i32_0 = arith.constant 0 : i32
    %c0_i32_1 = arith.constant 0 : i32
    return %c0_i32, %c0_i32_0 : i32, i32
  }
  func.func @transform_3(%arg0: i32) -> (i32, i32) {
    %c0_i32 = arith.constant 0 : i32
    %c0_i32_0 = arith.constant 0 : i32
    return %arg0, %c0_i32 : i32, i32
  }
}

module attributes {stable_mosaic.version = 11 : i64} {
  func.func @kernel(%arg0: i32, %arg1: i32, %arg2: i32, %arg3: memref<48x64xf32, #tpu.memory_space<vmem>>, %arg4: memref<1x64xf32, #tpu.memory_space<vmem>>, %arg5: memref<1x64xf32, #tpu.memory_space<vmem>>, %arg6: memref<64x256xbf16, #tpu.memory_space<vmem>>, %arg7: memref<1x256xf32, #tpu.memory_space<vmem>>, %arg8: memref<48x256xbf16, #tpu.memory_space<vmem>>) attributes {dimension_semantics = [#tpu.dimension_semantics<parallel>, #tpu.dimension_semantics<parallel>, #tpu.dimension_semantics<arbitrary>], iteration_bounds = array<i64: 1, 1, 1>, scalar_prefetch = 0 : i64, scratch_operands = 0 : i64, tpu.core_type = #tpu.core_type<tc>, window_params = [{transform_indices = @transform_0, window_bounds = array<i64: 48, 64>}, {pipeline_mode = #tpu.pipeline_mode<synchronous>, transform_indices = @transform_1, window_bounds = array<i64: 1, 64>}, {pipeline_mode = #tpu.pipeline_mode<synchronous>, transform_indices = @transform_2, window_bounds = array<i64: 1, 64>}, {transform_indices = @transform_3, window_bounds = array<i64: 64, 256>}, {transform_indices = @transform_4, window_bounds = array<i64: 1, 256>}, {transform_indices = @transform_5, window_bounds = array<i64: 48, 256>}]} {
    %c0 = arith.constant 0 : index
    %c0_0 = arith.constant 0 : index
    %0 = vector.load %arg3[%c0, %c0_0] : memref<48x64xf32, #tpu.memory_space<vmem>>, vector<48x64xf32>
    %cst = arith.constant dense<0.000000e+00> : vector<48xf32>
    %1 = vector.multi_reduction <add>, %0, %cst [1] : vector<48x64xf32> to vector<48xf32>
    %2 = vector.shape_cast %1 : vector<48xf32> to vector<48x1xf32>
    %cst_1 = arith.constant 6.400000e+01 : f32
    %3 = vector.broadcast %cst_1 : f32 to vector<48x1xf32>
    %4 = arith.divf %2, %3 : vector<48x1xf32>
    %5 = vector.broadcast %4 : vector<48x1xf32> to vector<48x64xf32>
    %6 = arith.subf %0, %5 : vector<48x64xf32>
    %7 = arith.mulf %6, %6 : vector<48x64xf32>
    %cst_2 = arith.constant dense<0.000000e+00> : vector<48xf32>
    %8 = vector.multi_reduction <add>, %7, %cst_2 [1] : vector<48x64xf32> to vector<48xf32>
    %9 = vector.shape_cast %8 : vector<48xf32> to vector<48x1xf32>
    %cst_3 = arith.constant 6.400000e+01 : f32
    %10 = vector.broadcast %cst_3 : f32 to vector<48x1xf32>
    %11 = arith.divf %9, %10 : vector<48x1xf32>
    %12 = vector.broadcast %4 : vector<48x1xf32> to vector<48x64xf32>
    %13 = arith.subf %0, %12 : vector<48x64xf32>
    %cst_4 = arith.constant 9.99999974E-6 : f32
    %14 = vector.broadcast %cst_4 : f32 to vector<48x1xf32>
    %15 = arith.addf %11, %14 : vector<48x1xf32>
    %16 = math.rsqrt %15 : vector<48x1xf32>
    %17 = vector.broadcast %16 : vector<48x1xf32> to vector<48x64xf32>
    %18 = arith.mulf %13, %17 : vector<48x64xf32>
    %c0_5 = arith.constant 0 : index
    %c0_6 = arith.constant 0 : index
    %19 = vector.load %arg4[%c0_5, %c0_6] : memref<1x64xf32, #tpu.memory_space<vmem>>, vector<1x64xf32>
    %20 = vector.broadcast %19 : vector<1x64xf32> to vector<48x64xf32>
    %21 = arith.mulf %18, %20 : vector<48x64xf32>
    %c0_7 = arith.constant 0 : index
    %c0_8 = arith.constant 0 : index
    %22 = vector.load %arg5[%c0_7, %c0_8] : memref<1x64xf32, #tpu.memory_space<vmem>>, vector<1x64xf32>
    %23 = vector.broadcast %22 : vector<1x64xf32> to vector<48x64xf32>
    %24 = arith.addf %21, %23 : vector<48x64xf32>
    %25 = arith.truncf %24 : vector<48x64xf32> to vector<48x64xbf16>
    %c0_9 = arith.constant 0 : index
    %c0_10 = arith.constant 0 : index
    %26 = vector.load %arg6[%c0_9, %c0_10] : memref<64x256xbf16, #tpu.memory_space<vmem>>, vector<64x256xbf16>
    %cst_11 = arith.constant dense<0.000000e+00> : vector<48x256xf32>
    %27 = tpu.matmul %25, %26, %cst_11 {dimension_numbers = #tpu.dot_dimension_numbers<[1], [0], [0], [1], [0, 0, 1, 1], [], []>} : vector<48x64xbf16>, vector<64x256xbf16>, vector<48x256xf32> -> vector<48x256xf32>
    %c0_12 = arith.constant 0 : index
    %c0_13 = arith.constant 0 : index
    %28 = vector.load %arg7[%c0_12, %c0_13] : memref<1x256xf32, #tpu.memory_space<vmem>>, vector<1x256xf32>
    %29 = vector.broadcast %28 : vector<1x256xf32> to vector<48x256xf32>
    %30 = arith.addf %27, %29 : vector<48x256xf32>
    %31 = arith.truncf %30 : vector<48x256xf32> to vector<48x256xbf16>
    %c0_14 = arith.constant 0 : index
    %c0_15 = arith.constant 0 : index
    %32 = vector.load %arg8[%c0_14, %c0_15] : memref<48x256xbf16, #tpu.memory_space<vmem>>, vector<48x256xbf16>
    tpu.vector_store %arg8[%c0_14, %c0_15], %31 {strides = array<i32>} : memref<48x256xbf16, #tpu.memory_space<vmem>>, vector<48x256xbf16>,
    return
  }
  func.func @transform_0(%arg0: i32, %arg1: i32, %arg2: i32) -> (i32, i32) {
    %c0_i32 = arith.constant 0 : i32
    return %arg0, %arg2 : i32, i32
  }
  func.func @transform_1(%arg0: i32, %arg1: i32, %arg2: i32) -> (i32, i32) {
    %c0_i32 = arith.constant 0 : i32
    %c0_i32_0 = arith.constant 0 : i32
    %c0_i32_1 = arith.constant 0 : i32
    return %c0_i32, %c0_i32_0 : i32, i32
  }
  func.func @transform_2(%arg0: i32, %arg1: i32, %arg2: i32) -> (i32, i32) {
    %c0_i32 = arith.constant 0 : i32
    %c0_i32_0 = arith.constant 0 : i32
    %c0_i32_1 = arith.constant 0 : i32
    return %c0_i32, %c0_i32_0 : i32, i32
  }
  func.func @transform_3(%arg0: i32, %arg1: i32, %arg2: i32) -> (i32, i32) {
    %c0_i32 = arith.constant 0 : i32
    return %arg2, %arg1 : i32, i32
  }
  func.func @transform_4(%arg0: i32, %arg1: i32, %arg2: i32) -> (i32, i32) {
    %c0_i32 = arith.constant 0 : i32
    %c0_i32_0 = arith.constant 0 : i32
    return %c0_i32, %arg1 : i32, i32
  }
  func.func @transform_5(%arg0: i32, %arg1: i32, %arg2: i32) -> (i32, i32) {
    %c0_i32 = arith.constant 0 : i32
    return %arg0, %arg1 : i32, i32
  }
}

module attributes {stable_mosaic.version = 11 : i64} {
  func.func @kernel(%arg0: i32, %arg1: i32, %arg2: i32, %arg3: memref<32x256xbf16, #tpu.memory_space<vmem>>, %arg4: memref<256x128xbf16, #tpu.memory_space<vmem>>, %arg5: memref<32x128xf32, #tpu.memory_space<vmem>>) attributes {dimension_semantics = [#tpu.dimension_semantics<parallel>, #tpu.dimension_semantics<parallel>, #tpu.dimension_semantics<arbitrary>], iteration_bounds = array<i64: 1, 1, 1>, scalar_prefetch = 0 : i64, scratch_operands = 0 : i64, tpu.core_type = #tpu.core_type<tc>, window_params = [{transform_indices = @transform_0, window_bounds = array<i64: 32, 256>}, {transform_indices = @transform_1, window_bounds = array<i64: 256, 128>}, {transform_indices = @transform_2, window_bounds = array<i64: 32, 128>}]} {
    %c0 = arith.constant 0 : index
    %c0_0 = arith.constant 0 : index
    %0 = vector.load %arg3[%c0, %c0_0] : memref<32x256xbf16, #tpu.memory_space<vmem>>, vector<32x256xbf16>
    %c0_1 = arith.constant 0 : index
    %c0_2 = arith.constant 0 : index
    %1 = vector.load %arg4[%c0_1, %c0_2] : memref<256x128xbf16, #tpu.memory_space<vmem>>, vector<256x128xbf16>
    %cst = arith.constant dense<0.000000e+00> : vector<32x128xf32>
    %2 = tpu.matmul %0, %1, %cst {dimension_numbers = #tpu.dot_dimension_numbers<[1], [0], [0], [1], [0, 0, 1, 1], [], []>} : vector<32x256xbf16>, vector<256x128xbf16>, vector<32x128xf32> -> vector<32x128xf32>
    %c0_3 = arith.constant 0 : index
    %c0_4 = arith.constant 0 : index
    %3 = vector.load %arg5[%c0_3, %c0_4] : memref<32x128xf32, #tpu.memory_space<vmem>>, vector<32x128xf32>
    tpu.vector_store %arg5[%c0_3, %c0_4], %2 {strides = array<i32>} : memref<32x128xf32, #tpu.memory_space<vmem>>, vector<32x128xf32>,
    return
  }
  func.func @transform_0(%arg0: i32, %arg1: i32, %arg2: i32) -> (i32, i32) {
    %c0_i32 = arith.constant 0 : i32
    return %arg0, %arg2 : i32, i32
  }
  func.func @transform_1(%arg0: i32, %arg1: i32, %arg2: i32) -> (i32, i32) {
    %c0_i32 = arith.constant 0 : i32
    return %arg2, %arg1 : i32, i32
  }
  func.func @transform_2(%arg0: i32, %arg1: i32, %arg2: i32) -> (i32, i32) {
    %c0_i32 = arith.constant 0 : i32
    return %arg0, %arg1 : i32, i32
  }
}

module attributes {stable_mosaic.version = 11 : i64} {
  func.func @_attention_kernel(%arg0: i32, %arg1: memref<1x17x192xbf16, #tpu.memory_space<vmem>>, %arg2: memref<1x17x64xbf16, #tpu.memory_space<vmem>>) attributes {dimension_semantics = [#tpu.dimension_semantics<parallel>], iteration_bounds = array<i64: 2>, scalar_prefetch = 0 : i64, scratch_operands = 0 : i64, tpu.core_type = #tpu.core_type<tc>, window_params = [{transform_indices = @transform_0, window_bounds = array<i64: 1, 17, 192>}, {transform_indices = @transform_1, window_bounds = array<i64: 1, 17, 64>}]} {
    %c0 = arith.constant 0 : index
    %c0_0 = arith.constant 0 : index
    %c0_1 = arith.constant 0 : index
    %0 = vector.load %arg1[%c0, %c0_0, %c0_1] : memref<1x17x192xbf16, #tpu.memory_space<vmem>>, vector<1x17x192xbf16>
    %1 = vector.shape_cast %0 : vector<1x17x192xbf16> to vector<17x192xbf16>
    %2 = vector.extract_strided_slice %1 {offsets = [0, 0], sizes = [17, 16], strides = [1, 1]} : vector<17x192xbf16> to vector<17x16xbf16>
    %3 = vector.extract_strided_slice %1 {offsets = [0, 64], sizes = [17, 16], strides = [1, 1]} : vector<17x192xbf16> to vector<17x16xbf16>
    %4 = vector.extract_strided_slice %1 {offsets = [0, 128], sizes = [17, 16], strides = [1, 1]} : vector<17x192xbf16> to vector<17x16xbf16>
    %cst = arith.constant dense<0.000000e+00> : vector<17x17xf32>
    %5 = tpu.matmul %2, %3, %cst {dimension_numbers = #tpu.dot_dimension_numbers<[1], [1], [0], [0], [0, 0, 1, 0], [], []>} : vector<17x16xbf16>, vector<17x16xbf16>, vector<17x17xf32> -> vector<17x17xf32>
    %cst_2 = arith.constant 2.500000e-01 : f32
    %6 = vector.broadcast %cst_2 : f32 to vector<17x17xf32>
    %7 = arith.mulf %5, %6 : vector<17x17xf32>
    %cst_3 = arith.constant dense<0xFF800000> : vector<17xf32>
    %8 = vector.multi_reduction <maximumf>, %7, %cst_3 [1] : vector<17x17xf32> to vector<17xf32>
    %9 = vector.shape_cast %8 : vector<17xf32> to vector<17x1xf32>
    %10 = vector.broadcast %9 : vector<17x1xf32> to vector<17x17xf32>
    %11 = arith.subf %7, %10 : vector<17x17xf32>
    %12 = math.exp %11 : vector<17x17xf32>
    %cst_4 = arith.constant dense<0.000000e+00> : vector<17xf32>
    %13 = vector.multi_reduction <add>, %12, %cst_4 [1] : vector<17x17xf32> to vector<17xf32>
    %14 = vector.shape_cast %13 : vector<17xf32> to vector<17x1xf32>
    %15 = tpu.reciprocal %14 {approx = true} : vector<17x1xf32> -> vector<17x1xf32>
    %16 = vector.broadcast %15 : vector<17x1xf32> to vector<17x17xf32>
    %17 = arith.mulf %12, %16 : vector<17x17xf32>
    %18 = arith.truncf %17 : vector<17x17xf32> to vector<17x17xbf16>
    %cst_5 = arith.constant dense<0.000000e+00> : vector<17x16xf32>
    %19 = tpu.matmul %18, %4, %cst_5 {dimension_numbers = #tpu.dot_dimension_numbers<[1], [0], [0], [1], [0, 0, 1, 1], [], []>} : vector<17x17xbf16>, vector<17x16xbf16>, vector<17x16xf32> -> vector<17x16xf32>
    %20 = arith.truncf %19 : vector<17x16xf32> to vector<17x16xbf16>
    %c0_6 = arith.constant 0 : index
    %c0_7 = arith.constant 0 : index
    %c0_8 = arith.constant 0 : index
    %21 = vector.load %arg2[%c0_6, %c0_7, %c0_8] : memref<1x17x64xbf16, #tpu.memory_space<vmem>>, vector<1x17x16xbf16>
    %22 = vector.shape_cast %21 : vector<1x17x16xbf16> to vector<17x16xbf16>
    %23 = vector.shape_cast %20 : vector<17x16xbf16> to vector<1x17x16xbf16>
    tpu.vector_store %arg2[%c0_6, %c0_7, %c0_8], %23 {strides = array<i32>} : memref<1x17x64xbf16, #tpu.memory_space<vmem>>, vector<1x17x16xbf16>,
    %24 = vector.extract_strided_slice %1 {offsets = [0, 16], sizes = [17, 16], strides = [1, 1]} : vector<17x192xbf16> to vector<17x16xbf16>
    %25 = vector.extract_strided_slice %1 {offsets = [0, 80], sizes = [17, 16], strides = [1, 1]} : vector<17x192xbf16> to vector<17x16xbf16>
    %26 = vector.extract_strided_slice %1 {offsets = [0, 144], sizes = [17, 16], strides = [1, 1]} : vector<17x192xbf16> to vector<17x16xbf16>
    %cst_9 = arith.constant dense<0.000000e+00> : vector<17x17xf32>
    %27 = tpu.matmul %24, %25, %cst_9 {dimension_numbers = #tpu.dot_dimension_numbers<[1], [1], [0], [0], [0, 0, 1, 0], [], []>} : vector<17x16xbf16>, vector<17x16xbf16>, vector<17x17xf32> -> vector<17x17xf32>
    %cst_10 = arith.constant 2.500000e-01 : f32
    %28 = vector.broadcast %cst_10 : f32 to vector<17x17xf32>
    %29 = arith.mulf %27, %28 : vector<17x17xf32>
    %cst_11 = arith.constant dense<0xFF800000> : vector<17xf32>
    %30 = vector.multi_reduction <maximumf>, %29, %cst_11 [1] : vector<17x17xf32> to vector<17xf32>
    %31 = vector.shape_cast %30 : vector<17xf32> to vector<17x1xf32>
    %32 = vector.broadcast %31 : vector<17x1xf32> to vector<17x17xf32>
    %33 = arith.subf %29, %32 : vector<17x17xf32>
    %34 = math.exp %33 : vector<17x17xf32>
    %cst_12 = arith.constant dense<0.000000e+00> : vector<17xf32>
    %35 = vector.multi_reduction <add>, %34, %cst_12 [1] : vector<17x17xf32> to vector<17xf32>
    %36 = vector.shape_cast %35 : vector<17xf32> to vector<17x1xf32>
    %37 = tpu.reciprocal %36 {approx = true} : vector<17x1xf32> -> vector<17x1xf32>
    %38 = vector.broadcast %37 : vector<17x1xf32> to vector<17x17xf32>
    %39 = arith.mulf %34, %38 : vector<17x17xf32>
    %40 = arith.truncf %39 : vector<17x17xf32> to vector<17x17xbf16>
    %cst_13 = arith.constant dense<0.000000e+00> : vector<17x16xf32>
    %41 = tpu.matmul %40, %26, %cst_13 {dimension_numbers = #tpu.dot_dimension_numbers<[1], [0], [0], [1], [0, 0, 1, 1], [], []>} : vector<17x17xbf16>, vector<17x16xbf16>, vector<17x16xf32> -> vector<17x16xf32>
    %42 = arith.truncf %41 : vector<17x16xf32> to vector<17x16xbf16>
    %c0_14 = arith.constant 0 : index
    %c0_15 = arith.constant 0 : index
    %c16 = arith.constant 16 : index
    %43 = vector.load %arg2[%c0_14, %c0_15, %c16] : memref<1x17x64xbf16, #tpu.memory_space<vmem>>, vector<1x17x16xbf16>
    %44 = vector.shape_cast %43 : vector<1x17x16xbf16> to vector<17x16xbf16>
    %45 = vector.shape_cast %42 : vector<17x16xbf16> to vector<1x17x16xbf16>
    tpu.vector_store %arg2[%c0_14, %c0_15, %c16], %45 {strides = array<i32>} : memref<1x17x64xbf16, #tpu.memory_space<vmem>>, vector<1x17x16xbf16>,
    %46 = vector.extract_strided_slice %1 {offsets = [0, 32], sizes = [17, 16], strides = [1, 1]} : vector<17x192xbf16> to vector<17x16xbf16>
    %47 = vector.extract_strided_slice %1 {offsets = [0, 96], sizes = [17, 16], strides = [1, 1]} : vector<17x192xbf16> to vector<17x16xbf16>
    %48 = vector.extract_strided_slice %1 {offsets = [0, 160], sizes = [17, 16], strides = [1, 1]} : vector<17x192xbf16> to vector<17x16xbf16>
    %cst_16 = arith.constant dense<0.000000e+00> : vector<17x17xf32>
    %49 = tpu.matmul %46, %47, %cst_16 {dimension_numbers = #tpu.dot_dimension_numbers<[1], [1], [0], [0], [0, 0, 1, 0], [], []>} : vector<17x16xbf16>, vector<17x16xbf16>, vector<17x17xf32> -> vector<17x17xf32>
    %cst_17 = arith.constant 2.500000e-01 : f32
    %50 = vector.broadcast %cst_17 : f32 to vector<17x17xf32>
    %51 = arith.mulf %49, %50 : vector<17x17xf32>
    %cst_18 = arith.constant dense<0xFF800000> : vector<17xf32>
    %52 = vector.multi_reduction <maximumf>, %51, %cst_18 [1] : vector<17x17xf32> to vector<17xf32>
    %53 = vector.shape_cast %52 : vector<17xf32> to vector<17x1xf32>
    %54 = vector.broadcast %53 : vector<17x1xf32> to vector<17x17xf32>
    %55 = arith.subf %51, %54 : vector<17x17xf32>
    %56 = math.exp %55 : vector<17x17xf32>
    %cst_19 = arith.constant dense<0.000000e+00> : vector<17xf32>
    %57 = vector.multi_reduction <add>, %56, %cst_19 [1] : vector<17x17xf32> to vector<17xf32>
    %58 = vector.shape_cast %57 : vector<17xf32> to vector<17x1xf32>
    %59 = tpu.reciprocal %58 {approx = true} : vector<17x1xf32> -> vector<17x1xf32>
    %60 = vector.broadcast %59 : vector<17x1xf32> to vector<17x17xf32>
    %61 = arith.mulf %56, %60 : vector<17x17xf32>
    %62 = arith.truncf %61 : vector<17x17xf32> to vector<17x17xbf16>
    %cst_20 = arith.constant dense<0.000000e+00> : vector<17x16xf32>
    %63 = tpu.matmul %62, %48, %cst_20 {dimension_numbers = #tpu.dot_dimension_numbers<[1], [0], [0], [1], [0, 0, 1, 1], [], []>} : vector<17x17xbf16>, vector<17x16xbf16>, vector<17x16xf32> -> vector<17x16xf32>
    %64 = arith.truncf %63 : vector<17x16xf32> to vector<17x16xbf16>
    %c0_21 = arith.constant 0 : index
    %c0_22 = arith.constant 0 : index
    %c32 = arith.constant 32 : index
    %65 = vector.load %arg2[%c0_21, %c0_22, %c32] : memref<1x17x64xbf16, #tpu.memory_space<vmem>>, vector<1x17x16xbf16>
    %66 = vector.shape_cast %65 : vector<1x17x16xbf16> to vector<17x16xbf16>
    %67 = vector.shape_cast %64 : vector<17x16xbf16> to vector<1x17x16xbf16>
    tpu.vector_store %arg2[%c0_21, %c0_22, %c32], %67 {strides = array<i32>} : memref<1x17x64xbf16, #tpu.memory_space<vmem>>, vector<1x17x16xbf16>,
    %68 = vector.extract_strided_slice %1 {offsets = [0, 48], sizes = [17, 16], strides = [1, 1]} : vector<17x192xbf16> to vector<17x16xbf16>
    %69 = vector.extract_strided_slice %1 {offsets = [0, 112], sizes = [17, 16], strides = [1, 1]} : vector<17x192xbf16> to vector<17x16xbf16>
    %70 = vector.extract_strided_slice %1 {offsets = [0, 176], sizes = [17, 16], strides = [1, 1]} : vector<17x192xbf16> to vector<17x16xbf16>
    %cst_23 = arith.constant dense<0.000000e+00> : vector<17x17xf32>
    %71 = tpu.matmul %68, %69, %cst_23 {dimension_numbers = #tpu.dot_dimension_numbers<[1], [1], [0], [0], [0, 0, 1, 0], [], []>} : vector<17x16xbf16>, vector<17x16xbf16>, vector<17x17xf32> -> vector<17x17xf32>
    %cst_24 = arith.constant 2.500000e-01 : f32
    %72 = vector.broadcast %cst_24 : f32 to vector<17x17xf32>
    %73 = arith.mulf %71, %72 : vector<17x17xf32>
    %cst_25 = arith.constant dense<0xFF800000> : vector<17xf32>
    %74 = vector.multi_reduction <maximumf>, %73, %cst_25 [1] : vector<17x17xf32> to vector<17xf32>
    %75 = vector.shape_cast %74 : vector<17xf32> to vector<17x1xf32>
    %76 = vector.broadcast %75 : vector<17x1xf32> to vector<17x17xf32>
    %77 = arith.subf %73, %76 : vector<17x17xf32>
    %78 = math.exp %77 : vector<17x17xf32>
    %cst_26 = arith.constant dense<0.000000e+00> : vector<17xf32>
    %79 = vector.multi_reduction <add>, %78, %cst_26 [1] : vector<17x17xf32> to vector<17xf32>
    %80 = vector.shape_cast %79 : vector<17xf32> to vector<17x1xf32>
    %81 = tpu.reciprocal %80 {approx = true} : vector<17x1xf32> -> vector<17x1xf32>
    %82 = vector.broadcast %81 : vector<17x1xf32> to vector<17x17xf32>
    %83 = arith.mulf %78, %82 : vector<17x17xf32>
    %84 = arith.truncf %83 : vector<17x17xf32> to vector<17x17xbf16>
    %cst_27 = arith.constant dense<0.000000e+00> : vector<17x16xf32>
    %85 = tpu.matmul %84, %70, %cst_27 {dimension_numbers = #tpu.dot_dimension_numbers<[1], [0], [0], [1], [0, 0, 1, 1], [], []>} : vector<17x17xbf16>, vector<17x16xbf16>, vector<17x16xf32> -> vector<17x16xf32>
    %86 = arith.truncf %85 : vector<17x16xf32> to vector<17x16xbf16>
    %c0_28 = arith.constant 0 : index
    %c0_29 = arith.constant 0 : index
    %c48 = arith.constant 48 : index
    %87 = vector.load %arg2[%c0_28, %c0_29, %c48] : memref<1x17x64xbf16, #tpu.memory_space<vmem>>, vector<1x17x16xbf16>
    %88 = vector.shape_cast %87 : vector<1x17x16xbf16> to vector<17x16xbf16>
    %89 = vector.shape_cast %86 : vector<17x16xbf16> to vector<1x17x16xbf16>
    tpu.vector_store %arg2[%c0_28, %c0_29, %c48], %89 {strides = array<i32>} : memref<1x17x64xbf16, #tpu.memory_space<vmem>>, vector<1x17x16xbf16>,
    return
  }
  func.func @transform_0(%arg0: i32) -> (i32, i32, i32) {
    %c0_i32 = arith.constant 0 : i32
    %c0_i32_0 = arith.constant 0 : i32
    %c0_i32_1 = arith.constant 0 : i32
    return %arg0, %c0_i32, %c0_i32_0 : i32, i32, i32
  }
  func.func @transform_1(%arg0: i32) -> (i32, i32, i32) {
    %c0_i32 = arith.constant 0 : i32
    %c0_i32_0 = arith.constant 0 : i32
    %c0_i32_1 = arith.constant 0 : i32
    return %arg0, %c0_i32, %c0_i32_0 : i32, i32, i32
  }
}

module attributes {stable_mosaic.version = 11 : i64} {
  func.func @kernel(%arg0: i32, %arg1: i32, %arg2: i32, %arg3: memref<48x128xbf16, #tpu.memory_space<vmem>>, %arg4: memref<128x128xbf16, #tpu.memory_space<vmem>>, %arg5: memref<1x128xf32, #tpu.memory_space<vmem>>, %arg6: memref<48x128xf32, #tpu.memory_space<vmem>>, %arg7: memref<48x128xf32, #tpu.memory_space<vmem>>) attributes {dimension_semantics = [#tpu.dimension_semantics<parallel>, #tpu.dimension_semantics<parallel>, #tpu.dimension_semantics<arbitrary>], iteration_bounds = array<i64: 1, 1, 1>, scalar_prefetch = 0 : i64, scratch_operands = 0 : i64, tpu.core_type = #tpu.core_type<tc>, window_params = [{transform_indices = @transform_0, window_bounds = array<i64: 48, 128>}, {transform_indices = @transform_1, window_bounds = array<i64: 128, 128>}, {transform_indices = @transform_2, window_bounds = array<i64: 1, 128>}, {transform_indices = @transform_3, window_bounds = array<i64: 48, 128>}, {transform_indices = @transform_4, window_bounds = array<i64: 48, 128>}]} {
    %c0 = arith.constant 0 : index
    %c0_0 = arith.constant 0 : index
    %0 = vector.load %arg3[%c0, %c0_0] : memref<48x128xbf16, #tpu.memory_space<vmem>>, vector<48x128xbf16>
    %c0_1 = arith.constant 0 : index
    %c0_2 = arith.constant 0 : index
    %1 = vector.load %arg4[%c0_1, %c0_2] : memref<128x128xbf16, #tpu.memory_space<vmem>>, vector<128x128xbf16>
    %cst = arith.constant dense<0.000000e+00> : vector<48x128xf32>
    %2 = tpu.matmul %0, %1, %cst {dimension_numbers = #tpu.dot_dimension_numbers<[1], [0], [0], [1], [0, 0, 1, 1], [], []>} : vector<48x128xbf16>, vector<128x128xbf16>, vector<48x128xf32> -> vector<48x128xf32>
    %c0_3 = arith.constant 0 : index
    %c0_4 = arith.constant 0 : index
    %3 = vector.load %arg5[%c0_3, %c0_4] : memref<1x128xf32, #tpu.memory_space<vmem>>, vector<1x128xf32>
    %4 = vector.broadcast %3 : vector<1x128xf32> to vector<48x128xf32>
    %5 = arith.addf %2, %4 : vector<48x128xf32>
    %c0_5 = arith.constant 0 : index
    %c0_6 = arith.constant 0 : index
    %6 = vector.load %arg6[%c0_5, %c0_6] : memref<48x128xf32, #tpu.memory_space<vmem>>, vector<48x128xf32>
    %7 = arith.addf %5, %6 : vector<48x128xf32>
    %c0_7 = arith.constant 0 : index
    %c0_8 = arith.constant 0 : index
    %8 = vector.load %arg7[%c0_7, %c0_8] : memref<48x128xf32, #tpu.memory_space<vmem>>, vector<48x128xf32>
    tpu.vector_store %arg7[%c0_7, %c0_8], %7 {strides = array<i32>} : memref<48x128xf32, #tpu.memory_space<vmem>>, vector<48x128xf32>,
    return
  }
  func.func @transform_0(%arg0: i32, %arg1: i32, %arg2: i32) -> (i32, i32) {
    %c0_i32 = arith.constant 0 : i32
    return %arg0, %arg2 : i32, i32
  }
  func.func @transform_1(%arg0: i32, %arg1: i32, %arg2: i32) -> (i32, i32) {
    %c0_i32 = arith.constant 0 : i32
    return %arg2, %arg1 : i32, i32
  }
  func.func @transform_2(%arg0: i32, %arg1: i32, %arg2: i32) -> (i32, i32) {
    %c0_i32 = arith.constant 0 : i32
    %c0_i32_0 = arith.constant 0 : i32
    return %c0_i32, %arg1 : i32, i32
  }
  func.func @transform_3(%arg0: i32, %arg1: i32, %arg2: i32) -> (i32, i32) {
    %c0_i32 = arith.constant 0 : i32
    return %arg0, %arg1 : i32, i32
  }
  func.func @transform_4(%arg0: i32, %arg1: i32, %arg2: i32) -> (i32, i32) {
    %c0_i32 = arith.constant 0 : i32
    return %arg0, %arg1 : i32, i32
  }
}

module attributes {stable_mosaic.version = 11 : i64} {
  func.func @kernel(%arg0: i32, %arg1: i32, %arg2: i32, %arg3: memref<48x64xf32, #tpu.memory_space<vmem>>, %arg4: memref<1x64xf32, #tpu.memory_space<vmem>>, %arg5: memref<1x64xf32, #tpu.memory_space<vmem>>, %arg6: memref<64x256xbf16, #tpu.memory_space<vmem>>, %arg7: memref<1x256xf32, #tpu.memory_space<vmem>>, %arg8: memref<48x256xbf16, #tpu.memory_space<vmem>>) attributes {dimension_semantics = [#tpu.dimension_semantics<parallel>, #tpu.dimension_semantics<parallel>, #tpu.dimension_semantics<arbitrary>], iteration_bounds = array<i64: 1, 1, 1>, scalar_prefetch = 0 : i64, scratch_operands = 0 : i64, tpu.core_type = #tpu.core_type<tc>, window_params = [{transform_indices = @transform_0, window_bounds = array<i64: 48, 64>}, {pipeline_mode = #tpu.pipeline_mode<synchronous>, transform_indices = @transform_1, window_bounds = array<i64: 1, 64>}, {pipeline_mode = #tpu.pipeline_mode<synchronous>, transform_indices = @transform_2, window_bounds = array<i64: 1, 64>}, {transform_indices = @transform_3, window_bounds = array<i64: 64, 256>}, {transform_indices = @transform_4, window_bounds = array<i64: 1, 256>}, {transform_indices = @transform_5, window_bounds = array<i64: 48, 256>}]} {
    %c0 = arith.constant 0 : index
    %c0_0 = arith.constant 0 : index
    %0 = vector.load %arg3[%c0, %c0_0] : memref<48x64xf32, #tpu.memory_space<vmem>>, vector<48x64xf32>
    %cst = arith.constant dense<0.000000e+00> : vector<48xf32>
    %1 = vector.multi_reduction <add>, %0, %cst [1] : vector<48x64xf32> to vector<48xf32>
    %2 = vector.shape_cast %1 : vector<48xf32> to vector<48x1xf32>
    %cst_1 = arith.constant 6.400000e+01 : f32
    %3 = vector.broadcast %cst_1 : f32 to vector<48x1xf32>
    %4 = arith.divf %2, %3 : vector<48x1xf32>
    %5 = vector.broadcast %4 : vector<48x1xf32> to vector<48x64xf32>
    %6 = arith.subf %0, %5 : vector<48x64xf32>
    %7 = arith.mulf %6, %6 : vector<48x64xf32>
    %cst_2 = arith.constant dense<0.000000e+00> : vector<48xf32>
    %8 = vector.multi_reduction <add>, %7, %cst_2 [1] : vector<48x64xf32> to vector<48xf32>
    %9 = vector.shape_cast %8 : vector<48xf32> to vector<48x1xf32>
    %cst_3 = arith.constant 6.400000e+01 : f32
    %10 = vector.broadcast %cst_3 : f32 to vector<48x1xf32>
    %11 = arith.divf %9, %10 : vector<48x1xf32>
    %12 = vector.broadcast %4 : vector<48x1xf32> to vector<48x64xf32>
    %13 = arith.subf %0, %12 : vector<48x64xf32>
    %cst_4 = arith.constant 9.99999974E-6 : f32
    %14 = vector.broadcast %cst_4 : f32 to vector<48x1xf32>
    %15 = arith.addf %11, %14 : vector<48x1xf32>
    %16 = math.rsqrt %15 : vector<48x1xf32>
    %17 = vector.broadcast %16 : vector<48x1xf32> to vector<48x64xf32>
    %18 = arith.mulf %13, %17 : vector<48x64xf32>
    %c0_5 = arith.constant 0 : index
    %c0_6 = arith.constant 0 : index
    %19 = vector.load %arg4[%c0_5, %c0_6] : memref<1x64xf32, #tpu.memory_space<vmem>>, vector<1x64xf32>
    %20 = vector.broadcast %19 : vector<1x64xf32> to vector<48x64xf32>
    %21 = arith.mulf %18, %20 : vector<48x64xf32>
    %c0_7 = arith.constant 0 : index
    %c0_8 = arith.constant 0 : index
    %22 = vector.load %arg5[%c0_7, %c0_8] : memref<1x64xf32, #tpu.memory_space<vmem>>, vector<1x64xf32>
    %23 = vector.broadcast %22 : vector<1x64xf32> to vector<48x64xf32>
    %24 = arith.addf %21, %23 : vector<48x64xf32>
    %25 = arith.truncf %24 : vector<48x64xf32> to vector<48x64xbf16>
    %c0_9 = arith.constant 0 : index
    %c0_10 = arith.constant 0 : index
    %26 = vector.load %arg6[%c0_9, %c0_10] : memref<64x256xbf16, #tpu.memory_space<vmem>>, vector<64x256xbf16>
    %cst_11 = arith.constant dense<0.000000e+00> : vector<48x256xf32>
    %27 = tpu.matmul %25, %26, %cst_11 {dimension_numbers = #tpu.dot_dimension_numbers<[1], [0], [0], [1], [0, 0, 1, 1], [], []>} : vector<48x64xbf16>, vector<64x256xbf16>, vector<48x256xf32> -> vector<48x256xf32>
    %c0_12 = arith.constant 0 : index
    %c0_13 = arith.constant 0 : index
    %28 = vector.load %arg7[%c0_12, %c0_13] : memref<1x256xf32, #tpu.memory_space<vmem>>, vector<1x256xf32>
    %29 = vector.broadcast %28 : vector<1x256xf32> to vector<48x256xf32>
    %30 = arith.addf %27, %29 : vector<48x256xf32>
    %cst_14 = arith.constant 1.702000e+00 : f32
    %31 = vector.broadcast %cst_14 : f32 to vector<48x256xf32>
    %32 = arith.mulf %31, %30 : vector<48x256xf32>
    %33 = arith.negf %32 : vector<48x256xf32>
    %34 = math.exp %33 : vector<48x256xf32>
    %cst_15 = arith.constant 1.000000e+00 : f32
    %35 = vector.broadcast %cst_15 : f32 to vector<48x256xf32>
    %36 = arith.addf %35, %34 : vector<48x256xf32>
    %37 = arith.divf %35, %36 : vector<48x256xf32>
    %38 = arith.mulf %30, %37 : vector<48x256xf32>
    %39 = arith.truncf %38 : vector<48x256xf32> to vector<48x256xbf16>
    %c0_16 = arith.constant 0 : index
    %c0_17 = arith.constant 0 : index
    %40 = vector.load %arg8[%c0_16, %c0_17] : memref<48x256xbf16, #tpu.memory_space<vmem>>, vector<48x256xbf16>
    tpu.vector_store %arg8[%c0_16, %c0_17], %39 {strides = array<i32>} : memref<48x256xbf16, #tpu.memory_space<vmem>>, vector<48x256xbf16>,
    return
  }
  func.func @transform_0(%arg0: i32, %arg1: i32, %arg2: i32) -> (i32, i32) {
    %c0_i32 = arith.constant 0 : i32
    return %arg0, %arg2 : i32, i32
  }
  func.func @transform_1(%arg0: i32, %arg1: i32, %arg2: i32) -> (i32, i32) {
    %c0_i32 = arith.constant 0 : i32
    %c0_i32_0 = arith.constant 0 : i32
    %c0_i32_1 = arith.constant 0 : i32
    return %c0_i32, %c0_i32_0 : i32, i32
  }
  func.func @transform_2(%arg0: i32, %arg1: i32, %arg2: i32) -> (i32, i32) {
    %c0_i32 = arith.constant 0 : i32
    %c0_i32_0 = arith.constant 0 : i32
    %c0_i32_1 = arith.constant 0 : i32
    return %c0_i32, %c0_i32_0 : i32, i32
  }
  func.func @transform_3(%arg0: i32, %arg1: i32, %arg2: i32) -> (i32, i32) {
    %c0_i32 = arith.constant 0 : i32
    return %arg2, %arg1 : i32, i32
  }
  func.func @transform_4(%arg0: i32, %arg1: i32, %arg2: i32) -> (i32, i32) {
    %c0_i32 = arith.constant 0 : i32
    %c0_i32_0 = arith.constant 0 : i32
    return %c0_i32, %arg1 : i32, i32
  }
  func.func @transform_5(%arg0: i32, %arg1: i32, %arg2: i32) -> (i32, i32) {
    %c0_i32 = arith.constant 0 : i32
    return %arg0, %arg1 : i32, i32
  }
}

module attributes {stable_mosaic.version = 11 : i64} {
  func.func @kernel(%arg0: i32, %arg1: i32, %arg2: i32, %arg3: memref<48x256xbf16, #tpu.memory_space<vmem>>, %arg4: memref<256x128xbf16, #tpu.memory_space<vmem>>, %arg5: memref<1x128xf32, #tpu.memory_space<vmem>>, %arg6: memref<48x128xf32, #tpu.memory_space<vmem>>, %arg7: memref<48x128xf32, #tpu.memory_space<vmem>>) attributes {dimension_semantics = [#tpu.dimension_semantics<parallel>, #tpu.dimension_semantics<parallel>, #tpu.dimension_semantics<arbitrary>], iteration_bounds = array<i64: 1, 1, 1>, scalar_prefetch = 0 : i64, scratch_operands = 0 : i64, tpu.core_type = #tpu.core_type<tc>, window_params = [{transform_indices = @transform_0, window_bounds = array<i64: 48, 256>}, {transform_indices = @transform_1, window_bounds = array<i64: 256, 128>}, {transform_indices = @transform_2, window_bounds = array<i64: 1, 128>}, {transform_indices = @transform_3, window_bounds = array<i64: 48, 128>}, {transform_indices = @transform_4, window_bounds = array<i64: 48, 128>}]} {
    %c0 = arith.constant 0 : index
    %c0_0 = arith.constant 0 : index
    %0 = vector.load %arg3[%c0, %c0_0] : memref<48x256xbf16, #tpu.memory_space<vmem>>, vector<48x256xbf16>
    %c0_1 = arith.constant 0 : index
    %c0_2 = arith.constant 0 : index
    %1 = vector.load %arg4[%c0_1, %c0_2] : memref<256x128xbf16, #tpu.memory_space<vmem>>, vector<256x128xbf16>
    %cst = arith.constant dense<0.000000e+00> : vector<48x128xf32>
    %2 = tpu.matmul %0, %1, %cst {dimension_numbers = #tpu.dot_dimension_numbers<[1], [0], [0], [1], [0, 0, 1, 1], [], []>} : vector<48x256xbf16>, vector<256x128xbf16>, vector<48x128xf32> -> vector<48x128xf32>
    %c0_3 = arith.constant 0 : index
    %c0_4 = arith.constant 0 : index
    %3 = vector.load %arg5[%c0_3, %c0_4] : memref<1x128xf32, #tpu.memory_space<vmem>>, vector<1x128xf32>
    %4 = vector.broadcast %3 : vector<1x128xf32> to vector<48x128xf32>
    %5 = arith.addf %2, %4 : vector<48x128xf32>
    %c0_5 = arith.constant 0 : index
    %c0_6 = arith.constant 0 : index
    %6 = vector.load %arg6[%c0_5, %c0_6] : memref<48x128xf32, #tpu.memory_space<vmem>>, vector<48x128xf32>
    %7 = arith.addf %5, %6 : vector<48x128xf32>
    %c0_7 = arith.constant 0 : index
    %c0_8 = arith.constant 0 : index
    %8 = vector.load %arg7[%c0_7, %c0_8] : memref<48x128xf32, #tpu.memory_space<vmem>>, vector<48x128xf32>
    tpu.vector_store %arg7[%c0_7, %c0_8], %7 {strides = array<i32>} : memref<48x128xf32, #tpu.memory_space<vmem>>, vector<48x128xf32>,
    return
  }
  func.func @transform_0(%arg0: i32, %arg1: i32, %arg2: i32) -> (i32, i32) {
    %c0_i32 = arith.constant 0 : i32
    return %arg0, %arg2 : i32, i32
  }
  func.func @transform_1(%arg0: i32, %arg1: i32, %arg2: i32) -> (i32, i32) {
    %c0_i32 = arith.constant 0 : i32
    return %arg2, %arg1 : i32, i32
  }
  func.func @transform_2(%arg0: i32, %arg1: i32, %arg2: i32) -> (i32, i32) {
    %c0_i32 = arith.constant 0 : i32
    %c0_i32_0 = arith.constant 0 : i32
    return %c0_i32, %arg1 : i32, i32
  }
  func.func @transform_3(%arg0: i32, %arg1: i32, %arg2: i32) -> (i32, i32) {
    %c0_i32 = arith.constant 0 : i32
    return %arg0, %arg1 : i32, i32
  }
  func.func @transform_4(%arg0: i32, %arg1: i32, %arg2: i32) -> (i32, i32) {
    %c0_i32 = arith.constant 0 : i32
    return %arg0, %arg1 : i32, i32
  }
}

module attributes {stable_mosaic.version = 11 : i64} {
  func.func @kernel(%arg0: i32, %arg1: i32, %arg2: i32, %arg3: memref<16x64xf32, #tpu.memory_space<vmem>>, %arg4: memref<1x64xf32, #tpu.memory_space<vmem>>, %arg5: memref<1x64xf32, #tpu.memory_space<vmem>>, %arg6: memref<64x128xbf16, #tpu.memory_space<vmem>>, %arg7: memref<16x128xf32, #tpu.memory_space<vmem>>) attributes {dimension_semantics = [#tpu.dimension_semantics<parallel>, #tpu.dimension_semantics<parallel>, #tpu.dimension_semantics<arbitrary>], iteration_bounds = array<i64: 1, 1, 1>, scalar_prefetch = 0 : i64, scratch_operands = 0 : i64, tpu.core_type = #tpu.core_type<tc>, window_params = [{transform_indices = @transform_0, window_bounds = array<i64: 16, 64>}, {pipeline_mode = #tpu.pipeline_mode<synchronous>, transform_indices = @transform_1, window_bounds = array<i64: 1, 64>}, {pipeline_mode = #tpu.pipeline_mode<synchronous>, transform_indices = @transform_2, window_bounds = array<i64: 1, 64>}, {transform_indices = @transform_3, window_bounds = array<i64: 64, 128>}, {transform_indices = @transform_4, window_bounds = array<i64: 16, 128>}]} {
    %c0 = arith.constant 0 : index
    %c0_0 = arith.constant 0 : index
    %0 = vector.load %arg3[%c0, %c0_0] : memref<16x64xf32, #tpu.memory_space<vmem>>, vector<16x64xf32>
    %cst = arith.constant dense<0.000000e+00> : vector<16xf32>
    %1 = vector.multi_reduction <add>, %0, %cst [1] : vector<16x64xf32> to vector<16xf32>
    %2 = vector.shape_cast %1 : vector<16xf32> to vector<16x1xf32>
    %cst_1 = arith.constant 6.400000e+01 : f32
    %3 = vector.broadcast %cst_1 : f32 to vector<16x1xf32>
    %4 = arith.divf %2, %3 : vector<16x1xf32>
    %5 = vector.broadcast %4 : vector<16x1xf32> to vector<16x64xf32>
    %6 = arith.subf %0, %5 : vector<16x64xf32>
    %7 = arith.mulf %6, %6 : vector<16x64xf32>
    %cst_2 = arith.constant dense<0.000000e+00> : vector<16xf32>
    %8 = vector.multi_reduction <add>, %7, %cst_2 [1] : vector<16x64xf32> to vector<16xf32>
    %9 = vector.shape_cast %8 : vector<16xf32> to vector<16x1xf32>
    %cst_3 = arith.constant 6.400000e+01 : f32
    %10 = vector.broadcast %cst_3 : f32 to vector<16x1xf32>
    %11 = arith.divf %9, %10 : vector<16x1xf32>
    %12 = vector.broadcast %4 : vector<16x1xf32> to vector<16x64xf32>
    %13 = arith.subf %0, %12 : vector<16x64xf32>
    %cst_4 = arith.constant 9.99999974E-6 : f32
    %14 = vector.broadcast %cst_4 : f32 to vector<16x1xf32>
    %15 = arith.addf %11, %14 : vector<16x1xf32>
    %16 = math.rsqrt %15 : vector<16x1xf32>
    %17 = vector.broadcast %16 : vector<16x1xf32> to vector<16x64xf32>
    %18 = arith.mulf %13, %17 : vector<16x64xf32>
    %c0_5 = arith.constant 0 : index
    %c0_6 = arith.constant 0 : index
    %19 = vector.load %arg4[%c0_5, %c0_6] : memref<1x64xf32, #tpu.memory_space<vmem>>, vector<1x64xf32>
    %20 = vector.broadcast %19 : vector<1x64xf32> to vector<16x64xf32>
    %21 = arith.mulf %18, %20 : vector<16x64xf32>
    %c0_7 = arith.constant 0 : index
    %c0_8 = arith.constant 0 : index
    %22 = vector.load %arg5[%c0_7, %c0_8] : memref<1x64xf32, #tpu.memory_space<vmem>>, vector<1x64xf32>
    %23 = vector.broadcast %22 : vector<1x64xf32> to vector<16x64xf32>
    %24 = arith.addf %21, %23 : vector<16x64xf32>
    %25 = arith.truncf %24 : vector<16x64xf32> to vector<16x64xbf16>
    %c0_9 = arith.constant 0 : index
    %c0_10 = arith.constant 0 : index
    %26 = vector.load %arg6[%c0_9, %c0_10] : memref<64x128xbf16, #tpu.memory_space<vmem>>, vector<64x128xbf16>
    %cst_11 = arith.constant dense<0.000000e+00> : vector<16x128xf32>
    %27 = tpu.matmul %25, %26, %cst_11 {dimension_numbers = #tpu.dot_dimension_numbers<[1], [0], [0], [1], [0, 0, 1, 1], [], []>} : vector<16x64xbf16>, vector<64x128xbf16>, vector<16x128xf32> -> vector<16x128xf32>
    %c0_12 = arith.constant 0 : index
    %c0_13 = arith.constant 0 : index
    %28 = vector.load %arg7[%c0_12, %c0_13] : memref<16x128xf32, #tpu.memory_space<vmem>>, vector<16x128xf32>
    tpu.vector_store %arg7[%c0_12, %c0_13], %27 {strides = array<i32>} : memref<16x128xf32, #tpu.memory_space<vmem>>, vector<16x128xf32>,
    return
  }
  func.func @transform_0(%arg0: i32, %arg1: i32, %arg2: i32) -> (i32, i32) {
    %c0_i32 = arith.constant 0 : i32
    return %arg0, %arg2 : i32, i32
  }
  func.func @transform_1(%arg0: i32, %arg1: i32, %arg2: i32) -> (i32, i32) {
    %c0_i32 = arith.constant 0 : i32
    %c0_i32_0 = arith.constant 0 : i32
    %c0_i32_1 = arith.constant 0 : i32
    return %c0_i32, %c0_i32_0 : i32, i32
  }
  func.func @transform_2(%arg0: i32, %arg1: i32, %arg2: i32) -> (i32, i32) {
    %c0_i32 = arith.constant 0 : i32
    %c0_i32_0 = arith.constant 0 : i32
    %c0_i32_1 = arith.constant 0 : i32
    return %c0_i32, %c0_i32_0 : i32, i32
  }
  func.func @transform_3(%arg0: i32, %arg1: i32, %arg2: i32) -> (i32, i32) {
    %c0_i32 = arith.constant 0 : i32
    return %arg2, %arg1 : i32, i32
  }
  func.func @transform_4(%arg0: i32, %arg1: i32, %arg2: i32) -> (i32, i32) {
    %c0_i32 = arith.constant 0 : i32
    return %arg0, %arg1 : i32, i32
  }
}

</mosaic_0001>

<llo_original>
// kernel: encode_image.14
$region0: #{encode_image.14}
  #allocation0 [shape = 'u32[]', space=smem, size = 0x4, offset = 0x4, fixed_abs, tag = 'smem constant byte address 0x4 - core index']
  #allocation1 [shape = 'u32[144,128]{1,0:T(1,128)}', space=vmem, size = 0x12000, scoped, tag = 'internal scratch']
  %s0 = inlined_call_operand.vmem [shape: f32[40,64], index: 0, kind: input, shape index: {}]
  %s1 = inlined_call_operand.vmem [shape: f32[1,64], index: 1, kind: input, shape index: {}]
  %s2 = inlined_call_operand.vmem [shape: f32[1,64], index: 2, kind: input, shape index: {}]
  %s3 = inlined_call_operand.vmem [shape: f32[40,64], index: 3, kind: output, shape index: {}]
  %s4 = sld [smem:[#allocation0]]
  $region22: #{encode_image.14} parent=0
    _
  %s6 = ssub.s32 1, %s4
  %s7 = scalar_select 0, %s6, %s4
  // Predicated region
  $region2: #{encode_image.14} parent=0 // pred_check
    _
  $region3: #{encode_image.14} parent=0 // pred_check_branch
    %9 = sbr.rel (0) target = $region5
  $region4: #{encode_image.14} parent=0 // pred_region
    _
  $region5: #{encode_image.14} parent=0 // pred_fallthru
    _
  // Predicated region
  $region6: #{encode_image.14} parent=0 // pred_check
    _
  $region7: #{encode_image.14} parent=0 // pred_check_branch
    %11 = sbr.rel (0) target = $region9
  $region8: #{encode_image.14} parent=0 // pred_region
    _
  $region9: #{encode_image.14} parent=0 // pred_fallthru
    _
  // Predicated region
  $region10: #{encode_image.14} parent=0 // pred_check
    _
  $region11: #{encode_image.14} parent=0 // pred_check_branch
    %13 = sbr.rel (0) target = $region13
  $region12: #{encode_image.14} parent=0 // pred_region
    _
  $region13: #{encode_image.14} parent=0 // pred_fallthru
    _
  %v14 = vld [vmem:[%s0] sm:$0xff]
  %v15 = vld [vmem:[%s0 + $0x8] sm:$0xff]
  %v16 = vld [vmem:[%s0 + $0x10] sm:$0xff]
  %v17 = vld [vmem:[%s0 + $0x18] sm:$0xff]
  %v18 = vld [vmem:[%s0 + $0x20] sm:$0xff]
  %vm19 = vcmask 523264
  %v20 = vsel %vm19, %v14, 0.0
  %21 = vadd.xlane.f32.xlu0 %v20
  %v22 = vpop.xlane.xlu0 %21
  %v23 = vsel %vm19, %v15, 0.0
  %24 = vadd.xlane.f32.xlu0 %v23
  %v25 = vpop.xlane.xlu0 %24
  %v26 = vsel %vm19, %v16, 0.0
  %27 = vadd.xlane.f32.xlu0 %v26
  %v28 = vpop.xlane.xlu0 %27
  %v29 = vsel %vm19, %v17, 0.0
  %30 = vadd.xlane.f32.xlu0 %v29
  %v31 = vpop.xlane.xlu0 %30
  %v32 = vsel %vm19, %v18, 0.0
  %33 = vadd.xlane.f32.xlu0 %v32
  %v34 = vpop.xlane.xlu0 %33
  %v35 = vrcp.pop 64.0
  %v36 = vmul.f32 %v22, %v35
  %v37 = vmul.f32 %v25, %v35
  %v38 = vmul.f32 %v28, %v35
  %v39 = vmul.f32 %v31, %v35
  %v40 = vmul.f32 %v34, %v35
  %v41 = vsub.f32 %v14, %v36
  %v42 = vsub.f32 %v15, %v37
  %v43 = vsub.f32 %v16, %v38
  %v44 = vsub.f32 %v17, %v39
  %v45 = vsub.f32 %v18, %v40
  %v46 = vmul.f32 %v41, %v41
  %v47 = vmul.f32 %v42, %v42
  %v48 = vmul.f32 %v43, %v43
  %v49 = vmul.f32 %v44, %v44
  %v50 = vmul.f32 %v45, %v45
  %v51 = vsel %vm19, %v46, 0.0
  %52 = vadd.xlane.f32.xlu0 %v51
  %v53 = vpop.xlane.xlu0 %52
  %v54 = vsel %vm19, %v47, 0.0
  %55 = vadd.xlane.f32.xlu0 %v54
  %v56 = vpop.xlane.xlu0 %55
  %v57 = vsel %vm19, %v48, 0.0
  %58 = vadd.xlane.f32.xlu0 %v57
  %v59 = vpop.xlane.xlu0 %58
  %v60 = vsel %vm19, %v49, 0.0
  %61 = vadd.xlane.f32.xlu0 %v60
  %v62 = vpop.xlane.xlu0 %61
  %v63 = vsel %vm19, %v50, 0.0
  %64 = vadd.xlane.f32.xlu0 %v63
  %v65 = vpop.xlane.xlu0 %64
  %v66 = vmul.f32 %v53, %v35
  %v67 = vmul.f32 %v56, %v35
  %v68 = vmul.f32 %v59, %v35
  %v69 = vmul.f32 %v62, %v35
  %v70 = vmul.f32 %v65, %v35
  %v71 = vadd.f32 %v66, 1e-05
  %v72 = vadd.f32 %v67, 1e-05
  %v73 = vadd.f32 %v68, 1e-05
  %v74 = vadd.f32 %v69, 1e-05
  %v75 = vadd.f32 %v70, 1e-05
  %v76 = vrsqrt.pop %v71
  %v77 = vrsqrt.pop %v72
  %v78 = vrsqrt.pop %v73
  %v79 = vrsqrt.pop %v74
  %v80 = vrsqrt.pop %v75
  %v81 = vmul.f32 %v41, %v76
  %v82 = vmul.f32 %v42, %v77
  %v83 = vmul.f32 %v43, %v78
  %v84 = vmul.f32 %v44, %v79
  %v85 = vmul.f32 %v45, %v80
  %v86 = vld [vmem:[%s1] sm:$0x1]
  %v88 = vlaneseq
  %v89 = vshrl.u32 %v88, 7
  %v90 = vsub.s32 0, %v89
  %v91 = vrot.slane %v86, %v90
  %v93 = vmul.f32 %v81, %v91
  %v94 = vmul.f32 %v82, %v91
  %v95 = vmul.f32 %v83, %v91
  %v96 = vmul.f32 %v84, %v91
  %v97 = vmul.f32 %v85, %v91
  %v98 = vld [vmem:[%s2] sm:$0x1]
  %v100 = vlaneseq
  %v101 = vshrl.u32 %v100, 7
  %v102 = vsub.s32 0, %v101
  %v103 = vrot.slane %v98, %v102
  %v105 = vadd.f32 %v93, %v103
  %v106 = vadd.f32 %v94, %v103
  %v107 = vadd.f32 %v95, %v103
  %v108 = vadd.f32 %v96, %v103
  %v109 = vadd.f32 %v97, %v103
  %110 = vst.msk [vmem:[%s3] sm:$0xff] %vm19, %v105
  %111 = vst.msk [vmem:[%s3 + $0x8] sm:$0xff] %vm19, %v106
  %112 = vst.msk [vmem:[%s3 + $0x10] sm:$0xff] %vm19, %v107
  %113 = vst.msk [vmem:[%s3 + $0x18] sm:$0xff] %vm19, %v108
  %114 = vst.msk [vmem:[%s3 + $0x20] sm:$0xff] %vm19, %v109
  // Predicated region
  $region14: #{encode_image.14} parent=0 // pred_check
    _
  $region15: #{encode_image.14} parent=0 // pred_check_branch
    %116 = sbr.rel (0) target = $region17
  $region16: #{encode_image.14} parent=0 // pred_region
    _
  $region17: #{encode_image.14} parent=0 // pred_fallthru
    _
  // Predicated region
  $region18: #{encode_image.14} parent=0 // pred_check
    _
  $region19: #{encode_image.14} parent=0 // pred_check_branch
    %118 = sbr.rel (0) target = $region21
  $region20: #{encode_image.14} parent=0 // pred_region
    _
  $region21: #{encode_image.14} parent=0 // pred_fallthru
    _

// kernel: encode_image.15
$region0: #{encode_image.15}
  #allocation0 [shape = 'u32[]', space=smem, size = 0x4, offset = 0x4, fixed_abs, tag = 'smem constant byte address 0x4 - core index']
  #allocation1 [shape = 'u32[144,128]{1,0:T(1,128)}', space=vmem, size = 0x12000, scoped, tag = 'internal scratch']
  %s0 = inlined_call_operand.vmem [shape: f32[48,64], index: 0, kind: input, shape index: {}]
  %s1 = inlined_call_operand.vmem [shape: f32[1,64], index: 1, kind: input, shape index: {}]
  %s2 = inlined_call_operand.vmem [shape: f32[1,64], index: 2, kind: input, shape index: {}]
  %s3 = inlined_call_operand.vmem [shape: bf16[64,256], index: 3, kind: input, shape index: {}]
  %s4 = inlined_call_operand.vmem [shape: f32[1,256], index: 4, kind: input, shape index: {}]
  %s5 = inlined_call_operand.vmem [shape: bf16[48,256], index: 5, kind: output, shape index: {}]
  %s6 = sld [smem:[#allocation0]]
  $region30: #{encode_image.15} parent=0
    _
  %s8 = ssub.s32 1, %s6
  %s9 = scalar_select 0, %s8, %s6
  // Predicated region
  $region2: #{encode_image.15} parent=0 // pred_check
    _
  $region3: #{encode_image.15} parent=0 // pred_check_branch
    %11 = sbr.rel (0) target = $region5
  $region4: #{encode_image.15} parent=0 // pred_region
    _
  $region5: #{encode_image.15} parent=0 // pred_fallthru
    _
  // Predicated region
  $region6: #{encode_image.15} parent=0 // pred_check
    _
  $region7: #{encode_image.15} parent=0 // pred_check_branch
    %13 = sbr.rel (0) target = $region9
  $region8: #{encode_image.15} parent=0 // pred_region
    _
  $region9: #{encode_image.15} parent=0 // pred_fallthru
    _
  // Predicated region
  $region10: #{encode_image.15} parent=0 // pred_check
    _
  $region11: #{encode_image.15} parent=0 // pred_check_branch
    %15 = sbr.rel (0) target = $region13
  $region12: #{encode_image.15} parent=0 // pred_region
    _
  $region13: #{encode_image.15} parent=0 // pred_fallthru
    _
  // Predicated region
  $region14: #{encode_image.15} parent=0 // pred_check
    _
  $region15: #{encode_image.15} parent=0 // pred_check_branch
    %17 = sbr.rel (0) target = $region17
  $region16: #{encode_image.15} parent=0 // pred_region
    _
  $region17: #{encode_image.15} parent=0 // pred_fallthru
    _
  // Predicated region
  $region18: #{encode_image.15} parent=0 // pred_check
    _
  $region19: #{encode_image.15} parent=0 // pred_check_branch
    %19 = sbr.rel (0) target = $region21
  $region20: #{encode_image.15} parent=0 // pred_region
    _
  $region21: #{encode_image.15} parent=0 // pred_fallthru
    _
  %v21 = vld [vmem:[%s0] sm:$0xff]
  %v22 = vld [vmem:[%s0 + $0x8] sm:$0xff]
  %v23 = vld [vmem:[%s0 + $0x10] sm:$0xff]
  %v24 = vld [vmem:[%s0 + $0x18] sm:$0xff]
  %v25 = vld [vmem:[%s0 + $0x20] sm:$0xff]
  %v26 = vld [vmem:[%s0 + $0x28] sm:$0xff]
  %vm27 = vcmask 523264
  %v28 = vsel %vm27, %v21, 0.0
  %29 = vadd.xlane.f32.xlu0 %v28
  %v30 = vpop.xlane.xlu0 %29
  %v31 = vsel %vm27, %v22, 0.0
  %32 = vadd.xlane.f32.xlu0 %v31
  %v33 = vpop.xlane.xlu0 %32
  %v34 = vsel %vm27, %v23, 0.0
  %35 = vadd.xlane.f32.xlu0 %v34
  %v36 = vpop.xlane.xlu0 %35
  %v37 = vsel %vm27, %v24, 0.0
  %38 = vadd.xlane.f32.xlu0 %v37
  %v39 = vpop.xlane.xlu0 %38
  %v40 = vsel %vm27, %v25, 0.0
  %41 = vadd.xlane.f32.xlu0 %v40
  %v42 = vpop.xlane.xlu0 %41
  %v43 = vsel %vm27, %v26, 0.0
  %44 = vadd.xlane.f32.xlu0 %v43
  %v45 = vpop.xlane.xlu0 %44
  %v46 = vrcp.pop 64.0
  %v47 = vmul.f32 %v30, %v46
  %v48 = vmul.f32 %v33, %v46
  %v49 = vmul.f32 %v36, %v46
  %v50 = vmul.f32 %v39, %v46
  %v51 = vmul.f32 %v42, %v46
  %v52 = vmul.f32 %v45, %v46
  %v53 = vsub.f32 %v21, %v47
  %v54 = vsub.f32 %v22, %v48
  %v55 = vsub.f32 %v23, %v49
  %v56 = vsub.f32 %v24, %v50
  %v57 = vsub.f32 %v25, %v51
  %v58 = vsub.f32 %v26, %v52
  %v59 = vmul.f32 %v53, %v53
  %v60 = vmul.f32 %v54, %v54
  %v61 = vmul.f32 %v55, %v55
  %v62 = vmul.f32 %v56, %v56
  %v63 = vmul.f32 %v57, %v57
  %v64 = vmul.f32 %v58, %v58
  %v65 = vsel %vm27, %v59, 0.0
  %66 = vadd.xlane.f32.xlu0 %v65
  %v67 = vpop.xlane.xlu0 %66
  %v68 = vsel %vm27, %v60, 0.0
  %69 = vadd.xlane.f32.xlu0 %v68
  %v70 = vpop.xlane.xlu0 %69
  %v71 = vsel %vm27, %v61, 0.0
  %72 = vadd.xlane.f32.xlu0 %v71
  %v73 = vpop.xlane.xlu0 %72
  %v74 = vsel %vm27, %v62, 0.0
  %75 = vadd.xlane.f32.xlu0 %v74
  %v76 = vpop.xlane.xlu0 %75
  %v77 = vsel %vm27, %v63, 0.0
  %78 = vadd.xlane.f32.xlu0 %v77
  %v79 = vpop.xlane.xlu0 %78
  %v80 = vsel %vm27, %v64, 0.0
  %81 = vadd.xlane.f32.xlu0 %v80
  %v82 = vpop.xlane.xlu0 %81
  %v83 = vmul.f32 %v67, %v46
  %v84 = vmul.f32 %v70, %v46
  %v85 = vmul.f32 %v73, %v46
  %v86 = vmul.f32 %v76, %v46
  %v87 = vmul.f32 %v79, %v46
  %v88 = vmul.f32 %v82, %v46
  %v89 = vadd.f32 %v83, 1e-05
  %v90 = vadd.f32 %v84, 1e-05
  %v91 = vadd.f32 %v85, 1e-05
  %v92 = vadd.f32 %v86, 1e-05
  %v93 = vadd.f32 %v87, 1e-05
  %v94 = vadd.f32 %v88, 1e-05
  %v95 = vrsqrt.pop %v89
  %v96 = vrsqrt.pop %v90
  %v97 = vrsqrt.pop %v91
  %v98 = vrsqrt.pop %v92
  %v99 = vrsqrt.pop %v93
  %v100 = vrsqrt.pop %v94
  %v101 = vmul.f32 %v53, %v95
  %v102 = vmul.f32 %v54, %v96
  %v103 = vmul.f32 %v55, %v97
  %v104 = vmul.f32 %v56, %v98
  %v105 = vmul.f32 %v57, %v99
  %v106 = vmul.f32 %v58, %v100
  %v107 = vld [vmem:[%s1] sm:$0x1]
  %v109 = vlaneseq
  %v110 = vshrl.u32 %v109, 7
  %v111 = vsub.s32 0, %v110
  %v112 = vrot.slane %v107, %v111
  %v114 = vmul.f32 %v101, %v112
  %v115 = vmul.f32 %v102, %v112
  %v116 = vmul.f32 %v103, %v112
  %v117 = vmul.f32 %v104, %v112
  %v118 = vmul.f32 %v105, %v112
  %v119 = vmul.f32 %v106, %v112
  %v120 = vld [vmem:[%s2] sm:$0x1]
  %v122 = vlaneseq
  %v123 = vshrl.u32 %v122, 7
  %v124 = vsub.s32 0, %v123
  %v125 = vrot.slane %v120, %v124
  %v127 = vadd.f32 %v114, %v125
  %v128 = vadd.f32 %v115, %v125
  %v129 = vadd.f32 %v116, %v125
  %v130 = vadd.f32 %v117, %v125
  %v131 = vadd.f32 %v118, %v125
  %v132 = vadd.f32 %v119, %v125
  %v133 = vpack.c.bf16 %v128, %v127
  %v134 = vpack.c.bf16 %v130, %v129
  %v135 = vpack.c.bf16 %v132, %v131
  %v136 = vld [vmem:[%s3] sm:$0xff]
  %v137 = vld [vmem:[%s3 + $0x8] sm:$0xff]
  %v138 = vld [vmem:[%s3 + $0x10] sm:$0xff]
  %v139 = vld [vmem:[%s3 + $0x18] sm:$0xff]
  %v140 = vld [vmem:[%s3 + $0x20] sm:$0xff]
  %v141 = vld [vmem:[%s3 + $0x28] sm:$0xff]
  %v142 = vld [vmem:[%s3 + $0x30] sm:$0xff]
  %v143 = vld [vmem:[%s3 + $0x38] sm:$0xff]
  %v144 = vld [vmem:[%s4] sm:$0x3]
  %v146 = vlaneseq
  %v147 = vshrl.u32 %v146, 7
  %v148 = vsub.s32 0, %v147
  %v149 = vrot.slane %v144, %v148
  %v150 = vlaneseq
  %v151 = vshrl.u32 %v150, 7
  %v152 = vsub.s32 1, %v151
  %v153 = vrot.slane %v144, %v152
  %v164 = vunpack.c.l.b16 %v136
  %v165 = vunpack.c.h.b16 %v136
  %v166 = vunpack.c.l.b16 %v137
  %v167 = vunpack.c.h.b16 %v137
  %v168 = vunpack.c.l.b16 %v138
  %v169 = vunpack.c.h.b16 %v138
  %v170 = vunpack.c.l.b16 %v139
  %v171 = vunpack.c.h.b16 %v139
  %v172 = vunpack.c.l.b16 %v140
  %v173 = vunpack.c.h.b16 %v140
  %v174 = vunpack.c.l.b16 %v141
  %v175 = vunpack.c.h.b16 %v141
  %v176 = vunpack.c.l.b16 %v142
  %v177 = vunpack.c.h.b16 %v142
  %v178 = vunpack.c.l.b16 %v143
  %v179 = vunpack.c.h.b16 %v143
  %v180 = vpack.c.b16 %v166, %v164
  %v181 = vpack.c.b16 %v167, %v165
  %v182 = vpack.c.b16 %v170, %v168
  %v183 = vpack.c.b16 %v171, %v169
  %v184 = vpack.c.b16 %v174, %v172
  %v185 = vpack.c.b16 %v175, %v173
  %v186 = vpack.c.b16 %v178, %v176
  %v187 = vpack.c.b16 %v179, %v177
  %v197 = vsel %vm27, %v133, 0
  %v200 = vsel %vm27, %v134, 0
  %v203 = vsel %vm27, %v135, 0
  %205 = vmatprep.subr.bf16.mxu0 %v181
  %206 = vmatpush1.bf16.msra.mxu0 %v180
  %207 = vmatprep.subr.bf16.mxu0 %v183
  %208 = vmatpush1.bf16.msra.mxu0 %v182
  %209 = vmatprep.subr.bf16.mxu0 %v185
  %210 = vmatpush1.bf16.msra.mxu0 %v184
  %211 = vmatprep.subr.bf16.mxu0 %v187
  %212 = vmatpush1.bf16.msra.mxu0 %v186
  %213 = vmatprep.subr.bf16.mxu0 0
  %214 = vmatpush1.bf16.msra.mxu0 0
  %215 = vmatprep.subr.bf16.mxu0 0
  %216 = vmatpush1.bf16.msra.mxu0 0
  %217 = vmatprep.subr.bf16.mxu0 0
  %218 = vmatpush1.bf16.msra.mxu0 0
  %219 = vmatprep.subr.bf16.mxu0 0
  %220 = vmatpush1.bf16.msra.mxu0 0
  %221 = vmatprep.subr.bf16.mxu0 0
  %222 = vmatpush1.bf16.msra.mxu0 0
  %223 = vmatprep.subr.bf16.mxu0 0
  %224 = vmatpush1.bf16.msra.mxu0 0
  %225 = vmatprep.subr.bf16.mxu0 0
  %226 = vmatpush1.bf16.msra.mxu0 0
  %227 = vmatprep.subr.bf16.mxu0 0
  %228 = vmatpush1.bf16.msra.mxu0 0
  %229 = vmatprep.subr.bf16.mxu0 0
  %230 = vmatpush1.bf16.msra.mxu0 0
  %231 = vmatprep.subr.bf16.mxu0 0
  %232 = vmatpush1.bf16.msra.mxu0 0
  %233 = vmatprep.subr.bf16.mxu0 0
  %234 = vmatpush1.bf16.msra.mxu0 0
  %235 = vmatprep.subr.bf16.mxu0 0
  %236 = vmatpush1.bf16.msra.mxu0 0
  %237 = vmatprep.mubr.bf16.mxu0 0
  %238 = vmatmul.mubr.bf16.gmra.mrb[0].mxu0 %v197
  %v239 = vpop.f32.mrb[0].mxu0
  %v240 = vadd.f32 %v149, %v239
  %v241 = vpop.f32.mrb[0].mxu0
  %v242 = vadd.f32 %v153, %v241
  %v243 = vpop.f32.mrb[0].mxu0
  %v244 = vadd.f32 %v149, %v243
  %v245 = vpop.f32.mrb[0].mxu0
  %v246 = vadd.f32 %v153, %v245
  %247 = vmatprep.mubr.bf16.mxu0 0
  %248 = vmatmul.mubr.bf16.gmra.mrb[0].mxu0 %v200
  %v249 = vpop.f32.mrb[0].mxu0
  %v250 = vadd.f32 %v149, %v249
  %v251 = vpop.f32.mrb[0].mxu0
  %v252 = vadd.f32 %v153, %v251
  %v253 = vpop.f32.mrb[0].mxu0
  %v254 = vadd.f32 %v149, %v253
  %v255 = vpop.f32.mrb[0].mxu0
  %v256 = vadd.f32 %v153, %v255
  %257 = vmatprep.mubr.bf16.mxu0 0
  %258 = vmatmul.mubr.bf16.gmra.mrb[0].mxu0 %v203
  %v259 = vpop.f32.mrb[0].mxu0
  %v260 = vadd.f32 %v149, %v259
  %v261 = vpop.f32.mrb[0].mxu0
  %v262 = vadd.f32 %v153, %v261
  %v263 = vpop.f32.mrb[0].mxu0
  %v264 = vadd.f32 %v149, %v263
  %v265 = vpop.f32.mrb[0].mxu0
  %v266 = vadd.f32 %v153, %v265
  %267 = vdwg.mxu0
  %v268 = vpack.c.bf16 %v244, %v240
  %v269 = vpack.c.bf16 %v246, %v242
  %v270 = vpack.c.bf16 %v254, %v250
  %v271 = vpack.c.bf16 %v256, %v252
  %v272 = vpack.c.bf16 %v264, %v260
  %v273 = vpack.c.bf16 %v266, %v262
  %v280 = vunpack.c.l.b16 %v268
  %v281 = vunpack.c.l.b16 %v269
  %v282 = vunpack.c.h.b16 %v268
  %v283 = vunpack.c.h.b16 %v269
  %v284 = vunpack.c.l.b16 %v270
  %v285 = vunpack.c.l.b16 %v271
  %v286 = vunpack.c.h.b16 %v270
  %v287 = vunpack.c.h.b16 %v271
  %v288 = vunpack.c.l.b16 %v272
  %v289 = vunpack.c.l.b16 %v273
  %v290 = vunpack.c.h.b16 %v272
  %v291 = vunpack.c.h.b16 %v273
  %v292 = vpack.c.b16 %v281, %v280
  %v293 = vpack.c.b16 %v283, %v282
  %v294 = vpack.c.b16 %v285, %v284
  %v295 = vpack.c.b16 %v287, %v286
  %v296 = vpack.c.b16 %v289, %v288
  %v297 = vpack.c.b16 %v291, %v290
  %304 = vst [vmem:[%s5] sm:$0xff] %v292
  %305 = vst [vmem:[%s5 + $0x8] sm:$0xff] %v293
  %306 = vst [vmem:[%s5 + $0x10] sm:$0xff] %v294
  %307 = vst [vmem:[%s5 + $0x18] sm:$0xff] %v295
  %308 = vst [vmem:[%s5 + $0x20] sm:$0xff] %v296
  %309 = vst [vmem:[%s5 + $0x28] sm:$0xff] %v297
  // Predicated region
  $region22: #{encode_image.15} parent=0 // pred_check
    _
  $region23: #{encode_image.15} parent=0 // pred_check_branch
    %311 = sbr.rel (0) target = $region25
  $region24: #{encode_image.15} parent=0 // pred_region
    _
  $region25: #{encode_image.15} parent=0 // pred_fallthru
    _
  // Predicated region
  $region26: #{encode_image.15} parent=0 // pred_check
    _
  $region27: #{encode_image.15} parent=0 // pred_check_branch
    %313 = sbr.rel (0) target = $region29
  $region28: #{encode_image.15} parent=0 // pred_region
    _
  $region29: #{encode_image.15} parent=0 // pred_fallthru
    _

// kernel: encode_image.13
$region0: #{encode_image.13}
  #allocation0 [shape = 'u32[]', space=smem, size = 0x4, offset = 0x4, fixed_abs, tag = 'smem constant byte address 0x4 - core index']
  #allocation1 [shape = 'u32[144,128]{1,0:T(1,128)}', space=vmem, size = 0x12000, scoped, tag = 'internal scratch']
  %s0 = inlined_call_operand.vmem [shape: bf16[32,256], index: 0, kind: input, shape index: {}]
  %s1 = inlined_call_operand.vmem [shape: bf16[256,128], index: 1, kind: input, shape index: {}]
  %s2 = inlined_call_operand.vmem [shape: f32[32,128], index: 2, kind: output, shape index: {}]
  %s3 = sld [smem:[#allocation0]]
  $region18: #{encode_image.13} parent=0
    _
  %s5 = ssub.s32 1, %s3
  %s6 = scalar_select 0, %s5, %s3
  // Predicated region
  $region2: #{encode_image.13} parent=0 // pred_check
    _
  $region3: #{encode_image.13} parent=0 // pred_check_branch
    %8 = sbr.rel (0) target = $region5
  $region4: #{encode_image.13} parent=0 // pred_region
    _
  $region5: #{encode_image.13} parent=0 // pred_fallthru
    _
  // Predicated region
  $region6: #{encode_image.13} parent=0 // pred_check
    _
  $region7: #{encode_image.13} parent=0 // pred_check_branch
    %10 = sbr.rel (0) target = $region9
  $region8: #{encode_image.13} parent=0 // pred_region
    _
  $region9: #{encode_image.13} parent=0 // pred_fallthru
    _
  %v12 = vld [vmem:[%s0] sm:$0xff]
  %v13 = vld [vmem:[%s0 + $0x8] sm:$0xff]
  %v14 = vld [vmem:[%s0 + $0x10] sm:$0xff]
  %v15 = vld [vmem:[%s0 + $0x18] sm:$0xff]
  %v16 = vld [vmem:[%s1] sm:$0xf]
  %v17 = vld [vmem:[%s1 + $0x4] sm:$0xf]
  %v18 = vld [vmem:[%s1 + $0x8] sm:$0xf]
  %v19 = vld [vmem:[%s1 + $0xc] sm:$0xf]
  %v20 = vld [vmem:[%s1 + $0x10] sm:$0xf]
  %v21 = vld [vmem:[%s1 + $0x14] sm:$0xf]
  %v22 = vld [vmem:[%s1 + $0x18] sm:$0xf]
  %v23 = vld [vmem:[%s1 + $0x1c] sm:$0xf]
  %v24 = vld [vmem:[%s1 + $0x20] sm:$0xf]
  %v25 = vld [vmem:[%s1 + $0x24] sm:$0xf]
  %v26 = vld [vmem:[%s1 + $0x28] sm:$0xf]
  %v27 = vld [vmem:[%s1 + $0x2c] sm:$0xf]
  %v28 = vld [vmem:[%s1 + $0x30] sm:$0xf]
  %v29 = vld [vmem:[%s1 + $0x34] sm:$0xf]
  %v30 = vld [vmem:[%s1 + $0x38] sm:$0xf]
  %v31 = vld [vmem:[%s1 + $0x3c] sm:$0xf]
  %v32 = vld [vmem:[%s1 + $0x40] sm:$0xf]
  %v33 = vld [vmem:[%s1 + $0x44] sm:$0xf]
  %v34 = vld [vmem:[%s1 + $0x48] sm:$0xf]
  %v35 = vld [vmem:[%s1 + $0x4c] sm:$0xf]
  %v36 = vld [vmem:[%s1 + $0x50] sm:$0xf]
  %v37 = vld [vmem:[%s1 + $0x54] sm:$0xf]
  %v38 = vld [vmem:[%s1 + $0x58] sm:$0xf]
  %v39 = vld [vmem:[%s1 + $0x5c] sm:$0xf]
  %v40 = vld [vmem:[%s1 + $0x60] sm:$0xf]
  %v41 = vld [vmem:[%s1 + $0x64] sm:$0xf]
  %v42 = vld [vmem:[%s1 + $0x68] sm:$0xf]
  %v43 = vld [vmem:[%s1 + $0x6c] sm:$0xf]
  %v44 = vld [vmem:[%s1 + $0x70] sm:$0xf]
  %v45 = vld [vmem:[%s1 + $0x74] sm:$0xf]
  %v46 = vld [vmem:[%s1 + $0x78] sm:$0xf]
  %v47 = vld [vmem:[%s1 + $0x7c] sm:$0xf]
  %v52 = vunpack.c.l.b16 %v12
  %v53 = vunpack.c.h.b16 %v12
  %v54 = vunpack.c.l.b16 %v13
  %v55 = vunpack.c.h.b16 %v13
  %v56 = vunpack.c.l.b16 %v14
  %v57 = vunpack.c.h.b16 %v14
  %v58 = vunpack.c.l.b16 %v15
  %v59 = vunpack.c.h.b16 %v15
  %v60 = vpack.c.b16 %v54, %v52
  %v61 = vpack.c.b16 %v55, %v53
  %v62 = vpack.c.b16 %v58, %v56
  %v63 = vpack.c.b16 %v59, %v57
  %v100 = vunpack.c.l.b16 %v16
  %v101 = vunpack.c.l.b16 %v17
  %v102 = vunpack.c.l.b16 %v18
  %v103 = vunpack.c.l.b16 %v19
  %v104 = vunpack.c.l.b16 %v20
  %v105 = vunpack.c.l.b16 %v21
  %v106 = vunpack.c.l.b16 %v22
  %v107 = vunpack.c.l.b16 %v23
  %v108 = vunpack.c.l.b16 %v24
  %v109 = vunpack.c.l.b16 %v25
  %v110 = vunpack.c.l.b16 %v26
  %v111 = vunpack.c.l.b16 %v27
  %v112 = vunpack.c.l.b16 %v28
  %v113 = vunpack.c.l.b16 %v29
  %v114 = vunpack.c.l.b16 %v30
  %v115 = vunpack.c.l.b16 %v31
  %v116 = vunpack.c.l.b16 %v32
  %v117 = vunpack.c.l.b16 %v33
  %v118 = vunpack.c.l.b16 %v34
  %v119 = vunpack.c.l.b16 %v35
  %v120 = vunpack.c.l.b16 %v36
  %v121 = vunpack.c.l.b16 %v37
  %v122 = vunpack.c.l.b16 %v38
  %v123 = vunpack.c.l.b16 %v39
  %v124 = vunpack.c.l.b16 %v40
  %v125 = vunpack.c.l.b16 %v41
  %v126 = vunpack.c.l.b16 %v42
  %v127 = vunpack.c.l.b16 %v43
  %v128 = vunpack.c.l.b16 %v44
  %v129 = vunpack.c.l.b16 %v45
  %v130 = vunpack.c.l.b16 %v46
  %v131 = vunpack.c.l.b16 %v47
  %v132 = vpack.c.b16 %v101, %v100
  %v133 = vpack.c.b16 %v103, %v102
  %v134 = vpack.c.b16 %v105, %v104
  %v135 = vpack.c.b16 %v107, %v106
  %v136 = vpack.c.b16 %v109, %v108
  %v137 = vpack.c.b16 %v111, %v110
  %v138 = vpack.c.b16 %v113, %v112
  %v139 = vpack.c.b16 %v115, %v114
  %v140 = vpack.c.b16 %v117, %v116
  %v141 = vpack.c.b16 %v119, %v118
  %v142 = vpack.c.b16 %v121, %v120
  %v143 = vpack.c.b16 %v123, %v122
  %v144 = vpack.c.b16 %v125, %v124
  %v145 = vpack.c.b16 %v127, %v126
  %v146 = vpack.c.b16 %v129, %v128
  %v147 = vpack.c.b16 %v131, %v130
  %164 = vmatprep.subr.bf16.mxu0 0
  %165 = vmatpush1.bf16.msra.mxu0 %v132
  %166 = vmatprep.subr.bf16.mxu0 0
  %167 = vmatpush1.bf16.msra.mxu0 %v133
  %168 = vmatprep.subr.bf16.mxu0 0
  %169 = vmatpush1.bf16.msra.mxu0 %v134
  %170 = vmatprep.subr.bf16.mxu0 0
  %171 = vmatpush1.bf16.msra.mxu0 %v135
  %172 = vmatprep.subr.bf16.mxu0 0
  %173 = vmatpush1.bf16.msra.mxu0 %v136
  %174 = vmatprep.subr.bf16.mxu0 0
  %175 = vmatpush1.bf16.msra.mxu0 %v137
  %176 = vmatprep.subr.bf16.mxu0 0
  %177 = vmatpush1.bf16.msra.mxu0 %v138
  %178 = vmatprep.subr.bf16.mxu0 0
  %179 = vmatpush1.bf16.msra.mxu0 %v139
  %180 = vmatprep.subr.bf16.mxu0 0
  %181 = vmatpush1.bf16.msra.mxu0 %v140
  %182 = vmatprep.subr.bf16.mxu0 0
  %183 = vmatpush1.bf16.msra.mxu0 %v141
  %184 = vmatprep.subr.bf16.mxu0 0
  %185 = vmatpush1.bf16.msra.mxu0 %v142
  %186 = vmatprep.subr.bf16.mxu0 0
  %187 = vmatpush1.bf16.msra.mxu0 %v143
  %188 = vmatprep.subr.bf16.mxu0 0
  %189 = vmatpush1.bf16.msra.mxu0 %v144
  %190 = vmatprep.subr.bf16.mxu0 0
  %191 = vmatpush1.bf16.msra.mxu0 %v145
  %192 = vmatprep.subr.bf16.mxu0 0
  %193 = vmatpush1.bf16.msra.mxu0 %v146
  %194 = vmatprep.subr.bf16.mxu0 0
  %195 = vmatpush1.bf16.msra.mxu0 %v147
  %196 = vmatprep.mubr.bf16.mxu0 %v61
  %197 = vmatmul.mubr.bf16.gmra.mrb[0].mxu0 %v60
  %v198 = vpop.f32.mrb[0].mxu0
  %v199 = vadd.f32 0.0, %v198
  %v200 = vpop.f32.mrb[0].mxu0
  %v201 = vpop.f32.mrb[0].mxu0
  %v202 = vadd.f32 0.0, %v201
  %v203 = vpop.f32.mrb[0].mxu0
  %204 = vmatprep.mubr.bf16.mxu0 %v63
  %205 = vmatmul.mubr.bf16.gmra.mrb[0].mxu0 %v62
  %v206 = vpop.f32.mrb[0].mxu0
  %v207 = vadd.f32 0.0, %v206
  %v208 = vpop.f32.mrb[0].mxu0
  %v209 = vpop.f32.mrb[0].mxu0
  %v210 = vadd.f32 0.0, %v209
  %v211 = vpop.f32.mrb[0].mxu0
  %212 = vdwg.mxu0
  %213 = vst [vmem:[%s2] sm:$0xff] %v199
  %214 = vst [vmem:[%s2 + $0x8] sm:$0xff] %v202
  %215 = vst [vmem:[%s2 + $0x10] sm:$0xff] %v207
  %216 = vst [vmem:[%s2 + $0x18] sm:$0xff] %v210
  // Predicated region
  $region10: #{encode_image.13} parent=0 // pred_check
    _
  $region11: #{encode_image.13} parent=0 // pred_check_branch
    %218 = sbr.rel (0) target = $region13
  $region12: #{encode_image.13} parent=0 // pred_region
    _
  $region13: #{encode_image.13} parent=0 // pred_fallthru
    _
  // Predicated region
  $region14: #{encode_image.13} parent=0 // pred_check
    _
  $region15: #{encode_image.13} parent=0 // pred_check_branch
    %220 = sbr.rel (0) target = $region17
  $region16: #{encode_image.13} parent=0 // pred_region
    _
  $region17: #{encode_image.13} parent=0 // pred_fallthru
    _

// kernel: encode_image.16
$region0: #{encode_image.16}
  #allocation0 [shape = 'u32[]', space=smem, size = 0x4, offset = 0x4, fixed_abs, tag = 'smem constant byte address 0x4 - core index']
  #allocation1 [shape = 'u32[144,128]{1,0:T(1,128)}', space=vmem, size = 0x12000, scoped, tag = 'internal scratch']
  %s0 = inlined_call_operand.vmem [shape: bf16[2,17,192], index: 0, kind: input, shape index: {}]
  %s1 = inlined_call_operand.vmem [shape: bf16[2,17,64], index: 1, kind: output, shape index: {}]
  %s2 = sld [smem:[#allocation0]]
  $region37: #{encode_image.16} parent=0
    _
  %s4 = ssub.s32 1, %s2
  %s5 = scalar_select 0, %s4, %s2
  loop: start=0, step=1, limit=4
  $region2: #{encode_image.16} parent=0 // loop_pre_header
    _
  $region3: #{encode_image.16} parent=0 // loop_header
    %s7 = sphi 0, %s11
    %p8 = scmp.ge.s32.totalorder %s7, 4
    %s17 = sphi 0, %s19
    %s20 = sphi 0, %s17
    %s21 = sphi 0, %s20
    %s37 = sphi 0, %s21
    %s43 = sphi 0, %s45
    %s46 = sphi 0, %s43
    %s47 = sphi 0, %s46
    %s63 = sphi 0, %s47
  $region4: #{encode_image.16} parent=0 // loop_header_branch
    %10 = sbr.rel (%p8) target = $region8
  $region5: #{encode_image.16} parent=0 // loop_body
    %s12 = ssub.s32 %s7, 1
    %s13 = ssub.s32 %s7, 2
    %s14 = sadd.s32 %s7, 1
    %s15 = ssub.s32 %s7, %s14
    %p16 = scmp.eq.s32.totalorder %s15, 0
    %s18 = sadd.s32 %s17, 1
    %s19 = scalar_select %p16, %s17, %s18
    %p22 = pneg %p16
    %p23 = scmp.eq.s32.totalorder %s7, 1
    %p24 = por %p22, %p23
    %p25 = scmp.ne.s32.totalorder %s17, %s20
    %p26 = scmp.eq.s32.totalorder %s7, 0
    %p27 = por %p25, %p26
    %p28 = scmp.ne.s32.totalorder %s17, %s20
    %p29 = scmp.eq.s32.totalorder %s12, 1
    %p30 = por %p28, %p29
    %p31 = scmp.ne.s32.totalorder %s20, %s21
    %p32 = scmp.eq.s32.totalorder %s12, 0
    %p33 = por %p31, %p32
    %p34 = scmp.ne.s32.totalorder %s20, %s21
    %p35 = scmp.eq.s32.totalorder %s13, 1
    %p36 = por %p34, %p35
    %p38 = scmp.ne.s32.totalorder %s21, %s37
    %p39 = scmp.eq.s32.totalorder %s13, 0
    %p40 = por %p38, %p39
    %s41 = ssub.s32 %s7, %s14
    %p42 = scmp.eq.s32.totalorder %s41, 0
    %s44 = sadd.s32 %s43, 1
    %s45 = scalar_select %p42, %s43, %s44
    %p48 = pneg %p42
    %p49 = scmp.eq.s32.totalorder %s7, 1
    %p50 = por %p48, %p49
    %p51 = scmp.ne.s32.totalorder %s43, %s46
    %p52 = scmp.eq.s32.totalorder %s7, 0
    %p53 = por %p51, %p52
    %p54 = scmp.ne.s32.totalorder %s43, %s46
    %p55 = scmp.eq.s32.totalorder %s12, 1
    %p56 = por %p54, %p55
    %p57 = scmp.ne.s32.totalorder %s46, %s47
    %p58 = scmp.eq.s32.totalorder %s12, 0
    %p59 = por %p57, %p58
    %p60 = scmp.ne.s32.totalorder %s46, %s47
    %p61 = scmp.eq.s32.totalorder %s13, 1
    %p62 = por %p60, %p61
    %p64 = scmp.ne.s32.totalorder %s47, %s63
    %p65 = scmp.eq.s32.totalorder %s13, 0
    %p66 = por %p64, %p65
    %p67 = scmp.le.s32.totalorder 1, %s7
    %p68 = scmp.lt.s32.totalorder %s7, 3
    %p69 = pnand %p67, %p68
    %p70 = pneg %p69
    // Predicated region
    $region9: #{encode_image.16} parent=5 // pred_check
      _
    $region10: #{encode_image.16} parent=5 // pred_check_branch
      %72 = sbr.rel (%p69) target = $region12
    $region11: #{encode_image.16} parent=5 // pred_region
      %s73 = ssub.s32 %s7, 1
    $region12: #{encode_image.16} parent=5 // pred_fallthru
      _
    %p74 = scmp.lt.s32.totalorder %s7, 2
    // Predicated region
    $region13: #{encode_image.16} parent=5 // pred_check
      %p75 = pneg %p74
    $region14: #{encode_image.16} parent=5 // pred_check_branch
      %77 = sbr.rel (%p75) target = $region16
    $region15: #{encode_image.16} parent=5 // pred_region
      // Predicated region
      $region17: #{encode_image.16} parent=15 // pred_check
        %p78 = pneg %p27
      $region18: #{encode_image.16} parent=15 // pred_check_branch
        %80 = sbr.rel (%p78) target = $region20
      $region19: #{encode_image.16} parent=15 // pred_region
        %p81 = scmp.lt.s32.totalorder %s7, 1
        %s82 = scalar_select %p81, %s7, 1
        %s83 = smul.addr %s82, 6
        %s84 = smul.addr %s83, 4
        %s85 = scalar_lea.vmem %s0, %s84
      $region20: #{encode_image.16} parent=15 // pred_fallthru
        _
    $region16: #{encode_image.16} parent=5 // pred_fallthru
      _
    %p86 = scmp.le.s32.totalorder 1, %s7
    %p87 = scmp.lt.s32.totalorder %s7, 3
    %p88 = pnand %p86, %p87
    %p89 = pneg %p88
    // Predicated region
    $region21: #{encode_image.16} parent=5 // pred_check
      _
    $region22: #{encode_image.16} parent=5 // pred_check_branch
      %91 = sbr.rel (%p88) target = $region24
    $region23: #{encode_image.16} parent=5 // pred_region
      %s92 = ssub.s32 %s7, 1
      %p93 = scmp.lt.s32.totalorder %s12, 1
      %s94 = scalar_select %p93, %s12, 1
      %s95 = smul.addr %s94, 6
      %s96 = smul.addr %s95, 4
      %s97 = scalar_lea.vmem %s0, %s96
      %p98 = pneg %p33
      %p99 = pneg %p30
      %p100 = pneg %p59
      %p101 = pneg %p56
      %p102 = scmp.lt.s32.totalorder %s12, 1
      %s103 = scalar_select %p102, %s12, 1
      %s104 = smul.addr %s103, 3
      %s105 = smul.addr %s104, 4
      %s106 = scalar_lea.vmem %s1, %s105
      %p107 = scmp.lt.s32.totalorder %s12, 1
      %s108 = scalar_select %p107, %s12, 1
      %s109 = smul.addr %s108, 6
      %s110 = smul.addr %s109, 4
      %s111 = scalar_lea.vmem %s0, %s110
      %p112 = scmp.lt.s32.totalorder %s12, 1
      %s113 = scalar_select %p112, %s12, 1
      %s114 = smul.addr %s113, 3
      %s115 = smul.addr %s114, 4
      %s116 = scalar_lea.vmem %s1, %s115
      %v118 = vld [vmem:[%s111] sm:$0xff]
      %v119 = vld [vmem:[%s111 + $0x8] sm:$0xff]
      %v120 = vld [vmem:[%s111 + $0x10] sm:$0x11]
      %v124 = vunpack.c.l.b16 %v118
      %v125 = vunpack.c.l.b16 %v119
      %v126 = vunpack.c.l.b16 %v120
      %v127 = vpack.c.b16 %v125, %v124
      %v128 = vpack.c.b16 %v126, %v126
      %129 = vrot.lane.b32.xlu0 %v127, 64
      %v130 = vpop.permute.xlu0 %129
      %131 = vrot.lane.b32.xlu0 %v128, 64
      %v132 = vpop.permute.xlu0 %131
      %vm133 = vcmask 130048
      %v135 = vsel %vm133, %v127, 0
      %v138 = vsel %vm133, %v128, 0
      %v141 = vsel %vm133, %v130, 0
      %v144 = vsel %vm133, %v132, 0
      %146 = vmatprep.subr.bf16.mxu0 0
      %147 = vmatpush1.bf16.xpose.msra.mxu0 %v141
      %148 = vmatprep.subr.bf16.mxu0 0
      %149 = vmatpush1.bf16.xpose.msra.mxu0 %v144
      %150 = vmatprep.subr.bf16.mxu0 0
      %151 = vmatpush1.bf16.xpose.msra.mxu0 0
      %152 = vmatprep.subr.bf16.mxu0 0
      %153 = vmatpush1.bf16.xpose.msra.mxu0 0
      %154 = vmatprep.subr.bf16.mxu0 0
      %155 = vmatpush1.bf16.xpose.msra.mxu0 0
      %156 = vmatprep.subr.bf16.mxu0 0
      %157 = vmatpush1.bf16.xpose.msra.mxu0 0
      %158 = vmatprep.subr.bf16.mxu0 0
      %159 = vmatpush1.bf16.xpose.msra.mxu0 0
      %160 = vmatprep.subr.bf16.mxu0 0
      %161 = vmatpush1.bf16.xpose.msra.mxu0 0
      %162 = vmatprep.subr.bf16.mxu0 0
      %163 = vmatpush1.bf16.xpose.msra.mxu0 0
      %164 = vmatprep.subr.bf16.mxu0 0
      %165 = vmatpush1.bf16.xpose.msra.mxu0 0
      %166 = vmatprep.subr.bf16.mxu0 0
      %167 = vmatpush1.bf16.xpose.msra.mxu0 0
      %168 = vmatprep.subr.bf16.mxu0 0
      %169 = vmatpush1.bf16.xpose.msra.mxu0 0
      %170 = vmatprep.subr.bf16.mxu0 0
      %171 = vmatpush1.bf16.xpose.msra.mxu0 0
      %172 = vmatprep.subr.bf16.mxu0 0
      %173 = vmatpush1.bf16.xpose.msra.mxu0 0
      %174 = vmatprep.subr.bf16.mxu0 0
      %175 = vmatpush1.bf16.xpose.msra.mxu0 0
      %176 = vmatprep.subr.bf16.mxu0 0
      %177 = vmatpush1.bf16.xpose.msra.mxu0 0
      %178 = vmatprep.mubr.bf16.mxu0 0
      %179 = vmatmul.mubr.bf16.gmra.mrb[0].mxu0 %v135
      %v180 = vpop.f32.mrb[0].mxu0
      %v181 = vadd.f32 0.0, %v180
      %v182 = vpop.f32.mrb[0].mxu0
      %v183 = vpop.f32.mrb[0].mxu0
      %v184 = vadd.f32 0.0, %v183
      %v185 = vpop.f32.mrb[0].mxu0
      %186 = vmatprep.mubr.bf16.mxu0 0
      %187 = vmatmul.mubr.bf16.gmra.mrb[0].mxu0 %v138
      %v188 = vpop.f32.mrb[0].mxu0
      %v189 = vadd.f32 0.0, %v188
      %v190 = vpop.f32.mrb[0].mxu0
      %v191 = vpop.f32.mrb[0].mxu0
      %v192 = vpop.f32.mrb[0].mxu0
      %193 = vdwg.mxu0
      %v194 = vmul.f32 %v181, 0.25
      %v195 = vmul.f32 %v184, 0.25
      %v196 = vmul.f32 %v189, 0.25
      %vm197 = vcmask 138240
      %v198 = vsel %vm197, %v194, -inf
      %199 = vmax.xlane.f32.xlu0 %v198
      %v200 = vpop.xlane.xlu0 %199
      %v201 = vsel %vm197, %v195, -inf
      %202 = vmax.xlane.f32.xlu0 %v201
      %v203 = vpop.xlane.xlu0 %202
      %vm204 = vcmask 131072
      %v205 = vsel %vm204, %v196, -inf
      %206 = vmax.xlane.f32.xlu0 %v205
      %v207 = vpop.xlane.xlu0 %206
      %v208 = vsub.f32 %v194, %v200
      %v209 = vsub.f32 %v195, %v203
      %v210 = vsub.f32 %v196, %v207
      %v211 = vmul.f32 %v208, 1.442695
      %v212 = vpow.pop %v211
      %v213 = vmul.f32 %v209, 1.442695
      %v214 = vpow.pop %v213
      %v215 = vmul.f32 %v210, 1.442695
      %v216 = vpow.pop %v215
      %v217 = vsel %vm197, %v212, 0.0
      %218 = vadd.xlane.f32.xlu0 %v217
      %v219 = vpop.xlane.xlu0 %218
      %v220 = vsel %vm197, %v214, 0.0
      %221 = vadd.xlane.f32.xlu0 %v220
      %v222 = vpop.xlane.xlu0 %221
      %v223 = vsel %vm204, %v216, 0.0
      %224 = vadd.xlane.f32.xlu0 %v223
      %v225 = vpop.xlane.xlu0 %224
      %v226 = vrcp.pop %v219
      %v227 = vrcp.pop %v222
      %v228 = vrcp.pop %v225
      %v229 = vmul.f32 %v212, %v226
      %v230 = vmul.f32 %v214, %v227
      %v231 = vmul.f32 %v216, %v228
      %v232 = vpack.c.bf16 %v230, %v229
      %v233 = vpack.c.bf16 %v231, %v231
      %v234 = vunpack.c.h.b16 %v118
      %v235 = vunpack.c.h.b16 %v119
      %v236 = vunpack.c.h.b16 %v120
      %v237 = vpack.c.b16 %v235, %v234
      %v238 = vpack.c.b16 %v236, %v236
      %v241 = vsel %vm197, %v232, 0
      %v244 = vsel %vm197, %v233, 0
      %vm246 = vcmask 1040384
      %v247 = vsel 0, 4294967295, 65535
      %v248 = vsel %vm246, %v247, 0
      %v250 = vand.u32 %v238, %v248
      %252 = vmatprep.subr.bf16.mxu0 0
      %253 = vmatpush1.bf16.msra.mxu0 %v237
      %254 = vmatprep.subr.bf16.mxu0 0
      %255 = vmatpush1.bf16.msra.mxu0 %v250
      %256 = vmatprep.subr.bf16.mxu0 0
      %257 = vmatpush1.bf16.msra.mxu0 0
      %258 = vmatprep.subr.bf16.mxu0 0
      %259 = vmatpush1.bf16.msra.mxu0 0
      %260 = vmatprep.subr.bf16.mxu0 0
      %261 = vmatpush1.bf16.msra.mxu0 0
      %262 = vmatprep.subr.bf16.mxu0 0
      %263 = vmatpush1.bf16.msra.mxu0 0
      %264 = vmatprep.subr.bf16.mxu0 0
      %265 = vmatpush1.bf16.msra.mxu0 0
      %266 = vmatprep.subr.bf16.mxu0 0
      %267 = vmatpush1.bf16.msra.mxu0 0
      %268 = vmatprep.subr.bf16.mxu0 0
      %269 = vmatpush1.bf16.msra.mxu0 0
      %270 = vmatprep.subr.bf16.mxu0 0
      %271 = vmatpush1.bf16.msra.mxu0 0
      %272 = vmatprep.subr.bf16.mxu0 0
      %273 = vmatpush1.bf16.msra.mxu0 0
      %274 = vmatprep.subr.bf16.mxu0 0
      %275 = vmatpush1.bf16.msra.mxu0 0
      %276 = vmatprep.subr.bf16.mxu0 0
      %277 = vmatpush1.bf16.msra.mxu0 0
      %278 = vmatprep.subr.bf16.mxu0 0
      %279 = vmatpush1.bf16.msra.mxu0 0
      %280 = vmatprep.subr.bf16.mxu0 0
      %281 = vmatpush1.bf16.msra.mxu0 0
      %282 = vmatprep.subr.bf16.mxu0 0
      %283 = vmatpush1.bf16.msra.mxu0 0
      %284 = vmatprep.mubr.bf16.mxu0 0
      %285 = vmatmul.mubr.bf16.gmra.mrb[0].mxu0 %v241
      %v286 = vpop.f32.mrb[0].mxu0
      %v287 = vadd.f32 0.0, %v286
      %v288 = vpop.f32.mrb[0].mxu0
      %v289 = vpop.f32.mrb[0].mxu0
      %v290 = vadd.f32 0.0, %v289
      %v291 = vpop.f32.mrb[0].mxu0
      %292 = vmatprep.mubr.bf16.mxu0 0
      %293 = vmatmul.mubr.bf16.gmra.mrb[0].mxu0 %v244
      %v294 = vpop.f32.mrb[0].mxu0
      %v295 = vadd.f32 0.0, %v294
      %v296 = vpop.f32.mrb[0].mxu0
      %v297 = vpop.f32.mrb[0].mxu0
      %v298 = vpop.f32.mrb[0].mxu0
      %299 = vdwg.mxu0
      %v300 = vpack.c.bf16 %v290, %v287
      %v301 = vpack.c.bf16 %v295, %v295
      %v304 = vunpack.c.l.b16 %v300
      %v305 = vunpack.c.h.b16 %v300
      %v306 = vunpack.c.l.b16 %v301
      %v307 = vpack.c.b16 %v304, %v304
      %v308 = vpack.c.b16 %v305, %v305
      %v309 = vpack.c.b16 %v306, %v306
      %vm313 = vcmask 125952
      %314 = vst.msk [vmem:[%s116] sm:$0xf] %vm313, %v307
      %315 = vst.msk [vmem:[%s116 + $0x4] sm:$0xf] %vm313, %v308
      %vm316 = vcmask 122880
      %vm317 = vsmask.f32 256
      %vm318 = vmand %vm316, %vm317
      %v319 = vld [vmem:[%s116 + $0x8] sm:$0x1]
      %v320 = vsel %vm318, %v309, %v319
      %321 = vst [vmem:[%s116 + $0x8] sm:$0x1] %v320
      %322 = vrot.lane.b32.xlu0 %v127, 112
      %v323 = vpop.permute.xlu0 %322
      %324 = vrot.lane.b32.xlu0 %v128, 112
      %v325 = vpop.permute.xlu0 %324
      %326 = vrot.lane.b32.xlu0 %v127, 48
      %v327 = vpop.permute.xlu0 %326
      %328 = vrot.lane.b32.xlu0 %v128, 48
      %v329 = vpop.permute.xlu0 %328
      %v331 = vsel %vm133, %v323, 0
      %v334 = vsel %vm133, %v325, 0
      %v337 = vsel %vm133, %v327, 0
      %v340 = vsel %vm133, %v329, 0
      %342 = vmatprep.subr.bf16.mxu0 0
      %343 = vmatpush1.bf16.xpose.msra.mxu0 %v337
      %344 = vmatprep.subr.bf16.mxu0 0
      %345 = vmatpush1.bf16.xpose.msra.mxu0 %v340
      %346 = vmatprep.subr.bf16.mxu0 0
      %347 = vmatpush1.bf16.xpose.msra.mxu0 0
      %348 = vmatprep.subr.bf16.mxu0 0
      %349 = vmatpush1.bf16.xpose.msra.mxu0 0
      %350 = vmatprep.subr.bf16.mxu0 0
      %351 = vmatpush1.bf16.xpose.msra.mxu0 0
      %352 = vmatprep.subr.bf16.mxu0 0
      %353 = vmatpush1.bf16.xpose.msra.mxu0 0
      %354 = vmatprep.subr.bf16.mxu0 0
      %355 = vmatpush1.bf16.xpose.msra.mxu0 0
      %356 = vmatprep.subr.bf16.mxu0 0
      %357 = vmatpush1.bf16.xpose.msra.mxu0 0
      %358 = vmatprep.subr.bf16.mxu0 0
      %359 = vmatpush1.bf16.xpose.msra.mxu0 0
      %360 = vmatprep.subr.bf16.mxu0 0
      %361 = vmatpush1.bf16.xpose.msra.mxu0 0
      %362 = vmatprep.subr.bf16.mxu0 0
      %363 = vmatpush1.bf16.xpose.msra.mxu0 0
      %364 = vmatprep.subr.bf16.mxu0 0
      %365 = vmatpush1.bf16.xpose.msra.mxu0 0
      %366 = vmatprep.subr.bf16.mxu0 0
      %367 = vmatpush1.bf16.xpose.msra.mxu0 0
      %368 = vmatprep.subr.bf16.mxu0 0
      %369 = vmatpush1.bf16.xpose.msra.mxu0 0
      %370 = vmatprep.subr.bf16.mxu0 0
      %371 = vmatpush1.bf16.xpose.msra.mxu0 0
      %372 = vmatprep.subr.bf16.mxu0 0
      %373 = vmatpush1.bf16.xpose.msra.mxu0 0
      %374 = vmatprep.mubr.bf16.mxu0 0
      %375 = vmatmul.mubr.bf16.gmra.mrb[0].mxu0 %v331
      %v376 = vpop.f32.mrb[0].mxu0
      %v377 = vadd.f32 0.0, %v376
      %v378 = vpop.f32.mrb[0].mxu0
      %v379 = vpop.f32.mrb[0].mxu0
      %v380 = vadd.f32 0.0, %v379
      %v381 = vpop.f32.mrb[0].mxu0
      %382 = vmatprep.mubr.bf16.mxu0 0
      %383 = vmatmul.mubr.bf16.gmra.mrb[0].mxu0 %v334
      %v384 = vpop.f32.mrb[0].mxu0
      %v385 = vadd.f32 0.0, %v384
      %v386 = vpop.f32.mrb[0].mxu0
      %v387 = vpop.f32.mrb[0].mxu0
      %v388 = vpop.f32.mrb[0].mxu0
      %389 = vdwg.mxu0
      %v390 = vmul.f32 %v377, 0.25
      %v391 = vmul.f32 %v380, 0.25
      %v392 = vmul.f32 %v385, 0.25
      %v393 = vsel %vm197, %v390, -inf
      %394 = vmax.xlane.f32.xlu0 %v393
      %v395 = vpop.xlane.xlu0 %394
      %v396 = vsel %vm197, %v391, -inf
      %397 = vmax.xlane.f32.xlu0 %v396
      %v398 = vpop.xlane.xlu0 %397
      %v399 = vsel %vm204, %v392, -inf
      %400 = vmax.xlane.f32.xlu0 %v399
      %v401 = vpop.xlane.xlu0 %400
      %v402 = vsub.f32 %v390, %v395
      %v403 = vsub.f32 %v391, %v398
      %v404 = vsub.f32 %v392, %v401
      %v405 = vmul.f32 %v402, 1.442695
      %v406 = vpow.pop %v405
      %v407 = vmul.f32 %v403, 1.442695
      %v408 = vpow.pop %v407
      %v409 = vmul.f32 %v404, 1.442695
      %v410 = vpow.pop %v409
      %v411 = vsel %vm197, %v406, 0.0
      %412 = vadd.xlane.f32.xlu0 %v411
      %v413 = vpop.xlane.xlu0 %412
      %v414 = vsel %vm197, %v408, 0.0
      %415 = vadd.xlane.f32.xlu0 %v414
      %v416 = vpop.xlane.xlu0 %415
      %v417 = vsel %vm204, %v410, 0.0
      %418 = vadd.xlane.f32.xlu0 %v417
      %v419 = vpop.xlane.xlu0 %418
      %v420 = vrcp.pop %v413
      %v421 = vrcp.pop %v416
      %v422 = vrcp.pop %v419
      %v423 = vmul.f32 %v406, %v420
      %v424 = vmul.f32 %v408, %v421
      %v425 = vmul.f32 %v410, %v422
      %v426 = vpack.c.bf16 %v424, %v423
      %v427 = vpack.c.bf16 %v425, %v425
      %428 = vrot.lane.b32.xlu0 %v237, 112
      %v429 = vpop.permute.xlu0 %428
      %430 = vrot.lane.b32.xlu0 %v238, 112
      %v431 = vpop.permute.xlu0 %430
      %v434 = vsel %vm197, %v426, 0
      %v437 = vsel %vm197, %v427, 0
      %v440 = vand.u32 %v431, %v248
      %442 = vmatprep.subr.bf16.mxu0 0
      %443 = vmatpush1.bf16.msra.mxu0 %v429
      %444 = vmatprep.subr.bf16.mxu0 0
      %445 = vmatpush1.bf16.msra.mxu0 %v440
      %446 = vmatprep.subr.bf16.mxu0 0
      %447 = vmatpush1.bf16.msra.mxu0 0
      %448 = vmatprep.subr.bf16.mxu0 0
      %449 = vmatpush1.bf16.msra.mxu0 0
      %450 = vmatprep.subr.bf16.mxu0 0
      %451 = vmatpush1.bf16.msra.mxu0 0
      %452 = vmatprep.subr.bf16.mxu0 0
      %453 = vmatpush1.bf16.msra.mxu0 0
      %454 = vmatprep.subr.bf16.mxu0 0
      %455 = vmatpush1.bf16.msra.mxu0 0
      %456 = vmatprep.subr.bf16.mxu0 0
      %457 = vmatpush1.bf16.msra.mxu0 0
      %458 = vmatprep.subr.bf16.mxu0 0
      %459 = vmatpush1.bf16.msra.mxu0 0
      %460 = vmatprep.subr.bf16.mxu0 0
      %461 = vmatpush1.bf16.msra.mxu0 0
      %462 = vmatprep.subr.bf16.mxu0 0
      %463 = vmatpush1.bf16.msra.mxu0 0
      %464 = vmatprep.subr.bf16.mxu0 0
      %465 = vmatpush1.bf16.msra.mxu0 0
      %466 = vmatprep.subr.bf16.mxu0 0
      %467 = vmatpush1.bf16.msra.mxu0 0
      %468 = vmatprep.subr.bf16.mxu0 0
      %469 = vmatpush1.bf16.msra.mxu0 0
      %470 = vmatprep.subr.bf16.mxu0 0
      %471 = vmatpush1.bf16.msra.mxu0 0
      %472 = vmatprep.subr.bf16.mxu0 0
      %473 = vmatpush1.bf16.msra.mxu0 0
      %474 = vmatprep.mubr.bf16.mxu0 0
      %475 = vmatmul.mubr.bf16.gmra.mrb[0].mxu0 %v434
      %v476 = vpop.f32.mrb[0].mxu0
      %v477 = vadd.f32 0.0, %v476
      %v478 = vpop.f32.mrb[0].mxu0
      %v479 = vpop.f32.mrb[0].mxu0
      %v480 = vadd.f32 0.0, %v479
      %v481 = vpop.f32.mrb[0].mxu0
      %482 = vmatprep.mubr.bf16.mxu0 0
      %483 = vmatmul.mubr.bf16.gmra.mrb[0].mxu0 %v437
      %v484 = vpop.f32.mrb[0].mxu0
      %v485 = vadd.f32 0.0, %v484
      %v486 = vpop.f32.mrb[0].mxu0
      %v487 = vpop.f32.mrb[0].mxu0
      %v488 = vpop.f32.mrb[0].mxu0
      %489 = vdwg.mxu0
      %v490 = vpack.c.bf16 %v480, %v477
      %v491 = vpack.c.bf16 %v485, %v485
      %v494 = vunpack.c.l.b16 %v490
      %v495 = vunpack.c.h.b16 %v490
      %v496 = vunpack.c.l.b16 %v491
      %v497 = vpack.c.b16 %v494, %v494
      %v498 = vpack.c.b16 %v495, %v495
      %v499 = vpack.c.b16 %v496, %v496
      %500 = vrot.lane.b32.xlu0 %v497, 16
      %v501 = vpop.permute.xlu0 %500
      %502 = vrot.lane.b32.xlu0 %v498, 16
      %v503 = vpop.permute.xlu0 %502
      %504 = vrot.lane.b32.xlu0 %v499, 16
      %v505 = vpop.permute.xlu0 %504
      %vm509 = vcmask 257152
      %510 = vst.msk [vmem:[%s116] sm:$0xf] %vm509, %v501
      %511 = vst.msk [vmem:[%s116 + $0x4] sm:$0xf] %vm509, %v503
      %vm512 = vcmask 254080
      %vm513 = vmand %vm512, %vm317
      %v514 = vld [vmem:[%s116 + $0x8] sm:$0x1]
      %v515 = vsel %vm513, %v505, %v514
      %516 = vst [vmem:[%s116 + $0x8] sm:$0x1] %v515
      %517 = vrot.lane.b32.xlu0 %v127, 96
      %v518 = vpop.permute.xlu0 %517
      %519 = vrot.lane.b32.xlu0 %v128, 96
      %v520 = vpop.permute.xlu0 %519
      %521 = vrot.lane.b32.xlu0 %v127, 32
      %v522 = vpop.permute.xlu0 %521
      %523 = vrot.lane.b32.xlu0 %v128, 32
      %v524 = vpop.permute.xlu0 %523
      %v526 = vsel %vm133, %v518, 0
      %v529 = vsel %vm133, %v520, 0
      %v532 = vsel %vm133, %v522, 0
      %v535 = vsel %vm133, %v524, 0
      %537 = vmatprep.subr.bf16.mxu0 0
      %538 = vmatpush1.bf16.xpose.msra.mxu0 %v532
      %539 = vmatprep.subr.bf16.mxu0 0
      %540 = vmatpush1.bf16.xpose.msra.mxu0 %v535
      %541 = vmatprep.subr.bf16.mxu0 0
      %542 = vmatpush1.bf16.xpose.msra.mxu0 0
      %543 = vmatprep.subr.bf16.mxu0 0
      %544 = vmatpush1.bf16.xpose.msra.mxu0 0
      %545 = vmatprep.subr.bf16.mxu0 0
      %546 = vmatpush1.bf16.xpose.msra.mxu0 0
      %547 = vmatprep.subr.bf16.mxu0 0
      %548 = vmatpush1.bf16.xpose.msra.mxu0 0
      %549 = vmatprep.subr.bf16.mxu0 0
      %550 = vmatpush1.bf16.xpose.msra.mxu0 0
      %551 = vmatprep.subr.bf16.mxu0 0
      %552 = vmatpush1.bf16.xpose.msra.mxu0 0
      %553 = vmatprep.subr.bf16.mxu0 0
      %554 = vmatpush1.bf16.xpose.msra.mxu0 0
      %555 = vmatprep.subr.bf16.mxu0 0
      %556 = vmatpush1.bf16.xpose.msra.mxu0 0
      %557 = vmatprep.subr.bf16.mxu0 0
      %558 = vmatpush1.bf16.xpose.msra.mxu0 0
      %559 = vmatprep.subr.bf16.mxu0 0
      %560 = vmatpush1.bf16.xpose.msra.mxu0 0
      %561 = vmatprep.subr.bf16.mxu0 0
      %562 = vmatpush1.bf16.xpose.msra.mxu0 0
      %563 = vmatprep.subr.bf16.mxu0 0
      %564 = vmatpush1.bf16.xpose.msra.mxu0 0
      %565 = vmatprep.subr.bf16.mxu0 0
      %566 = vmatpush1.bf16.xpose.msra.mxu0 0
      %567 = vmatprep.subr.bf16.mxu0 0
      %568 = vmatpush1.bf16.xpose.msra.mxu0 0
      %569 = vmatprep.mubr.bf16.mxu0 0
      %570 = vmatmul.mubr.bf16.gmra.mrb[0].mxu0 %v526
      %v571 = vpop.f32.mrb[0].mxu0
      %v572 = vadd.f32 0.0, %v571
      %v573 = vpop.f32.mrb[0].mxu0
      %v574 = vpop.f32.mrb[0].mxu0
      %v575 = vadd.f32 0.0, %v574
      %v576 = vpop.f32.mrb[0].mxu0
      %577 = vmatprep.mubr.bf16.mxu0 0
      %578 = vmatmul.mubr.bf16.gmra.mrb[0].mxu0 %v529
      %v579 = vpop.f32.mrb[0].mxu0
      %v580 = vadd.f32 0.0, %v579
      %v581 = vpop.f32.mrb[0].mxu0
      %v582 = vpop.f32.mrb[0].mxu0
      %v583 = vpop.f32.mrb[0].mxu0
      %584 = vdwg.mxu0
      %v585 = vmul.f32 %v572, 0.25
      %v586 = vmul.f32 %v575, 0.25
      %v587 = vmul.f32 %v580, 0.25
      %v588 = vsel %vm197, %v585, -inf
      %589 = vmax.xlane.f32.xlu0 %v588
      %v590 = vpop.xlane.xlu0 %589
      %v591 = vsel %vm197, %v586, -inf
      %592 = vmax.xlane.f32.xlu0 %v591
      %v593 = vpop.xlane.xlu0 %592
      %v594 = vsel %vm204, %v587, -inf
      %595 = vmax.xlane.f32.xlu0 %v594
      %v596 = vpop.xlane.xlu0 %595
      %v597 = vsub.f32 %v585, %v590
      %v598 = vsub.f32 %v586, %v593
      %v599 = vsub.f32 %v587, %v596
      %v600 = vmul.f32 %v597, 1.442695
      %v601 = vpow.pop %v600
      %v602 = vmul.f32 %v598, 1.442695
      %v603 = vpow.pop %v602
      %v604 = vmul.f32 %v599, 1.442695
      %v605 = vpow.pop %v604
      %v606 = vsel %vm197, %v601, 0.0
      %607 = vadd.xlane.f32.xlu0 %v606
      %v608 = vpop.xlane.xlu0 %607
      %v609 = vsel %vm197, %v603, 0.0
      %610 = vadd.xlane.f32.xlu0 %v609
      %v611 = vpop.xlane.xlu0 %610
      %v612 = vsel %vm204, %v605, 0.0
      %613 = vadd.xlane.f32.xlu0 %v612
      %v614 = vpop.xlane.xlu0 %613
      %v615 = vrcp.pop %v608
      %v616 = vrcp.pop %v611
      %v617 = vrcp.pop %v614
      %v618 = vmul.f32 %v601, %v615
      %v619 = vmul.f32 %v603, %v616
      %v620 = vmul.f32 %v605, %v617
      %v621 = vpack.c.bf16 %v619, %v618
      %v622 = vpack.c.bf16 %v620, %v620
      %623 = vrot.lane.b32.xlu0 %v237, 96
      %v624 = vpop.permute.xlu0 %623
      %625 = vrot.lane.b32.xlu0 %v238, 96
      %v626 = vpop.permute.xlu0 %625
      %v629 = vsel %vm197, %v621, 0
      %v632 = vsel %vm197, %v622, 0
      %v635 = vand.u32 %v626, %v248
      %637 = vmatprep.subr.bf16.mxu0 0
      %638 = vmatpush1.bf16.msra.mxu0 %v624
      %639 = vmatprep.subr.bf16.mxu0 0
      %640 = vmatpush1.bf16.msra.mxu0 %v635
      %641 = vmatprep.subr.bf16.mxu0 0
      %642 = vmatpush1.bf16.msra.mxu0 0
      %643 = vmatprep.subr.bf16.mxu0 0
      %644 = vmatpush1.bf16.msra.mxu0 0
      %645 = vmatprep.subr.bf16.mxu0 0
      %646 = vmatpush1.bf16.msra.mxu0 0
      %647 = vmatprep.subr.bf16.mxu0 0
      %648 = vmatpush1.bf16.msra.mxu0 0
      %649 = vmatprep.subr.bf16.mxu0 0
      %650 = vmatpush1.bf16.msra.mxu0 0
      %651 = vmatprep.subr.bf16.mxu0 0
      %652 = vmatpush1.bf16.msra.mxu0 0
      %653 = vmatprep.subr.bf16.mxu0 0
      %654 = vmatpush1.bf16.msra.mxu0 0
      %655 = vmatprep.subr.bf16.mxu0 0
      %656 = vmatpush1.bf16.msra.mxu0 0
      %657 = vmatprep.subr.bf16.mxu0 0
      %658 = vmatpush1.bf16.msra.mxu0 0
      %659 = vmatprep.subr.bf16.mxu0 0
      %660 = vmatpush1.bf16.msra.mxu0 0
      %661 = vmatprep.subr.bf16.mxu0 0
      %662 = vmatpush1.bf16.msra.mxu0 0
      %663 = vmatprep.subr.bf16.mxu0 0
      %664 = vmatpush1.bf16.msra.mxu0 0
      %665 = vmatprep.subr.bf16.mxu0 0
      %666 = vmatpush1.bf16.msra.mxu0 0
      %667 = vmatprep.subr.bf16.mxu0 0
      %668 = vmatpush1.bf16.msra.mxu0 0
      %669 = vmatprep.mubr.bf16.mxu0 0
      %670 = vmatmul.mubr.bf16.gmra.mrb[0].mxu0 %v629
      %v671 = vpop.f32.mrb[0].mxu0
      %v672 = vadd.f32 0.0, %v671
      %v673 = vpop.f32.mrb[0].mxu0
      %v674 = vpop.f32.mrb[0].mxu0
      %v675 = vadd.f32 0.0, %v674
      %v676 = vpop.f32.mrb[0].mxu0
      %677 = vmatprep.mubr.bf16.mxu0 0
      %678 = vmatmul.mubr.bf16.gmra.mrb[0].mxu0 %v632
      %v679 = vpop.f32.mrb[0].mxu0
      %v680 = vadd.f32 0.0, %v679
      %v681 = vpop.f32.mrb[0].mxu0
      %v682 = vpop.f32.mrb[0].mxu0
      %v683 = vpop.f32.mrb[0].mxu0
      %684 = vdwg.mxu0
      %v685 = vpack.c.bf16 %v675, %v672
      %v686 = vpack.c.bf16 %v680, %v680
      %v689 = vunpack.c.l.b16 %v685
      %v690 = vunpack.c.h.b16 %v685
      %v691 = vunpack.c.l.b16 %v686
      %v692 = vpack.c.b16 %v689, %v689
      %v693 = vpack.c.b16 %v690, %v690
      %v694 = vpack.c.b16 %v691, %v691
      %695 = vrot.lane.b32.xlu0 %v692, 32
      %v696 = vpop.permute.xlu0 %695
      %697 = vrot.lane.b32.xlu0 %v693, 32
      %v698 = vpop.permute.xlu0 %697
      %699 = vrot.lane.b32.xlu0 %v694, 32
      %v700 = vpop.permute.xlu0 %699
      %vm704 = vcmask 388352
      %705 = vst.msk [vmem:[%s116] sm:$0xf] %vm704, %v696
      %706 = vst.msk [vmem:[%s116 + $0x4] sm:$0xf] %vm704, %v698
      %vm707 = vcmask 385280
      %vm708 = vmand %vm707, %vm317
      %v709 = vld [vmem:[%s116 + $0x8] sm:$0x1]
      %v710 = vsel %vm708, %v700, %v709
      %711 = vst [vmem:[%s116 + $0x8] sm:$0x1] %v710
      %712 = vrot.lane.b32.xlu0 %v127, 80
      %v713 = vpop.permute.xlu0 %712
      %714 = vrot.lane.b32.xlu0 %v128, 80
      %v715 = vpop.permute.xlu0 %714
      %716 = vrot.lane.b32.xlu0 %v127, 16
      %v717 = vpop.permute.xlu0 %716
      %718 = vrot.lane.b32.xlu0 %v128, 16
      %v719 = vpop.permute.xlu0 %718
      %v721 = vsel %vm133, %v713, 0
      %v724 = vsel %vm133, %v715, 0
      %v727 = vsel %vm133, %v717, 0
      %v730 = vsel %vm133, %v719, 0
      %732 = vmatprep.subr.bf16.mxu0 0
      %733 = vmatpush1.bf16.xpose.msra.mxu0 %v727
      %734 = vmatprep.subr.bf16.mxu0 0
      %735 = vmatpush1.bf16.xpose.msra.mxu0 %v730
      %736 = vmatprep.subr.bf16.mxu0 0
      %737 = vmatpush1.bf16.xpose.msra.mxu0 0
      %738 = vmatprep.subr.bf16.mxu0 0
      %739 = vmatpush1.bf16.xpose.msra.mxu0 0
      %740 = vmatprep.subr.bf16.mxu0 0
      %741 = vmatpush1.bf16.xpose.msra.mxu0 0
      %742 = vmatprep.subr.bf16.mxu0 0
      %743 = vmatpush1.bf16.xpose.msra.mxu0 0
      %744 = vmatprep.subr.bf16.mxu0 0
      %745 = vmatpush1.bf16.xpose.msra.mxu0 0
      %746 = vmatprep.subr.bf16.mxu0 0
      %747 = vmatpush1.bf16.xpose.msra.mxu0 0
      %748 = vmatprep.subr.bf16.mxu0 0
      %749 = vmatpush1.bf16.xpose.msra.mxu0 0
      %750 = vmatprep.subr.bf16.mxu0 0
      %751 = vmatpush1.bf16.xpose.msra.mxu0 0
      %752 = vmatprep.subr.bf16.mxu0 0
      %753 = vmatpush1.bf16.xpose.msra.mxu0 0
      %754 = vmatprep.subr.bf16.mxu0 0
      %755 = vmatpush1.bf16.xpose.msra.mxu0 0
      %756 = vmatprep.subr.bf16.mxu0 0
      %757 = vmatpush1.bf16.xpose.msra.mxu0 0
      %758 = vmatprep.subr.bf16.mxu0 0
      %759 = vmatpush1.bf16.xpose.msra.mxu0 0
      %760 = vmatprep.subr.bf16.mxu0 0
      %761 = vmatpush1.bf16.xpose.msra.mxu0 0
      %762 = vmatprep.subr.bf16.mxu0 0
      %763 = vmatpush1.bf16.xpose.msra.mxu0 0
      %764 = vmatprep.mubr.bf16.mxu0 0
      %765 = vmatmul.mubr.bf16.gmra.mrb[0].mxu0 %v721
      %v766 = vpop.f32.mrb[0].mxu0
      %v767 = vadd.f32 0.0, %v766
      %v768 = vpop.f32.mrb[0].mxu0
      %v769 = vpop.f32.mrb[0].mxu0
      %v770 = vadd.f32 0.0, %v769
      %v771 = vpop.f32.mrb[0].mxu0
      %772 = vmatprep.mubr.bf16.mxu0 0
      %773 = vmatmul.mubr.bf16.gmra.mrb[0].mxu0 %v724
      %v774 = vpop.f32.mrb[0].mxu0
      %v775 = vadd.f32 0.0, %v774
      %v776 = vpop.f32.mrb[0].mxu0
      %v777 = vpop.f32.mrb[0].mxu0
      %v778 = vpop.f32.mrb[0].mxu0
      %779 = vdwg.mxu0
      %v780 = vmul.f32 %v767, 0.25
      %v781 = vmul.f32 %v770, 0.25
      %v782 = vmul.f32 %v775, 0.25
      %v783 = vsel %vm197, %v780, -inf
      %784 = vmax.xlane.f32.xlu0 %v783
      %v785 = vpop.xlane.xlu0 %784
      %v786 = vsel %vm197, %v781, -inf
      %787 = vmax.xlane.f32.xlu0 %v786
      %v788 = vpop.xlane.xlu0 %787
      %v789 = vsel %vm204, %v782, -inf
      %790 = vmax.xlane.f32.xlu0 %v789
      %v791 = vpop.xlane.xlu0 %790
      %v792 = vsub.f32 %v780, %v785
      %v793 = vsub.f32 %v781, %v788
      %v794 = vsub.f32 %v782, %v791
      %v795 = vmul.f32 %v792, 1.442695
      %v796 = vpow.pop %v795
      %v797 = vmul.f32 %v793, 1.442695
      %v798 = vpow.pop %v797
      %v799 = vmul.f32 %v794, 1.442695
      %v800 = vpow.pop %v799
      %v801 = vsel %vm197, %v796, 0.0
      %802 = vadd.xlane.f32.xlu0 %v801
      %v803 = vpop.xlane.xlu0 %802
      %v804 = vsel %vm197, %v798, 0.0
      %805 = vadd.xlane.f32.xlu0 %v804
      %v806 = vpop.xlane.xlu0 %805
      %v807 = vsel %vm204, %v800, 0.0
      %808 = vadd.xlane.f32.xlu0 %v807
      %v809 = vpop.xlane.xlu0 %808
      %v810 = vrcp.pop %v803
      %v811 = vrcp.pop %v806
      %v812 = vrcp.pop %v809
      %v813 = vmul.f32 %v796, %v810
      %v814 = vmul.f32 %v798, %v811
      %v815 = vmul.f32 %v800, %v812
      %v816 = vpack.c.bf16 %v814, %v813
      %v817 = vpack.c.bf16 %v815, %v815
      %818 = vrot.lane.b32.xlu0 %v237, 80
      %v819 = vpop.permute.xlu0 %818
      %820 = vrot.lane.b32.xlu0 %v238, 80
      %v821 = vpop.permute.xlu0 %820
      %v824 = vsel %vm197, %v816, 0
      %v827 = vsel %vm197, %v817, 0
      %v830 = vand.u32 %v821, %v248
      %832 = vmatprep.subr.bf16.mxu0 0
      %833 = vmatpush1.bf16.msra.mxu0 %v819
      %834 = vmatprep.subr.bf16.mxu0 0
      %835 = vmatpush1.bf16.msra.mxu0 %v830
      %836 = vmatprep.subr.bf16.mxu0 0
      %837 = vmatpush1.bf16.msra.mxu0 0
      %838 = vmatprep.subr.bf16.mxu0 0
      %839 = vmatpush1.bf16.msra.mxu0 0
      %840 = vmatprep.subr.bf16.mxu0 0
      %841 = vmatpush1.bf16.msra.mxu0 0
      %842 = vmatprep.subr.bf16.mxu0 0
      %843 = vmatpush1.bf16.msra.mxu0 0
      %844 = vmatprep.subr.bf16.mxu0 0
      %845 = vmatpush1.bf16.msra.mxu0 0
      %846 = vmatprep.subr.bf16.mxu0 0
      %847 = vmatpush1.bf16.msra.mxu0 0
      %848 = vmatprep.subr.bf16.mxu0 0
      %849 = vmatpush1.bf16.msra.mxu0 0
      %850 = vmatprep.subr.bf16.mxu0 0
      %851 = vmatpush1.bf16.msra.mxu0 0
      %852 = vmatprep.subr.bf16.mxu0 0
      %853 = vmatpush1.bf16.msra.mxu0 0
      %854 = vmatprep.subr.bf16.mxu0 0
      %855 = vmatpush1.bf16.msra.mxu0 0
      %856 = vmatprep.subr.bf16.mxu0 0
      %857 = vmatpush1.bf16.msra.mxu0 0
      %858 = vmatprep.subr.bf16.mxu0 0
      %859 = vmatpush1.bf16.msra.mxu0 0
      %860 = vmatprep.subr.bf16.mxu0 0
      %861 = vmatpush1.bf16.msra.mxu0 0
      %862 = vmatprep.subr.bf16.mxu0 0
      %863 = vmatpush1.bf16.msra.mxu0 0
      %864 = vmatprep.mubr.bf16.mxu0 0
      %865 = vmatmul.mubr.bf16.gmra.mrb[0].mxu0 %v824
      %v866 = vpop.f32.mrb[0].mxu0
      %v867 = vadd.f32 0.0, %v866
      %v868 = vpop.f32.mrb[0].mxu0
      %v869 = vpop.f32.mrb[0].mxu0
      %v870 = vadd.f32 0.0, %v869
      %v871 = vpop.f32.mrb[0].mxu0
      %872 = vmatprep.mubr.bf16.mxu0 0
      %873 = vmatmul.mubr.bf16.gmra.mrb[0].mxu0 %v827
      %v874 = vpop.f32.mrb[0].mxu0
      %v875 = vadd.f32 0.0, %v874
      %v876 = vpop.f32.mrb[0].mxu0
      %v877 = vpop.f32.mrb[0].mxu0
      %v878 = vpop.f32.mrb[0].mxu0
      %879 = vdwg.mxu0
      %v880 = vpack.c.bf16 %v870, %v867
      %v881 = vpack.c.bf16 %v875, %v875
      %v884 = vunpack.c.l.b16 %v880
      %v885 = vunpack.c.h.b16 %v880
      %v886 = vunpack.c.l.b16 %v881
      %v887 = vpack.c.b16 %v884, %v884
      %v888 = vpack.c.b16 %v885, %v885
      %v889 = vpack.c.b16 %v886, %v886
      %890 = vrot.lane.b32.xlu0 %v887, 48
      %v891 = vpop.permute.xlu0 %890
      %892 = vrot.lane.b32.xlu0 %v888, 48
      %v893 = vpop.permute.xlu0 %892
      %894 = vrot.lane.b32.xlu0 %v889, 48
      %v895 = vpop.permute.xlu0 %894
      %vm899 = vcmask 519552
      %900 = vst.msk [vmem:[%s116] sm:$0xf] %vm899, %v891
      %901 = vst.msk [vmem:[%s116 + $0x4] sm:$0xf] %vm899, %v893
      %vm902 = vcmask 516480
      %vm903 = vmand %vm902, %vm317
      %v904 = vld [vmem:[%s116 + $0x8] sm:$0x1]
      %v905 = vsel %vm903, %v895, %v904
      %906 = vst [vmem:[%s116 + $0x8] sm:$0x1] %v905
      %p907 = scmp.lt.s32.totalorder %s12, 1
      %s908 = scalar_select %p907, %s12, 1
      %s909 = smul.addr %s908, 3
      %s910 = smul.addr %s909, 4
      %s911 = scalar_lea.vmem %s1, %s910
      // Predicated region
      $region25: #{encode_image.16} parent=23 // pred_check
        %p912 = pneg %p56
      $region26: #{encode_image.16} parent=23 // pred_check_branch
        %914 = sbr.rel (%p912) target = $region28
      $region27: #{encode_image.16} parent=23 // pred_region
        _
      $region28: #{encode_image.16} parent=23 // pred_fallthru
        _
    $region24: #{encode_image.16} parent=5 // pred_fallthru
      _
    %p915 = scmp.le.s32.totalorder 2, %s7
    // Predicated region
    $region29: #{encode_image.16} parent=5 // pred_check
      %p916 = pneg %p915
    $region30: #{encode_image.16} parent=5 // pred_check_branch
      %918 = sbr.rel (%p916) target = $region32
    $region31: #{encode_image.16} parent=5 // pred_region
      %s919 = ssub.s32 %s7, 2
      // Predicated region
      $region33: #{encode_image.16} parent=31 // pred_check
        %p920 = pneg %p62
      $region34: #{encode_image.16} parent=31 // pred_check_branch
        %922 = sbr.rel (%p920) target = $region36
      $region35: #{encode_image.16} parent=31 // pred_region
        %p923 = scmp.lt.s32.totalorder %s13, 1
        %s924 = scalar_select %p923, %s13, 1
        %s925 = smul.addr %s924, 3
        %s926 = smul.addr %s925, 4
        %s927 = scalar_lea.vmem %s1, %s926
      $region36: #{encode_image.16} parent=31 // pred_fallthru
        _
    $region32: #{encode_image.16} parent=5 // pred_fallthru
      _
  $region6: #{encode_image.16} parent=0 // loop_footer
    %s11 = sadd.s32 1, %s7
  $region7: #{encode_image.16} parent=0 // loop_footer_branch
    %6 = sbr.rel target = $region3
  $region8: #{encode_image.16} parent=0 // loop_exit
    _

// kernel: encode_image.17
$region0: #{encode_image.17}
  #allocation0 [shape = 'u32[]', space=smem, size = 0x4, offset = 0x4, fixed_abs, tag = 'smem constant byte address 0x4 - core index']
  #allocation1 [shape = 'u32[144,128]{1,0:T(1,128)}', space=vmem, size = 0x12000, scoped, tag = 'internal scratch']
  %s0 = inlined_call_operand.vmem [shape: bf16[48,128], index: 0, kind: input, shape index: {}]
  %s1 = inlined_call_operand.vmem [shape: bf16[128,128], index: 1, kind: input, shape index: {}]
  %s2 = inlined_call_operand.vmem [shape: f32[1,128], index: 2, kind: input, shape index: {}]
  %s3 = inlined_call_operand.vmem [shape: f32[48,128], index: 3, kind: input, shape index: {}]
  %s4 = inlined_call_operand.vmem [shape: f32[48,128], index: 4, kind: output, shape index: {}]
  %s5 = sld [smem:[#allocation0]]
  $region26: #{encode_image.17} parent=0
    _
  %s7 = ssub.s32 1, %s5
  %s8 = scalar_select 0, %s7, %s5
  // Predicated region
  $region2: #{encode_image.17} parent=0 // pred_check
    _
  $region3: #{encode_image.17} parent=0 // pred_check_branch
    %10 = sbr.rel (0) target = $region5
  $region4: #{encode_image.17} parent=0 // pred_region
    _
  $region5: #{encode_image.17} parent=0 // pred_fallthru
    _
  // Predicated region
  $region6: #{encode_image.17} parent=0 // pred_check
    _
  $region7: #{encode_image.17} parent=0 // pred_check_branch
    %12 = sbr.rel (0) target = $region9
  $region8: #{encode_image.17} parent=0 // pred_region
    _
  $region9: #{encode_image.17} parent=0 // pred_fallthru
    _
  // Predicated region
  $region10: #{encode_image.17} parent=0 // pred_check
    _
  $region11: #{encode_image.17} parent=0 // pred_check_branch
    %14 = sbr.rel (0) target = $region13
  $region12: #{encode_image.17} parent=0 // pred_region
    _
  $region13: #{encode_image.17} parent=0 // pred_fallthru
    _
  // Predicated region
  $region14: #{encode_image.17} parent=0 // pred_check
    _
  $region15: #{encode_image.17} parent=0 // pred_check_branch
    %16 = sbr.rel (0) target = $region17
  $region16: #{encode_image.17} parent=0 // pred_region
    _
  $region17: #{encode_image.17} parent=0 // pred_fallthru
    _
  %v18 = vld [vmem:[%s0] sm:$0xf]
  %v19 = vld [vmem:[%s0 + $0x4] sm:$0xf]
  %v20 = vld [vmem:[%s0 + $0x8] sm:$0xf]
  %v21 = vld [vmem:[%s0 + $0xc] sm:$0xf]
  %v22 = vld [vmem:[%s0 + $0x10] sm:$0xf]
  %v23 = vld [vmem:[%s0 + $0x14] sm:$0xf]
  %v24 = vld [vmem:[%s1] sm:$0xf]
  %v25 = vld [vmem:[%s1 + $0x4] sm:$0xf]
  %v26 = vld [vmem:[%s1 + $0x8] sm:$0xf]
  %v27 = vld [vmem:[%s1 + $0xc] sm:$0xf]
  %v28 = vld [vmem:[%s1 + $0x10] sm:$0xf]
  %v29 = vld [vmem:[%s1 + $0x14] sm:$0xf]
  %v30 = vld [vmem:[%s1 + $0x18] sm:$0xf]
  %v31 = vld [vmem:[%s1 + $0x1c] sm:$0xf]
  %v32 = vld [vmem:[%s1 + $0x20] sm:$0xf]
  %v33 = vld [vmem:[%s1 + $0x24] sm:$0xf]
  %v34 = vld [vmem:[%s1 + $0x28] sm:$0xf]
  %v35 = vld [vmem:[%s1 + $0x2c] sm:$0xf]
  %v36 = vld [vmem:[%s1 + $0x30] sm:$0xf]
  %v37 = vld [vmem:[%s1 + $0x34] sm:$0xf]
  %v38 = vld [vmem:[%s1 + $0x38] sm:$0xf]
  %v39 = vld [vmem:[%s1 + $0x3c] sm:$0xf]
  %v40 = vld [vmem:[%s2] sm:$0x1]
  %v42 = vlaneseq
  %v43 = vshrl.u32 %v42, 7
  %v44 = vsub.s32 0, %v43
  %v45 = vrot.slane %v40, %v44
  %v53 = vunpack.c.l.b16 %v18
  %v54 = vunpack.c.l.b16 %v19
  %v55 = vunpack.c.l.b16 %v20
  %v56 = vunpack.c.l.b16 %v21
  %v57 = vunpack.c.l.b16 %v22
  %v58 = vunpack.c.l.b16 %v23
  %v59 = vpack.c.b16 %v54, %v53
  %v60 = vpack.c.b16 %v56, %v55
  %v61 = vpack.c.b16 %v58, %v57
  %v81 = vunpack.c.l.b16 %v24
  %v82 = vunpack.c.l.b16 %v25
  %v83 = vunpack.c.l.b16 %v26
  %v84 = vunpack.c.l.b16 %v27
  %v85 = vunpack.c.l.b16 %v28
  %v86 = vunpack.c.l.b16 %v29
  %v87 = vunpack.c.l.b16 %v30
  %v88 = vunpack.c.l.b16 %v31
  %v89 = vunpack.c.l.b16 %v32
  %v90 = vunpack.c.l.b16 %v33
  %v91 = vunpack.c.l.b16 %v34
  %v92 = vunpack.c.l.b16 %v35
  %v93 = vunpack.c.l.b16 %v36
  %v94 = vunpack.c.l.b16 %v37
  %v95 = vunpack.c.l.b16 %v38
  %v96 = vunpack.c.l.b16 %v39
  %v97 = vpack.c.b16 %v82, %v81
  %v98 = vpack.c.b16 %v84, %v83
  %v99 = vpack.c.b16 %v86, %v85
  %v100 = vpack.c.b16 %v88, %v87
  %v101 = vpack.c.b16 %v90, %v89
  %v102 = vpack.c.b16 %v92, %v91
  %v103 = vpack.c.b16 %v94, %v93
  %v104 = vpack.c.b16 %v96, %v95
  %113 = vmatprep.subr.bf16.mxu0 0
  %114 = vmatpush1.bf16.msra.mxu0 %v97
  %115 = vmatprep.subr.bf16.mxu0 0
  %116 = vmatpush1.bf16.msra.mxu0 %v98
  %117 = vmatprep.subr.bf16.mxu0 0
  %118 = vmatpush1.bf16.msra.mxu0 %v99
  %119 = vmatprep.subr.bf16.mxu0 0
  %120 = vmatpush1.bf16.msra.mxu0 %v100
  %121 = vmatprep.subr.bf16.mxu0 0
  %122 = vmatpush1.bf16.msra.mxu0 %v101
  %123 = vmatprep.subr.bf16.mxu0 0
  %124 = vmatpush1.bf16.msra.mxu0 %v102
  %125 = vmatprep.subr.bf16.mxu0 0
  %126 = vmatpush1.bf16.msra.mxu0 %v103
  %127 = vmatprep.subr.bf16.mxu0 0
  %128 = vmatpush1.bf16.msra.mxu0 %v104
  %129 = vmatprep.subr.bf16.mxu0 0
  %130 = vmatpush1.bf16.msra.mxu0 0
  %131 = vmatprep.subr.bf16.mxu0 0
  %132 = vmatpush1.bf16.msra.mxu0 0
  %133 = vmatprep.subr.bf16.mxu0 0
  %134 = vmatpush1.bf16.msra.mxu0 0
  %135 = vmatprep.subr.bf16.mxu0 0
  %136 = vmatpush1.bf16.msra.mxu0 0
  %137 = vmatprep.subr.bf16.mxu0 0
  %138 = vmatpush1.bf16.msra.mxu0 0
  %139 = vmatprep.subr.bf16.mxu0 0
  %140 = vmatpush1.bf16.msra.mxu0 0
  %141 = vmatprep.subr.bf16.mxu0 0
  %142 = vmatpush1.bf16.msra.mxu0 0
  %143 = vmatprep.subr.bf16.mxu0 0
  %144 = vmatpush1.bf16.msra.mxu0 0
  %145 = vmatprep.mubr.bf16.mxu0 0
  %146 = vmatmul.mubr.bf16.gmra.mrb[0].mxu0 %v59
  %v147 = vpop.f32.mrb[0].mxu0
  %v148 = vadd.f32 %v45, %v147
  %v149 = vpop.f32.mrb[0].mxu0
  %v150 = vpop.f32.mrb[0].mxu0
  %v151 = vadd.f32 %v45, %v150
  %v152 = vpop.f32.mrb[0].mxu0
  %153 = vmatprep.mubr.bf16.mxu0 0
  %154 = vmatmul.mubr.bf16.gmra.mrb[0].mxu0 %v60
  %v155 = vpop.f32.mrb[0].mxu0
  %v156 = vadd.f32 %v45, %v155
  %v157 = vpop.f32.mrb[0].mxu0
  %v158 = vpop.f32.mrb[0].mxu0
  %v159 = vadd.f32 %v45, %v158
  %v160 = vpop.f32.mrb[0].mxu0
  %161 = vmatprep.mubr.bf16.mxu0 0
  %162 = vmatmul.mubr.bf16.gmra.mrb[0].mxu0 %v61
  %v163 = vpop.f32.mrb[0].mxu0
  %v164 = vadd.f32 %v45, %v163
  %v165 = vpop.f32.mrb[0].mxu0
  %v166 = vpop.f32.mrb[0].mxu0
  %v167 = vadd.f32 %v45, %v166
  %v168 = vpop.f32.mrb[0].mxu0
  %169 = vdwg.mxu0
  %v170 = vld [vmem:[%s3] sm:$0xff]
  %v171 = vld [vmem:[%s3 + $0x8] sm:$0xff]
  %v172 = vld [vmem:[%s3 + $0x10] sm:$0xff]
  %v173 = vld [vmem:[%s3 + $0x18] sm:$0xff]
  %v174 = vld [vmem:[%s3 + $0x20] sm:$0xff]
  %v175 = vld [vmem:[%s3 + $0x28] sm:$0xff]
  %v176 = vadd.f32 %v148, %v170
  %v177 = vadd.f32 %v151, %v171
  %v178 = vadd.f32 %v156, %v172
  %v179 = vadd.f32 %v159, %v173
  %v180 = vadd.f32 %v164, %v174
  %v181 = vadd.f32 %v167, %v175
  %182 = vst [vmem:[%s4] sm:$0xff] %v176
  %183 = vst [vmem:[%s4 + $0x8] sm:$0xff] %v177
  %184 = vst [vmem:[%s4 + $0x10] sm:$0xff] %v178
  %185 = vst [vmem:[%s4 + $0x18] sm:$0xff] %v179
  %186 = vst [vmem:[%s4 + $0x20] sm:$0xff] %v180
  %187 = vst [vmem:[%s4 + $0x28] sm:$0xff] %v181
  // Predicated region
  $region18: #{encode_image.17} parent=0 // pred_check
    _
  $region19: #{encode_image.17} parent=0 // pred_check_branch
    %189 = sbr.rel (0) target = $region21
  $region20: #{encode_image.17} parent=0 // pred_region
    _
  $region21: #{encode_image.17} parent=0 // pred_fallthru
    _
  // Predicated region
  $region22: #{encode_image.17} parent=0 // pred_check
    _
  $region23: #{encode_image.17} parent=0 // pred_check_branch
    %191 = sbr.rel (0) target = $region25
  $region24: #{encode_image.17} parent=0 // pred_region
    _
  $region25: #{encode_image.17} parent=0 // pred_fallthru
    _

// kernel: encode_image.18
$region0: #{encode_image.18}
  #allocation0 [shape = 'u32[]', space=smem, size = 0x4, offset = 0x4, fixed_abs, tag = 'smem constant byte address 0x4 - core index']
  #allocation1 [shape = 'u32[144,128]{1,0:T(1,128)}', space=vmem, size = 0x12000, scoped, tag = 'internal scratch']
  %s0 = inlined_call_operand.vmem [shape: f32[48,64], index: 0, kind: input, shape index: {}]
  %s1 = inlined_call_operand.vmem [shape: f32[1,64], index: 1, kind: input, shape index: {}]
  %s2 = inlined_call_operand.vmem [shape: f32[1,64], index: 2, kind: input, shape index: {}]
  %s3 = inlined_call_operand.vmem [shape: bf16[64,256], index: 3, kind: input, shape index: {}]
  %s4 = inlined_call_operand.vmem [shape: f32[1,256], index: 4, kind: input, shape index: {}]
  %s5 = inlined_call_operand.vmem [shape: bf16[48,256], index: 5, kind: output, shape index: {}]
  %s6 = sld [smem:[#allocation0]]
  $region30: #{encode_image.18} parent=0
    _
  %s8 = ssub.s32 1, %s6
  %s9 = scalar_select 0, %s8, %s6
  // Predicated region
  $region2: #{encode_image.18} parent=0 // pred_check
    _
  $region3: #{encode_image.18} parent=0 // pred_check_branch
    %11 = sbr.rel (0) target = $region5
  $region4: #{encode_image.18} parent=0 // pred_region
    _
  $region5: #{encode_image.18} parent=0 // pred_fallthru
    _
  // Predicated region
  $region6: #{encode_image.18} parent=0 // pred_check
    _
  $region7: #{encode_image.18} parent=0 // pred_check_branch
    %13 = sbr.rel (0) target = $region9
  $region8: #{encode_image.18} parent=0 // pred_region
    _
  $region9: #{encode_image.18} parent=0 // pred_fallthru
    _
  // Predicated region
  $region10: #{encode_image.18} parent=0 // pred_check
    _
  $region11: #{encode_image.18} parent=0 // pred_check_branch
    %15 = sbr.rel (0) target = $region13
  $region12: #{encode_image.18} parent=0 // pred_region
    _
  $region13: #{encode_image.18} parent=0 // pred_fallthru
    _
  // Predicated region
  $region14: #{encode_image.18} parent=0 // pred_check
    _
  $region15: #{encode_image.18} parent=0 // pred_check_branch
    %17 = sbr.rel (0) target = $region17
  $region16: #{encode_image.18} parent=0 // pred_region
    _
  $region17: #{encode_image.18} parent=0 // pred_fallthru
    _
  // Predicated region
  $region18: #{encode_image.18} parent=0 // pred_check
    _
  $region19: #{encode_image.18} parent=0 // pred_check_branch
    %19 = sbr.rel (0) target = $region21
  $region20: #{encode_image.18} parent=0 // pred_region
    _
  $region21: #{encode_image.18} parent=0 // pred_fallthru
    _
  %v21 = vld [vmem:[%s0] sm:$0xff]
  %v22 = vld [vmem:[%s0 + $0x8] sm:$0xff]
  %v23 = vld [vmem:[%s0 + $0x10] sm:$0xff]
  %v24 = vld [vmem:[%s0 + $0x18] sm:$0xff]
  %v25 = vld [vmem:[%s0 + $0x20] sm:$0xff]
  %v26 = vld [vmem:[%s0 + $0x28] sm:$0xff]
  %vm27 = vcmask 523264
  %v28 = vsel %vm27, %v21, 0.0
  %29 = vadd.xlane.f32.xlu0 %v28
  %v30 = vpop.xlane.xlu0 %29
  %v31 = vsel %vm27, %v22, 0.0
  %32 = vadd.xlane.f32.xlu0 %v31
  %v33 = vpop.xlane.xlu0 %32
  %v34 = vsel %vm27, %v23, 0.0
  %35 = vadd.xlane.f32.xlu0 %v34
  %v36 = vpop.xlane.xlu0 %35
  %v37 = vsel %vm27, %v24, 0.0
  %38 = vadd.xlane.f32.xlu0 %v37
  %v39 = vpop.xlane.xlu0 %38
  %v40 = vsel %vm27, %v25, 0.0
  %41 = vadd.xlane.f32.xlu0 %v40
  %v42 = vpop.xlane.xlu0 %41
  %v43 = vsel %vm27, %v26, 0.0
  %44 = vadd.xlane.f32.xlu0 %v43
  %v45 = vpop.xlane.xlu0 %44
  %v46 = vrcp.pop 64.0
  %v47 = vmul.f32 %v30, %v46
  %v48 = vmul.f32 %v33, %v46
  %v49 = vmul.f32 %v36, %v46
  %v50 = vmul.f32 %v39, %v46
  %v51 = vmul.f32 %v42, %v46
  %v52 = vmul.f32 %v45, %v46
  %v53 = vsub.f32 %v21, %v47
  %v54 = vsub.f32 %v22, %v48
  %v55 = vsub.f32 %v23, %v49
  %v56 = vsub.f32 %v24, %v50
  %v57 = vsub.f32 %v25, %v51
  %v58 = vsub.f32 %v26, %v52
  %v59 = vmul.f32 %v53, %v53
  %v60 = vmul.f32 %v54, %v54
  %v61 = vmul.f32 %v55, %v55
  %v62 = vmul.f32 %v56, %v56
  %v63 = vmul.f32 %v57, %v57
  %v64 = vmul.f32 %v58, %v58
  %v65 = vsel %vm27, %v59, 0.0
  %66 = vadd.xlane.f32.xlu0 %v65
  %v67 = vpop.xlane.xlu0 %66
  %v68 = vsel %vm27, %v60, 0.0
  %69 = vadd.xlane.f32.xlu0 %v68
  %v70 = vpop.xlane.xlu0 %69
  %v71 = vsel %vm27, %v61, 0.0
  %72 = vadd.xlane.f32.xlu0 %v71
  %v73 = vpop.xlane.xlu0 %72
  %v74 = vsel %vm27, %v62, 0.0
  %75 = vadd.xlane.f32.xlu0 %v74
  %v76 = vpop.xlane.xlu0 %75
  %v77 = vsel %vm27, %v63, 0.0
  %78 = vadd.xlane.f32.xlu0 %v77
  %v79 = vpop.xlane.xlu0 %78
  %v80 = vsel %vm27, %v64, 0.0
  %81 = vadd.xlane.f32.xlu0 %v80
  %v82 = vpop.xlane.xlu0 %81
  %v83 = vmul.f32 %v67, %v46
  %v84 = vmul.f32 %v70, %v46
  %v85 = vmul.f32 %v73, %v46
  %v86 = vmul.f32 %v76, %v46
  %v87 = vmul.f32 %v79, %v46
  %v88 = vmul.f32 %v82, %v46
  %v89 = vadd.f32 %v83, 1e-05
  %v90 = vadd.f32 %v84, 1e-05
  %v91 = vadd.f32 %v85, 1e-05
  %v92 = vadd.f32 %v86, 1e-05
  %v93 = vadd.f32 %v87, 1e-05
  %v94 = vadd.f32 %v88, 1e-05
  %v95 = vrsqrt.pop %v89
  %v96 = vrsqrt.pop %v90
  %v97 = vrsqrt.pop %v91
  %v98 = vrsqrt.pop %v92
  %v99 = vrsqrt.pop %v93
  %v100 = vrsqrt.pop %v94
  %v101 = vmul.f32 %v53, %v95
  %v102 = vmul.f32 %v54, %v96
  %v103 = vmul.f32 %v55, %v97
  %v104 = vmul.f32 %v56, %v98
  %v105 = vmul.f32 %v57, %v99
  %v106 = vmul.f32 %v58, %v100
  %v107 = vld [vmem:[%s1] sm:$0x1]
  %v109 = vlaneseq
  %v110 = vshrl.u32 %v109, 7
  %v111 = vsub.s32 0, %v110
  %v112 = vrot.slane %v107, %v111
  %v114 = vmul.f32 %v101, %v112
  %v115 = vmul.f32 %v102, %v112
  %v116 = vmul.f32 %v103, %v112
  %v117 = vmul.f32 %v104, %v112
  %v118 = vmul.f32 %v105, %v112
  %v119 = vmul.f32 %v106, %v112
  %v120 = vld [vmem:[%s2] sm:$0x1]
  %v122 = vlaneseq
  %v123 = vshrl.u32 %v122, 7
  %v124 = vsub.s32 0, %v123
  %v125 = vrot.slane %v120, %v124
  %v127 = vadd.f32 %v114, %v125
  %v128 = vadd.f32 %v115, %v125
  %v129 = vadd.f32 %v116, %v125
  %v130 = vadd.f32 %v117, %v125
  %v131 = vadd.f32 %v118, %v125
  %v132 = vadd.f32 %v119, %v125
  %v133 = vpack.c.bf16 %v128, %v127
  %v134 = vpack.c.bf16 %v130, %v129
  %v135 = vpack.c.bf16 %v132, %v131
  %v136 = vld [vmem:[%s3] sm:$0xff]
  %v137 = vld [vmem:[%s3 + $0x8] sm:$0xff]
  %v138 = vld [vmem:[%s3 + $0x10] sm:$0xff]
  %v139 = vld [vmem:[%s3 + $0x18] sm:$0xff]
  %v140 = vld [vmem:[%s3 + $0x20] sm:$0xff]
  %v141 = vld [vmem:[%s3 + $0x28] sm:$0xff]
  %v142 = vld [vmem:[%s3 + $0x30] sm:$0xff]
  %v143 = vld [vmem:[%s3 + $0x38] sm:$0xff]
  %v144 = vld [vmem:[%s4] sm:$0x3]
  %v146 = vlaneseq
  %v147 = vshrl.u32 %v146, 7
  %v148 = vsub.s32 0, %v147
  %v149 = vrot.slane %v144, %v148
  %v150 = vlaneseq
  %v151 = vshrl.u32 %v150, 7
  %v152 = vsub.s32 1, %v151
  %v153 = vrot.slane %v144, %v152
  %v164 = vunpack.c.l.b16 %v136
  %v165 = vunpack.c.h.b16 %v136
  %v166 = vunpack.c.l.b16 %v137
  %v167 = vunpack.c.h.b16 %v137
  %v168 = vunpack.c.l.b16 %v138
  %v169 = vunpack.c.h.b16 %v138
  %v170 = vunpack.c.l.b16 %v139
  %v171 = vunpack.c.h.b16 %v139
  %v172 = vunpack.c.l.b16 %v140
  %v173 = vunpack.c.h.b16 %v140
  %v174 = vunpack.c.l.b16 %v141
  %v175 = vunpack.c.h.b16 %v141
  %v176 = vunpack.c.l.b16 %v142
  %v177 = vunpack.c.h.b16 %v142
  %v178 = vunpack.c.l.b16 %v143
  %v179 = vunpack.c.h.b16 %v143
  %v180 = vpack.c.b16 %v166, %v164
  %v181 = vpack.c.b16 %v167, %v165
  %v182 = vpack.c.b16 %v170, %v168
  %v183 = vpack.c.b16 %v171, %v169
  %v184 = vpack.c.b16 %v174, %v172
  %v185 = vpack.c.b16 %v175, %v173
  %v186 = vpack.c.b16 %v178, %v176
  %v187 = vpack.c.b16 %v179, %v177
  %v197 = vsel %vm27, %v133, 0
  %v200 = vsel %vm27, %v134, 0
  %v203 = vsel %vm27, %v135, 0
  %205 = vmatprep.subr.bf16.mxu0 %v181
  %206 = vmatpush1.bf16.msra.mxu0 %v180
  %207 = vmatprep.subr.bf16.mxu0 %v183
  %208 = vmatpush1.bf16.msra.mxu0 %v182
  %209 = vmatprep.subr.bf16.mxu0 %v185
  %210 = vmatpush1.bf16.msra.mxu0 %v184
  %211 = vmatprep.subr.bf16.mxu0 %v187
  %212 = vmatpush1.bf16.msra.mxu0 %v186
  %213 = vmatprep.subr.bf16.mxu0 0
  %214 = vmatpush1.bf16.msra.mxu0 0
  %215 = vmatprep.subr.bf16.mxu0 0
  %216 = vmatpush1.bf16.msra.mxu0 0
  %217 = vmatprep.subr.bf16.mxu0 0
  %218 = vmatpush1.bf16.msra.mxu0 0
  %219 = vmatprep.subr.bf16.mxu0 0
  %220 = vmatpush1.bf16.msra.mxu0 0
  %221 = vmatprep.subr.bf16.mxu0 0
  %222 = vmatpush1.bf16.msra.mxu0 0
  %223 = vmatprep.subr.bf16.mxu0 0
  %224 = vmatpush1.bf16.msra.mxu0 0
  %225 = vmatprep.subr.bf16.mxu0 0
  %226 = vmatpush1.bf16.msra.mxu0 0
  %227 = vmatprep.subr.bf16.mxu0 0
  %228 = vmatpush1.bf16.msra.mxu0 0
  %229 = vmatprep.subr.bf16.mxu0 0
  %230 = vmatpush1.bf16.msra.mxu0 0
  %231 = vmatprep.subr.bf16.mxu0 0
  %232 = vmatpush1.bf16.msra.mxu0 0
  %233 = vmatprep.subr.bf16.mxu0 0
  %234 = vmatpush1.bf16.msra.mxu0 0
  %235 = vmatprep.subr.bf16.mxu0 0
  %236 = vmatpush1.bf16.msra.mxu0 0
  %237 = vmatprep.mubr.bf16.mxu0 0
  %238 = vmatmul.mubr.bf16.gmra.mrb[0].mxu0 %v197
  %v239 = vpop.f32.mrb[0].mxu0
  %v240 = vadd.f32 %v149, %v239
  %v241 = vpop.f32.mrb[0].mxu0
  %v242 = vadd.f32 %v153, %v241
  %v243 = vpop.f32.mrb[0].mxu0
  %v244 = vadd.f32 %v149, %v243
  %v245 = vpop.f32.mrb[0].mxu0
  %v246 = vadd.f32 %v153, %v245
  %247 = vmatprep.mubr.bf16.mxu0 0
  %248 = vmatmul.mubr.bf16.gmra.mrb[0].mxu0 %v200
  %v249 = vpop.f32.mrb[0].mxu0
  %v250 = vadd.f32 %v149, %v249
  %v251 = vpop.f32.mrb[0].mxu0
  %v252 = vadd.f32 %v153, %v251
  %v253 = vpop.f32.mrb[0].mxu0
  %v254 = vadd.f32 %v149, %v253
  %v255 = vpop.f32.mrb[0].mxu0
  %v256 = vadd.f32 %v153, %v255
  %257 = vmatprep.mubr.bf16.mxu0 0
  %258 = vmatmul.mubr.bf16.gmra.mrb[0].mxu0 %v203
  %v259 = vpop.f32.mrb[0].mxu0
  %v260 = vadd.f32 %v149, %v259
  %v261 = vpop.f32.mrb[0].mxu0
  %v262 = vadd.f32 %v153, %v261
  %v263 = vpop.f32.mrb[0].mxu0
  %v264 = vadd.f32 %v149, %v263
  %v265 = vpop.f32.mrb[0].mxu0
  %v266 = vadd.f32 %v153, %v265
  %267 = vdwg.mxu0
  %v268 = vmul.f32 %v240, 1.702
  %v269 = vmul.f32 %v242, 1.702
  %v270 = vmul.f32 %v244, 1.702
  %v271 = vmul.f32 %v246, 1.702
  %v272 = vmul.f32 %v250, 1.702
  %v273 = vmul.f32 %v252, 1.702
  %v274 = vmul.f32 %v254, 1.702
  %v275 = vmul.f32 %v256, 1.702
  %v276 = vmul.f32 %v260, 1.702
  %v277 = vmul.f32 %v262, 1.702
  %v278 = vmul.f32 %v264, 1.702
  %v279 = vmul.f32 %v266, 1.702
  %v280 = vxor.u32 %v268, 2147483648
  %v281 = vxor.u32 %v269, 2147483648
  %v282 = vxor.u32 %v270, 2147483648
  %v283 = vxor.u32 %v271, 2147483648
  %v284 = vxor.u32 %v272, 2147483648
  %v285 = vxor.u32 %v273, 2147483648
  %v286 = vxor.u32 %v274, 2147483648
  %v287 = vxor.u32 %v275, 2147483648
  %v288 = vxor.u32 %v276, 2147483648
  %v289 = vxor.u32 %v277, 2147483648
  %v290 = vxor.u32 %v278, 2147483648
  %v291 = vxor.u32 %v279, 2147483648
  %v292 = vmul.f32 %v280, 1.442695
  %v293 = vpow.pop %v292
  %v294 = vmul.f32 %v281, 1.442695
  %v295 = vpow.pop %v294
  %v296 = vmul.f32 %v282, 1.442695
  %v297 = vpow.pop %v296
  %v298 = vmul.f32 %v283, 1.442695
  %v299 = vpow.pop %v298
  %v300 = vmul.f32 %v284, 1.442695
  %v301 = vpow.pop %v300
  %v302 = vmul.f32 %v285, 1.442695
  %v303 = vpow.pop %v302
  %v304 = vmul.f32 %v286, 1.442695
  %v305 = vpow.pop %v304
  %v306 = vmul.f32 %v287, 1.442695
  %v307 = vpow.pop %v306
  %v308 = vmul.f32 %v288, 1.442695
  %v309 = vpow.pop %v308
  %v310 = vmul.f32 %v289, 1.442695
  %v311 = vpow.pop %v310
  %v312 = vmul.f32 %v290, 1.442695
  %v313 = vpow.pop %v312
  %v314 = vmul.f32 %v291, 1.442695
  %v315 = vpow.pop %v314
  %v316 = vadd.f32 %v293, 1.0
  %v317 = vadd.f32 %v295, 1.0
  %v318 = vadd.f32 %v297, 1.0
  %v319 = vadd.f32 %v299, 1.0
  %v320 = vadd.f32 %v301, 1.0
  %v321 = vadd.f32 %v303, 1.0
  %v322 = vadd.f32 %v305, 1.0
  %v323 = vadd.f32 %v307, 1.0
  %v324 = vadd.f32 %v309, 1.0
  %v325 = vadd.f32 %v311, 1.0
  %v326 = vadd.f32 %v313, 1.0
  %v327 = vadd.f32 %v315, 1.0
  %v328 = vrcp.pop %v316
  %v329 = vmul.f32 1.0, %v328
  %v330 = vrcp.pop %v317
  %v331 = vmul.f32 1.0, %v330
  %v332 = vrcp.pop %v318
  %v333 = vmul.f32 1.0, %v332
  %v334 = vrcp.pop %v319
  %v335 = vmul.f32 1.0, %v334
  %v336 = vrcp.pop %v320
  %v337 = vmul.f32 1.0, %v336
  %v338 = vrcp.pop %v321
  %v339 = vmul.f32 1.0, %v338
  %v340 = vrcp.pop %v322
  %v341 = vmul.f32 1.0, %v340
  %v342 = vrcp.pop %v323
  %v343 = vmul.f32 1.0, %v342
  %v344 = vrcp.pop %v324
  %v345 = vmul.f32 1.0, %v344
  %v346 = vrcp.pop %v325
  %v347 = vmul.f32 1.0, %v346
  %v348 = vrcp.pop %v326
  %v349 = vmul.f32 1.0, %v348
  %v350 = vrcp.pop %v327
  %v351 = vmul.f32 1.0, %v350
  %v352 = vmul.f32 %v240, %v329
  %v353 = vmul.f32 %v242, %v331
  %v354 = vmul.f32 %v244, %v333
  %v355 = vmul.f32 %v246, %v335
  %v356 = vmul.f32 %v250, %v337
  %v357 = vmul.f32 %v252, %v339
  %v358 = vmul.f32 %v254, %v341
  %v359 = vmul.f32 %v256, %v343
  %v360 = vmul.f32 %v260, %v345
  %v361 = vmul.f32 %v262, %v347
  %v362 = vmul.f32 %v264, %v349
  %v363 = vmul.f32 %v266, %v351
  %v364 = vpack.c.bf16 %v354, %v352
  %v365 = vpack.c.bf16 %v355, %v353
  %v366 = vpack.c.bf16 %v358, %v356
  %v367 = vpack.c.bf16 %v359, %v357
  %v368 = vpack.c.bf16 %v362, %v360
  %v369 = vpack.c.bf16 %v363, %v361
  %v376 = vunpack.c.l.b16 %v364
  %v377 = vunpack.c.l.b16 %v365
  %v378 = vunpack.c.h.b16 %v364
  %v379 = vunpack.c.h.b16 %v365
  %v380 = vunpack.c.l.b16 %v366
  %v381 = vunpack.c.l.b16 %v367
  %v382 = vunpack.c.h.b16 %v366
  %v383 = vunpack.c.h.b16 %v367
  %v384 = vunpack.c.l.b16 %v368
  %v385 = vunpack.c.l.b16 %v369
  %v386 = vunpack.c.h.b16 %v368
  %v387 = vunpack.c.h.b16 %v369
  %v388 = vpack.c.b16 %v377, %v376
  %v389 = vpack.c.b16 %v379, %v378
  %v390 = vpack.c.b16 %v381, %v380
  %v391 = vpack.c.b16 %v383, %v382
  %v392 = vpack.c.b16 %v385, %v384
  %v393 = vpack.c.b16 %v387, %v386
  %400 = vst [vmem:[%s5] sm:$0xff] %v388
  %401 = vst [vmem:[%s5 + $0x8] sm:$0xff] %v389
  %402 = vst [vmem:[%s5 + $0x10] sm:$0xff] %v390
  %403 = vst [vmem:[%s5 + $0x18] sm:$0xff] %v391
  %404 = vst [vmem:[%s5 + $0x20] sm:$0xff] %v392
  %405 = vst [vmem:[%s5 + $0x28] sm:$0xff] %v393
  // Predicated region
  $region22: #{encode_image.18} parent=0 // pred_check
    _
  $region23: #{encode_image.18} parent=0 // pred_check_branch
    %407 = sbr.rel (0) target = $region25
  $region24: #{encode_image.18} parent=0 // pred_region
    _
  $region25: #{encode_image.18} parent=0 // pred_fallthru
    _
  // Predicated region
  $region26: #{encode_image.18} parent=0 // pred_check
    _
  $region27: #{encode_image.18} parent=0 // pred_check_branch
    %409 = sbr.rel (0) target = $region29
  $region28: #{encode_image.18} parent=0 // pred_region
    _
  $region29: #{encode_image.18} parent=0 // pred_fallthru
    _

// kernel: encode_image.25
$region0: #{encode_image.25}
  #allocation0 [shape = 'u32[]', space=smem, size = 0x4, offset = 0x4, fixed_abs, tag = 'smem constant byte address 0x4 - core index']
  #allocation1 [shape = 'u32[144,128]{1,0:T(1,128)}', space=vmem, size = 0x12000, scoped, tag = 'internal scratch']
  %s0 = inlined_call_operand.vmem [shape: f32[16,64], index: 0, kind: input, shape index: {}]
  %s1 = inlined_call_operand.vmem [shape: f32[1,64], index: 1, kind: input, shape index: {}]
  %s2 = inlined_call_operand.vmem [shape: f32[1,64], index: 2, kind: input, shape index: {}]
  %s3 = inlined_call_operand.vmem [shape: bf16[64,128], index: 3, kind: input, shape index: {}]
  %s4 = inlined_call_operand.vmem [shape: f32[16,128], index: 4, kind: output, shape index: {}]
  %s5 = sld [smem:[#allocation0]]
  $region26: #{encode_image.25} parent=0
    _
  %s7 = ssub.s32 1, %s5
  %s8 = scalar_select 0, %s7, %s5
  // Predicated region
  $region2: #{encode_image.25} parent=0 // pred_check
    _
  $region3: #{encode_image.25} parent=0 // pred_check_branch
    %10 = sbr.rel (0) target = $region5
  $region4: #{encode_image.25} parent=0 // pred_region
    _
  $region5: #{encode_image.25} parent=0 // pred_fallthru
    _
  // Predicated region
  $region6: #{encode_image.25} parent=0 // pred_check
    _
  $region7: #{encode_image.25} parent=0 // pred_check_branch
    %12 = sbr.rel (0) target = $region9
  $region8: #{encode_image.25} parent=0 // pred_region
    _
  $region9: #{encode_image.25} parent=0 // pred_fallthru
    _
  // Predicated region
  $region10: #{encode_image.25} parent=0 // pred_check
    _
  $region11: #{encode_image.25} parent=0 // pred_check_branch
    %14 = sbr.rel (0) target = $region13
  $region12: #{encode_image.25} parent=0 // pred_region
    _
  $region13: #{encode_image.25} parent=0 // pred_fallthru
    _
  // Predicated region
  $region14: #{encode_image.25} parent=0 // pred_check
    _
  $region15: #{encode_image.25} parent=0 // pred_check_branch
    %16 = sbr.rel (0) target = $region17
  $region16: #{encode_image.25} parent=0 // pred_region
    _
  $region17: #{encode_image.25} parent=0 // pred_fallthru
    _
  %v18 = vld [vmem:[%s0] sm:$0xff]
  %v19 = vld [vmem:[%s0 + $0x8] sm:$0xff]
  %vm20 = vcmask 523264
  %v21 = vsel %vm20, %v18, 0.0
  %22 = vadd.xlane.f32.xlu0 %v21
  %v23 = vpop.xlane.xlu0 %22
  %v24 = vsel %vm20, %v19, 0.0
  %25 = vadd.xlane.f32.xlu0 %v24
  %v26 = vpop.xlane.xlu0 %25
  %v27 = vrcp.pop 64.0
  %v28 = vmul.f32 %v23, %v27
  %v29 = vmul.f32 %v26, %v27
  %v30 = vsub.f32 %v18, %v28
  %v31 = vsub.f32 %v19, %v29
  %v32 = vmul.f32 %v30, %v30
  %v33 = vmul.f32 %v31, %v31
  %v34 = vsel %vm20, %v32, 0.0
  %35 = vadd.xlane.f32.xlu0 %v34
  %v36 = vpop.xlane.xlu0 %35
  %v37 = vsel %vm20, %v33, 0.0
  %38 = vadd.xlane.f32.xlu0 %v37
  %v39 = vpop.xlane.xlu0 %38
  %v40 = vmul.f32 %v36, %v27
  %v41 = vmul.f32 %v39, %v27
  %v42 = vadd.f32 %v40, 1e-05
  %v43 = vadd.f32 %v41, 1e-05
  %v44 = vrsqrt.pop %v42
  %v45 = vrsqrt.pop %v43
  %v46 = vmul.f32 %v30, %v44
  %v47 = vmul.f32 %v31, %v45
  %v48 = vld [vmem:[%s1] sm:$0x1]
  %v50 = vlaneseq
  %v51 = vshrl.u32 %v50, 7
  %v52 = vsub.s32 0, %v51
  %v53 = vrot.slane %v48, %v52
  %v55 = vmul.f32 %v46, %v53
  %v56 = vmul.f32 %v47, %v53
  %v57 = vld [vmem:[%s2] sm:$0x1]
  %v59 = vlaneseq
  %v60 = vshrl.u32 %v59, 7
  %v61 = vsub.s32 0, %v60
  %v62 = vrot.slane %v57, %v61
  %v64 = vadd.f32 %v55, %v62
  %v65 = vadd.f32 %v56, %v62
  %v66 = vpack.c.bf16 %v65, %v64
  %v67 = vld [vmem:[%s3] sm:$0xf]
  %v68 = vld [vmem:[%s3 + $0x4] sm:$0xf]
  %v69 = vld [vmem:[%s3 + $0x8] sm:$0xf]
  %v70 = vld [vmem:[%s3 + $0xc] sm:$0xf]
  %v71 = vld [vmem:[%s3 + $0x10] sm:$0xf]
  %v72 = vld [vmem:[%s3 + $0x14] sm:$0xf]
  %v73 = vld [vmem:[%s3 + $0x18] sm:$0xf]
  %v74 = vld [vmem:[%s3 + $0x1c] sm:$0xf]
  %v83 = vunpack.c.l.b16 %v67
  %v84 = vunpack.c.l.b16 %v68
  %v85 = vunpack.c.l.b16 %v69
  %v86 = vunpack.c.l.b16 %v70
  %v87 = vunpack.c.l.b16 %v71
  %v88 = vunpack.c.l.b16 %v72
  %v89 = vunpack.c.l.b16 %v73
  %v90 = vunpack.c.l.b16 %v74
  %v91 = vpack.c.b16 %v84, %v83
  %v92 = vpack.c.b16 %v86, %v85
  %v93 = vpack.c.b16 %v88, %v87
  %v94 = vpack.c.b16 %v90, %v89
  %v100 = vsel %vm20, %v66, 0
  %102 = vmatprep.subr.bf16.mxu0 0
  %103 = vmatpush1.bf16.msra.mxu0 %v91
  %104 = vmatprep.subr.bf16.mxu0 0
  %105 = vmatpush1.bf16.msra.mxu0 %v92
  %106 = vmatprep.subr.bf16.mxu0 0
  %107 = vmatpush1.bf16.msra.mxu0 %v93
  %108 = vmatprep.subr.bf16.mxu0 0
  %109 = vmatpush1.bf16.msra.mxu0 %v94
  %110 = vmatprep.subr.bf16.mxu0 0
  %111 = vmatpush1.bf16.msra.mxu0 0
  %112 = vmatprep.subr.bf16.mxu0 0
  %113 = vmatpush1.bf16.msra.mxu0 0
  %114 = vmatprep.subr.bf16.mxu0 0
  %115 = vmatpush1.bf16.msra.mxu0 0
  %116 = vmatprep.subr.bf16.mxu0 0
  %117 = vmatpush1.bf16.msra.mxu0 0
  %118 = vmatprep.subr.bf16.mxu0 0
  %119 = vmatpush1.bf16.msra.mxu0 0
  %120 = vmatprep.subr.bf16.mxu0 0
  %121 = vmatpush1.bf16.msra.mxu0 0
  %122 = vmatprep.subr.bf16.mxu0 0
  %123 = vmatpush1.bf16.msra.mxu0 0
  %124 = vmatprep.subr.bf16.mxu0 0
  %125 = vmatpush1.bf16.msra.mxu0 0
  %126 = vmatprep.subr.bf16.mxu0 0
  %127 = vmatpush1.bf16.msra.mxu0 0
  %128 = vmatprep.subr.bf16.mxu0 0
  %129 = vmatpush1.bf16.msra.mxu0 0
  %130 = vmatprep.subr.bf16.mxu0 0
  %131 = vmatpush1.bf16.msra.mxu0 0
  %132 = vmatprep.subr.bf16.mxu0 0
  %133 = vmatpush1.bf16.msra.mxu0 0
  %134 = vmatprep.mubr.bf16.mxu0 0
  %135 = vmatmul.mubr.bf16.gmra.mrb[0].mxu0 %v100
  %v136 = vpop.f32.mrb[0].mxu0
  %v137 = vadd.f32 0.0, %v136
  %v138 = vpop.f32.mrb[0].mxu0
  %v139 = vpop.f32.mrb[0].mxu0
  %v140 = vadd.f32 0.0, %v139
  %v141 = vpop.f32.mrb[0].mxu0
  %142 = vdwg.mxu0
  %143 = vst [vmem:[%s4] sm:$0xff] %v137
  %144 = vst [vmem:[%s4 + $0x8] sm:$0xff] %v140
  // Predicated region
  $region18: #{encode_image.25} parent=0 // pred_check
    _
  $region19: #{encode_image.25} parent=0 // pred_check_branch
    %146 = sbr.rel (0) target = $region21
  $region20: #{encode_image.25} parent=0 // pred_region
    _
  $region21: #{encode_image.25} parent=0 // pred_fallthru
    _
  // Predicated region
  $region22: #{encode_image.25} parent=0 // pred_check
    _
  $region23: #{encode_image.25} parent=0 // pred_check_branch
    %148 = sbr.rel (0) target = $region25
  $region24: #{encode_image.25} parent=0 // pred_region
    _
  $region25: #{encode_image.25} parent=0 // pred_fallthru
    _

// kernel: encode_image.19
$region0: #{encode_image.19}
  #allocation0 [shape = 'u32[]', space=smem, size = 0x4, offset = 0x4, fixed_abs, tag = 'smem constant byte address 0x4 - core index']
  #allocation1 [shape = 'u32[144,128]{1,0:T(1,128)}', space=vmem, size = 0x12000, scoped, tag = 'internal scratch']
  %s0 = inlined_call_operand.vmem [shape: bf16[48,256], index: 0, kind: input, shape index: {}]
  %s1 = inlined_call_operand.vmem [shape: bf16[256,128], index: 1, kind: input, shape index: {}]
  %s2 = inlined_call_operand.vmem [shape: f32[1,128], index: 2, kind: input, shape index: {}]
  %s3 = inlined_call_operand.vmem [shape: f32[48,128], index: 3, kind: input, shape index: {}]
  %s4 = inlined_call_operand.vmem [shape: f32[48,128], index: 4, kind: output, shape index: {}]
  %s5 = sld [smem:[#allocation0]]
  $region26: #{encode_image.19} parent=0
    _
  %s7 = ssub.s32 1, %s5
  %s8 = scalar_select 0, %s7, %s5
  // Predicated region
  $region2: #{encode_image.19} parent=0 // pred_check
    _
  $region3: #{encode_image.19} parent=0 // pred_check_branch
    %10 = sbr.rel (0) target = $region5
  $region4: #{encode_image.19} parent=0 // pred_region
    _
  $region5: #{encode_image.19} parent=0 // pred_fallthru
    _
  // Predicated region
  $region6: #{encode_image.19} parent=0 // pred_check
    _
  $region7: #{encode_image.19} parent=0 // pred_check_branch
    %12 = sbr.rel (0) target = $region9
  $region8: #{encode_image.19} parent=0 // pred_region
    _
  $region9: #{encode_image.19} parent=0 // pred_fallthru
    _
  // Predicated region
  $region10: #{encode_image.19} parent=0 // pred_check
    _
  $region11: #{encode_image.19} parent=0 // pred_check_branch
    %14 = sbr.rel (0) target = $region13
  $region12: #{encode_image.19} parent=0 // pred_region
    _
  $region13: #{encode_image.19} parent=0 // pred_fallthru
    _
  // Predicated region
  $region14: #{encode_image.19} parent=0 // pred_check
    _
  $region15: #{encode_image.19} parent=0 // pred_check_branch
    %16 = sbr.rel (0) target = $region17
  $region16: #{encode_image.19} parent=0 // pred_region
    _
  $region17: #{encode_image.19} parent=0 // pred_fallthru
    _
  %v18 = vld [vmem:[%s0] sm:$0xff]
  %v19 = vld [vmem:[%s0 + $0x8] sm:$0xff]
  %v20 = vld [vmem:[%s0 + $0x10] sm:$0xff]
  %v21 = vld [vmem:[%s0 + $0x18] sm:$0xff]
  %v22 = vld [vmem:[%s0 + $0x20] sm:$0xff]
  %v23 = vld [vmem:[%s0 + $0x28] sm:$0xff]
  %v24 = vld [vmem:[%s1] sm:$0xf]
  %v25 = vld [vmem:[%s1 + $0x4] sm:$0xf]
  %v26 = vld [vmem:[%s1 + $0x8] sm:$0xf]
  %v27 = vld [vmem:[%s1 + $0xc] sm:$0xf]
  %v28 = vld [vmem:[%s1 + $0x10] sm:$0xf]
  %v29 = vld [vmem:[%s1 + $0x14] sm:$0xf]
  %v30 = vld [vmem:[%s1 + $0x18] sm:$0xf]
  %v31 = vld [vmem:[%s1 + $0x1c] sm:$0xf]
  %v32 = vld [vmem:[%s1 + $0x20] sm:$0xf]
  %v33 = vld [vmem:[%s1 + $0x24] sm:$0xf]
  %v34 = vld [vmem:[%s1 + $0x28] sm:$0xf]
  %v35 = vld [vmem:[%s1 + $0x2c] sm:$0xf]
  %v36 = vld [vmem:[%s1 + $0x30] sm:$0xf]
  %v37 = vld [vmem:[%s1 + $0x34] sm:$0xf]
  %v38 = vld [vmem:[%s1 + $0x38] sm:$0xf]
  %v39 = vld [vmem:[%s1 + $0x3c] sm:$0xf]
  %v40 = vld [vmem:[%s1 + $0x40] sm:$0xf]
  %v41 = vld [vmem:[%s1 + $0x44] sm:$0xf]
  %v42 = vld [vmem:[%s1 + $0x48] sm:$0xf]
  %v43 = vld [vmem:[%s1 + $0x4c] sm:$0xf]
  %v44 = vld [vmem:[%s1 + $0x50] sm:$0xf]
  %v45 = vld [vmem:[%s1 + $0x54] sm:$0xf]
  %v46 = vld [vmem:[%s1 + $0x58] sm:$0xf]
  %v47 = vld [vmem:[%s1 + $0x5c] sm:$0xf]
  %v48 = vld [vmem:[%s1 + $0x60] sm:$0xf]
  %v49 = vld [vmem:[%s1 + $0x64] sm:$0xf]
  %v50 = vld [vmem:[%s1 + $0x68] sm:$0xf]
  %v51 = vld [vmem:[%s1 + $0x6c] sm:$0xf]
  %v52 = vld [vmem:[%s1 + $0x70] sm:$0xf]
  %v53 = vld [vmem:[%s1 + $0x74] sm:$0xf]
  %v54 = vld [vmem:[%s1 + $0x78] sm:$0xf]
  %v55 = vld [vmem:[%s1 + $0x7c] sm:$0xf]
  %v56 = vld [vmem:[%s2] sm:$0x1]
  %v58 = vlaneseq
  %v59 = vshrl.u32 %v58, 7
  %v60 = vsub.s32 0, %v59
  %v61 = vrot.slane %v56, %v60
  %v69 = vunpack.c.l.b16 %v18
  %v70 = vunpack.c.h.b16 %v18
  %v71 = vunpack.c.l.b16 %v19
  %v72 = vunpack.c.h.b16 %v19
  %v73 = vunpack.c.l.b16 %v20
  %v74 = vunpack.c.h.b16 %v20
  %v75 = vunpack.c.l.b16 %v21
  %v76 = vunpack.c.h.b16 %v21
  %v77 = vunpack.c.l.b16 %v22
  %v78 = vunpack.c.h.b16 %v22
  %v79 = vunpack.c.l.b16 %v23
  %v80 = vunpack.c.h.b16 %v23
  %v81 = vpack.c.b16 %v71, %v69
  %v82 = vpack.c.b16 %v72, %v70
  %v83 = vpack.c.b16 %v75, %v73
  %v84 = vpack.c.b16 %v76, %v74
  %v85 = vpack.c.b16 %v79, %v77
  %v86 = vpack.c.b16 %v80, %v78
  %v125 = vunpack.c.l.b16 %v24
  %v126 = vunpack.c.l.b16 %v25
  %v127 = vunpack.c.l.b16 %v26
  %v128 = vunpack.c.l.b16 %v27
  %v129 = vunpack.c.l.b16 %v28
  %v130 = vunpack.c.l.b16 %v29
  %v131 = vunpack.c.l.b16 %v30
  %v132 = vunpack.c.l.b16 %v31
  %v133 = vunpack.c.l.b16 %v32
  %v134 = vunpack.c.l.b16 %v33
  %v135 = vunpack.c.l.b16 %v34
  %v136 = vunpack.c.l.b16 %v35
  %v137 = vunpack.c.l.b16 %v36
  %v138 = vunpack.c.l.b16 %v37
  %v139 = vunpack.c.l.b16 %v38
  %v140 = vunpack.c.l.b16 %v39
  %v141 = vunpack.c.l.b16 %v40
  %v142 = vunpack.c.l.b16 %v41
  %v143 = vunpack.c.l.b16 %v42
  %v144 = vunpack.c.l.b16 %v43
  %v145 = vunpack.c.l.b16 %v44
  %v146 = vunpack.c.l.b16 %v45
  %v147 = vunpack.c.l.b16 %v46
  %v148 = vunpack.c.l.b16 %v47
  %v149 = vunpack.c.l.b16 %v48
  %v150 = vunpack.c.l.b16 %v49
  %v151 = vunpack.c.l.b16 %v50
  %v152 = vunpack.c.l.b16 %v51
  %v153 = vunpack.c.l.b16 %v52
  %v154 = vunpack.c.l.b16 %v53
  %v155 = vunpack.c.l.b16 %v54
  %v156 = vunpack.c.l.b16 %v55
  %v157 = vpack.c.b16 %v126, %v125
  %v158 = vpack.c.b16 %v128, %v127
  %v159 = vpack.c.b16 %v130, %v129
  %v160 = vpack.c.b16 %v132, %v131
  %v161 = vpack.c.b16 %v134, %v133
  %v162 = vpack.c.b16 %v136, %v135
  %v163 = vpack.c.b16 %v138, %v137
  %v164 = vpack.c.b16 %v140, %v139
  %v165 = vpack.c.b16 %v142, %v141
  %v166 = vpack.c.b16 %v144, %v143
  %v167 = vpack.c.b16 %v146, %v145
  %v168 = vpack.c.b16 %v148, %v147
  %v169 = vpack.c.b16 %v150, %v149
  %v170 = vpack.c.b16 %v152, %v151
  %v171 = vpack.c.b16 %v154, %v153
  %v172 = vpack.c.b16 %v156, %v155
  %189 = vmatprep.subr.bf16.mxu0 0
  %190 = vmatpush1.bf16.msra.mxu0 %v157
  %191 = vmatprep.subr.bf16.mxu0 0
  %192 = vmatpush1.bf16.msra.mxu0 %v158
  %193 = vmatprep.subr.bf16.mxu0 0
  %194 = vmatpush1.bf16.msra.mxu0 %v159
  %195 = vmatprep.subr.bf16.mxu0 0
  %196 = vmatpush1.bf16.msra.mxu0 %v160
  %197 = vmatprep.subr.bf16.mxu0 0
  %198 = vmatpush1.bf16.msra.mxu0 %v161
  %199 = vmatprep.subr.bf16.mxu0 0
  %200 = vmatpush1.bf16.msra.mxu0 %v162
  %201 = vmatprep.subr.bf16.mxu0 0
  %202 = vmatpush1.bf16.msra.mxu0 %v163
  %203 = vmatprep.subr.bf16.mxu0 0
  %204 = vmatpush1.bf16.msra.mxu0 %v164
  %205 = vmatprep.subr.bf16.mxu0 0
  %206 = vmatpush1.bf16.msra.mxu0 %v165
  %207 = vmatprep.subr.bf16.mxu0 0
  %208 = vmatpush1.bf16.msra.mxu0 %v166
  %209 = vmatprep.subr.bf16.mxu0 0
  %210 = vmatpush1.bf16.msra.mxu0 %v167
  %211 = vmatprep.subr.bf16.mxu0 0
  %212 = vmatpush1.bf16.msra.mxu0 %v168
  %213 = vmatprep.subr.bf16.mxu0 0
  %214 = vmatpush1.bf16.msra.mxu0 %v169
  %215 = vmatprep.subr.bf16.mxu0 0
  %216 = vmatpush1.bf16.msra.mxu0 %v170
  %217 = vmatprep.subr.bf16.mxu0 0
  %218 = vmatpush1.bf16.msra.mxu0 %v171
  %219 = vmatprep.subr.bf16.mxu0 0
  %220 = vmatpush1.bf16.msra.mxu0 %v172
  %221 = vmatprep.mubr.bf16.mxu0 %v82
  %222 = vmatmul.mubr.bf16.gmra.mrb[0].mxu0 %v81
  %v223 = vpop.f32.mrb[0].mxu0
  %v224 = vadd.f32 %v61, %v223
  %v225 = vpop.f32.mrb[0].mxu0
  %v226 = vpop.f32.mrb[0].mxu0
  %v227 = vadd.f32 %v61, %v226
  %v228 = vpop.f32.mrb[0].mxu0
  %229 = vmatprep.mubr.bf16.mxu0 %v84
  %230 = vmatmul.mubr.bf16.gmra.mrb[0].mxu0 %v83
  %v231 = vpop.f32.mrb[0].mxu0
  %v232 = vadd.f32 %v61, %v231
  %v233 = vpop.f32.mrb[0].mxu0
  %v234 = vpop.f32.mrb[0].mxu0
  %v235 = vadd.f32 %v61, %v234
  %v236 = vpop.f32.mrb[0].mxu0
  %237 = vmatprep.mubr.bf16.mxu0 %v86
  %238 = vmatmul.mubr.bf16.gmra.mrb[0].mxu0 %v85
  %v239 = vpop.f32.mrb[0].mxu0
  %v240 = vadd.f32 %v61, %v239
  %v241 = vpop.f32.mrb[0].mxu0
  %v242 = vpop.f32.mrb[0].mxu0
  %v243 = vadd.f32 %v61, %v242
  %v244 = vpop.f32.mrb[0].mxu0
  %245 = vdwg.mxu0
  %v246 = vld [vmem:[%s3] sm:$0xff]
  %v247 = vld [vmem:[%s3 + $0x8] sm:$0xff]
  %v248 = vld [vmem:[%s3 + $0x10] sm:$0xff]
  %v249 = vld [vmem:[%s3 + $0x18] sm:$0xff]
  %v250 = vld [vmem:[%s3 + $0x20] sm:$0xff]
  %v251 = vld [vmem:[%s3 + $0x28] sm:$0xff]
  %v252 = vadd.f32 %v224, %v246
  %v253 = vadd.f32 %v227, %v247
  %v254 = vadd.f32 %v232, %v248
  %v255 = vadd.f32 %v235, %v249
  %v256 = vadd.f32 %v240, %v250
  %v257 = vadd.f32 %v243, %v251
  %258 = vst [vmem:[%s4] sm:$0xff] %v252
  %259 = vst [vmem:[%s4 + $0x8] sm:$0xff] %v253
  %260 = vst [vmem:[%s4 + $0x10] sm:$0xff] %v254
  %261 = vst [vmem:[%s4 + $0x18] sm:$0xff] %v255
  %262 = vst [vmem:[%s4 + $0x20] sm:$0xff] %v256
  %263 = vst [vmem:[%s4 + $0x28] sm:$0xff] %v257
  // Predicated region
  $region18: #{encode_image.19} parent=0 // pred_check
    _
  $region19: #{encode_image.19} parent=0 // pred_check_branch
    %265 = sbr.rel (0) target = $region21
  $region20: #{encode_image.19} parent=0 // pred_region
    _
  $region21: #{encode_image.19} parent=0 // pred_fallthru
    _
  // Predicated region
  $region22: #{encode_image.19} parent=0 // pred_check
    _
  $region23: #{encode_image.19} parent=0 // pred_check_branch
    %267 = sbr.rel (0) target = $region25
  $region24: #{encode_image.19} parent=0 // pred_region
    _
  $region25: #{encode_image.19} parent=0 // pred_fallthru
    _

</llo_original>
